<compile_context>
chip_gen: v6e
topology: v6e:2x2x1
jax: 0.10.0
libtpu: 0.0.40
codegen_flags: <defaults>
</compile_context>

<pallas_src>
import functools

import jax
import jax.numpy as jnp
from jax.experimental import pallas as pl
from jax.experimental.pallas import tpu as pltpu

# -------------------- config (small, consistent with the module) --------------------
S = 8            # sequence length
B = 2            # batch
E = 32           # embedding_dimension (d_model)
H = 8            # heads
L = 4            # layers
F = 2048         # dim_feedforward (PyTorch default)
EPS = 1e-5       # LayerNorm eps (PyTorch default)
BS = B * S       # folded row dimension
D = E // H       # head dim
NEG_INF = -1e30  # additive mask for cross-batch attention entries

_NT = (((1,), (1,)), ((), ()))   # A @ B^T  (contract last dims)
_NN = (((1,), (0,)), ((), ()))   # A @ B


# ----------------------------- fused all-layer Pallas kernel ------------------------
def fused_encoder_kernel(x_ref, hmask_ref, bbias_ref,
                         wqkv_ref, bqkv_ref, wo_ref, bo_ref,
                         g1_ref, beta1_ref, w1_ref, b1_ref,
                         w2_ref, b2_ref, g2_ref, beta2_ref,
                         o_ref, act_ref, *, heads, eps):
    l = pl.program_id(0)

    # Load the input activation once; it stays resident in VMEM scratch across layers.
    @pl.when(l == 0)
    def _():
        act_ref[...] = x_ref[...]

    x = act_ref[...]                              # (BS, E) f32
    bs, e = x.shape
    d = e // heads
    scale = 1.0 / (d ** 0.5)

    # ---- self attention (nn.MultiheadAttention, q=k=v=x) ----
    xb = x.astype(jnp.bfloat16)
    qkv = jax.lax.dot_general(xb, wqkv_ref[0], _NN,
                              preferred_element_type=jnp.float32) + bqkv_ref[0]  # (BS, 3E)
    q = qkv[:, 0 * e:1 * e] * scale
    k = qkv[:, 1 * e:2 * e]
    v = qkv[:, 2 * e:3 * e]

    bbias = bbias_ref[...]                        # (BS, BS): 0 same-batch, -1e30 cross-batch
    attn = jnp.zeros((bs, e), jnp.float32)
    for h in range(heads):                        # static unroll; full-width masked matmuls
        m = hmask_ref[h]                          # (1, E) 0/1 mask for head h's columns
        sc = jax.lax.dot_general(q * m, k, _NT,
                                 preferred_element_type=jnp.float32)             # (BS, BS)
        sc = sc + bbias
        sc = sc - jnp.max(sc, axis=-1, keepdims=True)
        p = jnp.exp(sc)
        p = p / jnp.sum(p, axis=-1, keepdims=True)
        attn = attn + jax.lax.dot_general(p, v * m, _NN,
                                          preferred_element_type=jnp.float32)    # (BS, E)

    attn = jax.lax.dot_general(attn.astype(jnp.bfloat16), wo_ref[0], _NN,
                               preferred_element_type=jnp.float32) + bo_ref[0]

    # ---- residual + LayerNorm1 (f32) ----
    y = x + attn
    mu = jnp.mean(y, axis=-1, keepdims=True)
    var = jnp.mean((y - mu) ** 2, axis=-1, keepdims=True)
    y = (y - mu) * jax.lax.rsqrt(var + eps) * g1_ref[0] + beta1_ref[0]

    # ---- feed-forward: linear1 -> gelu(exact, erf) -> linear2 ----
    h1 = jax.lax.dot_general(y.astype(jnp.bfloat16), w1_ref[0], _NN,
                             preferred_element_type=jnp.float32) + b1_ref[0]      # (BS, F)
    h1 = 0.5 * h1 * (1.0 + jax.lax.erf(h1 * 0.7071067811865476))
    h2 = jax.lax.dot_general(h1.astype(jnp.bfloat16), w2_ref[0], _NT,             # lane-dense w2
                             preferred_element_type=jnp.float32) + b2_ref[0]      # (BS, E)

    # ---- residual + LayerNorm2 (f32) ----
    z = y + h2
    mu2 = jnp.mean(z, axis=-1, keepdims=True)
    var2 = jnp.mean((z - mu2) ** 2, axis=-1, keepdims=True)
    z = (z - mu2) * jax.lax.rsqrt(var2 + eps) * g2_ref[0] + beta2_ref[0]

    act_ref[...] = z                              # resident activation for the next layer

    @pl.when(l == pl.num_programs(0) - 1)
    def _():
        o_ref[...] = z


def _const_spec(shape):
    nd = len(shape)
    return pl.BlockSpec(tuple(shape), lambda l: (0,) * nd)


def _layer_spec(shape):
    nd = len(shape)
    return pl.BlockSpec((1,) + tuple(shape[1:]), lambda l: (l,) + (0,) * (nd - 1))


def make_fused_call():
    kernel = functools.partial(fused_encoder_kernel, heads=H, eps=EPS)
    in_specs = [
        _const_spec((BS, E)),          # x (f32)
        _const_spec((H, 1, E)),        # per-head column masks
        _const_spec((BS, BS)),         # cross-batch additive bias
        _layer_spec((L, E, 3 * E)),    # in_proj weight^T (bf16)
        _layer_spec((L, 1, 3 * E)),    # in_proj bias
        _layer_spec((L, E, E)),        # out_proj weight^T (bf16)
        _layer_spec((L, 1, E)),        # out_proj bias
        _layer_spec((L, 1, E)),        # norm1 gamma
        _layer_spec((L, 1, E)),        # norm1 beta
        _layer_spec((L, E, F)),        # linear1 weight^T (bf16), lane-dense
        _layer_spec((L, 1, F)),        # linear1 bias
        _layer_spec((L, E, F)),        # linear2 weight (E,F) (bf16), lane-dense, used as h1@w2^T
        _layer_spec((L, 1, E)),        # linear2 bias
        _layer_spec((L, 1, E)),        # norm2 gamma
        _layer_spec((L, 1, E)),        # norm2 beta
    ]

    flops = L * (2 * BS * E * 3 * E                     # qkv proj
                 + H * (2 * BS * E * BS + 2 * BS * BS * E)  # masked attention
                 + 2 * BS * E * E                       # out proj
                 + 2 * BS * E * F + 2 * BS * F * E)     # FFN
    transcendentals = L * (H * BS * BS + BS * F + 2 * BS)
    weight_bytes = L * (2 * (E * 3 * E + E * E + 2 * E * F)          # bf16 weights
                        + 4 * (3 * E + 6 * E + F))                   # f32 biases / LN params
    bytes_accessed = weight_bytes + 2 * BS * E * 4 + (H * E + BS * BS) * 4

    return pl.pallas_call(
        kernel,
        out_shape=jax.ShapeDtypeStruct((BS, E), jnp.float32),
        grid_spec=pltpu.PrefetchScalarGridSpec(
            num_scalar_prefetch=0,
            grid=(L,),
            in_specs=in_specs,
            out_specs=_const_spec((BS, E)),
            scratch_shapes=[pltpu.VMEM((BS, E), jnp.float32)],
        ),
        compiler_params=pltpu.CompilerParams(dimension_semantics=("arbitrary",)),
        cost_estimate=pl.CostEstimate(flops=flops,
                                      transcendentals=transcendentals,
                                      bytes_accessed=bytes_accessed),
    )


def _head_masks():
    cols = jnp.arange(E)
    rows = []
    for h in range(H):
        rows.append(((cols >= h * D) & (cols < (h + 1) * D)).astype(jnp.float32))
    return jnp.stack(rows, axis=0).reshape(H, 1, E)


def _batch_bias():
    grp = jnp.arange(BS) // S
    return jnp.where(grp[:, None] == grp[None, :], 0.0, NEG_INF).astype(jnp.float32)


# ------------------------------ parameter construction ------------------------------
def init_params(key):
    """Stacked per-layer parameters. Weights bf16 (MXU operands), biases/LN params f32.
    wqkv / wo / w1 are stored transposed (x @ W layout); w2 is stored as the PyTorch
    linear2.weight (E, F) and contracted as h1 @ w2^T to stay lane-dense."""
    ks = jax.random.split(key, 6)
    bf16 = jnp.bfloat16
    return dict(
        wqkv=(0.05 * jax.random.normal(ks[0], (L, E, 3 * E), jnp.float32)).astype(bf16),
        bqkv=0.02 * jax.random.normal(ks[1], (L, 1, 3 * E), jnp.float32),
        wo=(0.05 * jax.random.normal(ks[2], (L, E, E), jnp.float32)).astype(bf16),
        bo=jnp.zeros((L, 1, E), jnp.float32),
        g1=jnp.ones((L, 1, E), jnp.float32),
        beta1=jnp.zeros((L, 1, E), jnp.float32),
        w1=(0.05 * jax.random.normal(ks[3], (L, E, F), jnp.float32)).astype(bf16),
        b1=0.02 * jax.random.normal(ks[4], (L, 1, F), jnp.float32),
        w2=(0.05 * jax.random.normal(ks[5], (L, E, F), jnp.float32)).astype(bf16),
        b2=jnp.zeros((L, 1, E), jnp.float32),
        g2=jnp.ones((L, 1, E), jnp.float32),
        beta2=jnp.zeros((L, 1, E), jnp.float32),
    )


# ----------------------------------- full forward ------------------------------------
@jax.jit
def memo_transformer_forward(x_sbe, params):
    """x_sbe: (S, B, E) float32 (PyTorch seq-first layout), returns (S, B, E)."""
    call = make_fused_call()
    x2d = jnp.transpose(x_sbe, (1, 0, 2)).reshape(BS, E)      # (B*S, E), batch-major rows
    out = call(x2d, _head_masks(), _batch_bias(),
               params["wqkv"], params["bqkv"], params["wo"], params["bo"],
               params["g1"], params["beta1"], params["w1"], params["b1"],
               params["w2"], params["b2"], params["g2"], params["beta2"])
    return jnp.transpose(out.reshape(B, S, E), (1, 0, 2))


# ------------------------------ pure-JAX reference (check) ---------------------------
def _ref_layer(xb, wqkv, bqkv, wo, bo, g1, beta1, w1, b1, w2, b2, g2, beta2):
    d = E // H
    qkv = xb @ wqkv + bqkv
    q = qkv[:, :E] / (d ** 0.5)
    k = qkv[:, E:2 * E]
    v = qkv[:, 2 * E:]
    outs = []
    for h in range(H):
        sc = q[:, h * d:(h + 1) * d] @ k[:, h * d:(h + 1) * d].T
        pmat = jax.nn.softmax(sc, axis=-1)
        outs.append(pmat @ v[:, h * d:(h + 1) * d])
    attn = jnp.concatenate(outs, axis=1) @ wo + bo

    y = xb + attn
    mu = jnp.mean(y, -1, keepdims=True)
    var = jnp.mean((y - mu) ** 2, -1, keepdims=True)
    y = (y - mu) * jax.lax.rsqrt(var + EPS) * g1 + beta1

    h1 = y @ w1 + b1
    h1 = 0.5 * h1 * (1.0 + jax.lax.erf(h1 * 0.7071067811865476))
    z = y + (h1 @ w2.T + b2)
    mu2 = jnp.mean(z, -1, keepdims=True)
    var2 = jnp.mean((z - mu2) ** 2, -1, keepdims=True)
    return (z - mu2) * jax.lax.rsqrt(var2 + EPS) * g2 + beta2


def ref_forward(x_sbe, params):
    f32 = lambda a: a.astype(jnp.float32)
    x = jnp.transpose(x_sbe, (1, 0, 2))            # (B, S, E)
    for l in range(L):
        args = (f32(params["wqkv"][l]), params["bqkv"][l],
                f32(params["wo"][l]), params["bo"][l],
                params["g1"][l], params["beta1"][l],
                f32(params["w1"][l]), params["b1"][l],
                f32(params["w2"][l]), params["b2"][l],
                params["g2"][l], params["beta2"][l])
        x = jax.vmap(lambda xb: _ref_layer(xb, *args))(x)
    return jnp.transpose(x, (1, 0, 2))


# ----------------------------------------- main ---------------------------------------
if __name__ == "__main__":
    key = jax.random.PRNGKey(0)
    kx, kp = jax.random.split(key)
    x = jax.random.normal(kx, (S, B, E), jnp.float32)   # (seq, batch, embed), PyTorch layout
    params = init_params(kp)

    out = jax.block_until_ready(memo_transformer_forward(x, params))
    ref = jax.block_until_ready(ref_forward(x, params))

    assert out.shape == (S, B, E)
    max_err = float(jnp.max(jnp.abs(out - ref)))
    # bf16 MXU operands vs f32 reference -> relaxed tolerance (per perf review).
    assert jnp.allclose(out, ref, rtol=2e-2, atol=2e-2), max_err

    print("KERNEL_OK")
</pallas_src>

<mosaic_0001>
module attributes {stable_mosaic.version = 11 : i64} {
  func.func @fused_encoder_kernel(%arg0: i32, %arg1: memref<16x32xf32, #tpu.memory_space<vmem>>, %arg2: memref<8x1x32xf32, #tpu.memory_space<vmem>>, %arg3: memref<16x16xf32, #tpu.memory_space<vmem>>, %arg4: memref<1x32x96xbf16, #tpu.memory_space<vmem>>, %arg5: memref<1x1x96xf32, #tpu.memory_space<vmem>>, %arg6: memref<1x32x32xbf16, #tpu.memory_space<vmem>>, %arg7: memref<1x1x32xf32, #tpu.memory_space<vmem>>, %arg8: memref<1x1x32xf32, #tpu.memory_space<vmem>>, %arg9: memref<1x1x32xf32, #tpu.memory_space<vmem>>, %arg10: memref<1x32x2048xbf16, #tpu.memory_space<vmem>>, %arg11: memref<1x1x2048xf32, #tpu.memory_space<vmem>>, %arg12: memref<1x32x2048xbf16, #tpu.memory_space<vmem>>, %arg13: memref<1x1x32xf32, #tpu.memory_space<vmem>>, %arg14: memref<1x1x32xf32, #tpu.memory_space<vmem>>, %arg15: memref<1x1x32xf32, #tpu.memory_space<vmem>>, %arg16: memref<16x32xf32, #tpu.memory_space<vmem>>, %arg17: memref<16x32xf32, #tpu.memory_space<vmem>>) attributes {dimension_semantics = [#tpu.dimension_semantics<arbitrary>], iteration_bounds = array<i64: 4>, scalar_prefetch = 0 : i64, scratch_operands = 1 : i64, tpu.core_type = #tpu.core_type<tc>, window_params = [{pipeline_mode = #tpu.pipeline_mode<synchronous>, transform_indices = @transform_0, window_bounds = array<i64: 16, 32>}, {pipeline_mode = #tpu.pipeline_mode<synchronous>, transform_indices = @transform_1, window_bounds = array<i64: 8, 1, 32>}, {pipeline_mode = #tpu.pipeline_mode<synchronous>, transform_indices = @transform_2, window_bounds = array<i64: 16, 16>}, {transform_indices = @transform_3, window_bounds = array<i64: 1, 32, 96>}, {transform_indices = @transform_4, window_bounds = array<i64: 1, 1, 96>}, {transform_indices = @transform_5, window_bounds = array<i64: 1, 32, 32>}, {transform_indices = @transform_6, window_bounds = array<i64: 1, 1, 32>}, {transform_indices = @transform_7, window_bounds = array<i64: 1, 1, 32>}, {transform_indices = @transform_8, window_bounds = array<i64: 1, 1, 32>}, {transform_indices = @transform_9, window_bounds = array<i64: 1, 32, 2048>}, {transform_indices = @transform_10, window_bounds = array<i64: 1, 1, 2048>}, {transform_indices = @transform_11, window_bounds = array<i64: 1, 32, 2048>}, {transform_indices = @transform_12, window_bounds = array<i64: 1, 1, 32>}, {transform_indices = @transform_13, window_bounds = array<i64: 1, 1, 32>}, {transform_indices = @transform_14, window_bounds = array<i64: 1, 1, 32>}, {pipeline_mode = #tpu.pipeline_mode<synchronous>, transform_indices = @transform_15, window_bounds = array<i64: 16, 32>}]} {
    %c0_i32 = arith.constant 0 : i32
    %0 = arith.cmpi eq, %arg0, %c0_i32 : i32
    %1 = arith.extui %0 : i1 to i32
    %c0_i32_0 = arith.constant 0 : i32
    %2 = arith.cmpi ne, %1, %c0_i32_0 : i32
    scf.if %2 {
      %c0_110 = arith.constant 0 : index
      %c0_111 = arith.constant 0 : index
      %261 = vector.load %arg1[%c0_110, %c0_111] : memref<16x32xf32, #tpu.memory_space<vmem>>, vector<16x32xf32>
      %c0_112 = arith.constant 0 : index
      %c0_113 = arith.constant 0 : index
      %262 = vector.load %arg17[%c0_112, %c0_113] : memref<16x32xf32, #tpu.memory_space<vmem>>, vector<16x32xf32>
      tpu.vector_store %arg17[%c0_112, %c0_113], %261 {strides = array<i32>} : memref<16x32xf32, #tpu.memory_space<vmem>>, vector<16x32xf32>,
    } else {
    }
    %c0 = arith.constant 0 : index
    %c0_1 = arith.constant 0 : index
    %3 = vector.load %arg17[%c0, %c0_1] : memref<16x32xf32, #tpu.memory_space<vmem>>, vector<16x32xf32>
    %4 = arith.truncf %3 : vector<16x32xf32> to vector<16x32xbf16>
    %c0_2 = arith.constant 0 : index
    %c0_3 = arith.constant 0 : index
    %c0_4 = arith.constant 0 : index
    %5 = vector.load %arg4[%c0_2, %c0_3, %c0_4] : memref<1x32x96xbf16, #tpu.memory_space<vmem>>, vector<1x32x96xbf16>
    %6 = vector.shape_cast %5 : vector<1x32x96xbf16> to vector<32x96xbf16>
    %cst = arith.constant dense<0.000000e+00> : vector<16x96xf32>
    %7 = tpu.matmul %4, %6, %cst {dimension_numbers = #tpu.dot_dimension_numbers<[1], [0], [0], [1], [0, 0, 1, 1], [], []>} : vector<16x32xbf16>, vector<32x96xbf16>, vector<16x96xf32> -> vector<16x96xf32>
    %c0_5 = arith.constant 0 : index
    %c0_6 = arith.constant 0 : index
    %c0_7 = arith.constant 0 : index
    %8 = vector.load %arg5[%c0_5, %c0_6, %c0_7] : memref<1x1x96xf32, #tpu.memory_space<vmem>>, vector<1x1x96xf32>
    %9 = vector.shape_cast %8 : vector<1x1x96xf32> to vector<1x96xf32>
    %10 = vector.broadcast %9 : vector<1x96xf32> to vector<16x96xf32>
    %11 = arith.addf %7, %10 : vector<16x96xf32>
    %12 = vector.extract_strided_slice %11 {offsets = [0, 0], sizes = [16, 32], strides = [1, 1]} : vector<16x96xf32> to vector<16x32xf32>
    %cst_8 = arith.constant 5.000000e-01 : f32
    %13 = vector.broadcast %cst_8 : f32 to vector<16x32xf32>
    %14 = arith.mulf %12, %13 : vector<16x32xf32>
    %15 = vector.extract_strided_slice %11 {offsets = [0, 32], sizes = [16, 32], strides = [1, 1]} : vector<16x96xf32> to vector<16x32xf32>
    %16 = vector.extract_strided_slice %11 {offsets = [0, 64], sizes = [16, 32], strides = [1, 1]} : vector<16x96xf32> to vector<16x32xf32>
    %c0_9 = arith.constant 0 : index
    %c0_10 = arith.constant 0 : index
    %17 = vector.load %arg3[%c0_9, %c0_10] : memref<16x16xf32, #tpu.memory_space<vmem>>, vector<16x16xf32>
    %cst_11 = arith.constant 0.000000e+00 : f32
    %18 = vector.broadcast %cst_11 : f32 to vector<16x32xf32>
    %c0_12 = arith.constant 0 : index
    %c0_13 = arith.constant 0 : index
    %c0_14 = arith.constant 0 : index
    %19 = vector.load %arg2[%c0_12, %c0_13, %c0_14] : memref<8x1x32xf32, #tpu.memory_space<vmem>>, vector<1x1x32xf32>
    %20 = vector.shape_cast %19 : vector<1x1x32xf32> to vector<1x32xf32>
    %21 = vector.broadcast %20 : vector<1x32xf32> to vector<16x32xf32>
    %22 = arith.mulf %14, %21 : vector<16x32xf32>
    %cst_15 = arith.constant dense<0.000000e+00> : vector<16x16xf32>
    %23 = tpu.matmul %22, %15, %cst_15 {dimension_numbers = #tpu.dot_dimension_numbers<[1], [1], [0], [0], [0, 0, 1, 0], [], []>} : vector<16x32xf32>, vector<16x32xf32>, vector<16x16xf32> -> vector<16x16xf32>
    %24 = arith.addf %23, %17 : vector<16x16xf32>
    %cst_16 = arith.constant dense<0xFF800000> : vector<16xf32>
    %25 = vector.multi_reduction <maximumf>, %24, %cst_16 [1] : vector<16x16xf32> to vector<16xf32>
    %26 = vector.shape_cast %25 : vector<16xf32> to vector<16x1xf32>
    %27 = vector.broadcast %26 : vector<16x1xf32> to vector<16x16xf32>
    %28 = arith.subf %24, %27 : vector<16x16xf32>
    %29 = math.exp %28 : vector<16x16xf32>
    %cst_17 = arith.constant dense<0.000000e+00> : vector<16xf32>
    %30 = vector.multi_reduction <add>, %29, %cst_17 [1] : vector<16x16xf32> to vector<16xf32>
    %31 = vector.shape_cast %30 : vector<16xf32> to vector<16x1xf32>
    %32 = vector.broadcast %31 : vector<16x1xf32> to vector<16x16xf32>
    %33 = arith.divf %29, %32 : vector<16x16xf32>
    %34 = vector.broadcast %20 : vector<1x32xf32> to vector<16x32xf32>
    %35 = arith.mulf %16, %34 : vector<16x32xf32>
    %cst_18 = arith.constant dense<0.000000e+00> : vector<16x32xf32>
    %36 = tpu.matmul %33, %35, %cst_18 {dimension_numbers = #tpu.dot_dimension_numbers<[1], [0], [0], [1], [0, 0, 1, 1], [], []>} : vector<16x16xf32>, vector<16x32xf32>, vector<16x32xf32> -> vector<16x32xf32>
    %37 = arith.addf %18, %36 : vector<16x32xf32>
    %c1 = arith.constant 1 : index
    %c0_19 = arith.constant 0 : index
    %c0_20 = arith.constant 0 : index
    %38 = vector.load %arg2[%c1, %c0_19, %c0_20] : memref<8x1x32xf32, #tpu.memory_space<vmem>>, vector<1x1x32xf32>
    %39 = vector.shape_cast %38 : vector<1x1x32xf32> to vector<1x32xf32>
    %40 = vector.broadcast %39 : vector<1x32xf32> to vector<16x32xf32>
    %41 = arith.mulf %14, %40 : vector<16x32xf32>
    %cst_21 = arith.constant dense<0.000000e+00> : vector<16x16xf32>
    %42 = tpu.matmul %41, %15, %cst_21 {dimension_numbers = #tpu.dot_dimension_numbers<[1], [1], [0], [0], [0, 0, 1, 0], [], []>} : vector<16x32xf32>, vector<16x32xf32>, vector<16x16xf32> -> vector<16x16xf32>
    %43 = arith.addf %42, %17 : vector<16x16xf32>
    %cst_22 = arith.constant dense<0xFF800000> : vector<16xf32>
    %44 = vector.multi_reduction <maximumf>, %43, %cst_22 [1] : vector<16x16xf32> to vector<16xf32>
    %45 = vector.shape_cast %44 : vector<16xf32> to vector<16x1xf32>
    %46 = vector.broadcast %45 : vector<16x1xf32> to vector<16x16xf32>
    %47 = arith.subf %43, %46 : vector<16x16xf32>
    %48 = math.exp %47 : vector<16x16xf32>
    %cst_23 = arith.constant dense<0.000000e+00> : vector<16xf32>
    %49 = vector.multi_reduction <add>, %48, %cst_23 [1] : vector<16x16xf32> to vector<16xf32>
    %50 = vector.shape_cast %49 : vector<16xf32> to vector<16x1xf32>
    %51 = vector.broadcast %50 : vector<16x1xf32> to vector<16x16xf32>
    %52 = arith.divf %48, %51 : vector<16x16xf32>
    %53 = vector.broadcast %39 : vector<1x32xf32> to vector<16x32xf32>
    %54 = arith.mulf %16, %53 : vector<16x32xf32>
    %cst_24 = arith.constant dense<0.000000e+00> : vector<16x32xf32>
    %55 = tpu.matmul %52, %54, %cst_24 {dimension_numbers = #tpu.dot_dimension_numbers<[1], [0], [0], [1], [0, 0, 1, 1], [], []>} : vector<16x16xf32>, vector<16x32xf32>, vector<16x32xf32> -> vector<16x32xf32>
    %56 = arith.addf %37, %55 : vector<16x32xf32>
    %c2 = arith.constant 2 : index
    %c0_25 = arith.constant 0 : index
    %c0_26 = arith.constant 0 : index
    %57 = vector.load %arg2[%c2, %c0_25, %c0_26] : memref<8x1x32xf32, #tpu.memory_space<vmem>>, vector<1x1x32xf32>
    %58 = vector.shape_cast %57 : vector<1x1x32xf32> to vector<1x32xf32>
    %59 = vector.broadcast %58 : vector<1x32xf32> to vector<16x32xf32>
    %60 = arith.mulf %14, %59 : vector<16x32xf32>
    %cst_27 = arith.constant dense<0.000000e+00> : vector<16x16xf32>
    %61 = tpu.matmul %60, %15, %cst_27 {dimension_numbers = #tpu.dot_dimension_numbers<[1], [1], [0], [0], [0, 0, 1, 0], [], []>} : vector<16x32xf32>, vector<16x32xf32>, vector<16x16xf32> -> vector<16x16xf32>
    %62 = arith.addf %61, %17 : vector<16x16xf32>
    %cst_28 = arith.constant dense<0xFF800000> : vector<16xf32>
    %63 = vector.multi_reduction <maximumf>, %62, %cst_28 [1] : vector<16x16xf32> to vector<16xf32>
    %64 = vector.shape_cast %63 : vector<16xf32> to vector<16x1xf32>
    %65 = vector.broadcast %64 : vector<16x1xf32> to vector<16x16xf32>
    %66 = arith.subf %62, %65 : vector<16x16xf32>
    %67 = math.exp %66 : vector<16x16xf32>
    %cst_29 = arith.constant dense<0.000000e+00> : vector<16xf32>
    %68 = vector.multi_reduction <add>, %67, %cst_29 [1] : vector<16x16xf32> to vector<16xf32>
    %69 = vector.shape_cast %68 : vector<16xf32> to vector<16x1xf32>
    %70 = vector.broadcast %69 : vector<16x1xf32> to vector<16x16xf32>
    %71 = arith.divf %67, %70 : vector<16x16xf32>
    %72 = vector.broadcast %58 : vector<1x32xf32> to vector<16x32xf32>
    %73 = arith.mulf %16, %72 : vector<16x32xf32>
    %cst_30 = arith.constant dense<0.000000e+00> : vector<16x32xf32>
    %74 = tpu.matmul %71, %73, %cst_30 {dimension_numbers = #tpu.dot_dimension_numbers<[1], [0], [0], [1], [0, 0, 1, 1], [], []>} : vector<16x16xf32>, vector<16x32xf32>, vector<16x32xf32> -> vector<16x32xf32>
    %75 = arith.addf %56, %74 : vector<16x32xf32>
    %c3 = arith.constant 3 : index
    %c0_31 = arith.constant 0 : index
    %c0_32 = arith.constant 0 : index
    %76 = vector.load %arg2[%c3, %c0_31, %c0_32] : memref<8x1x32xf32, #tpu.memory_space<vmem>>, vector<1x1x32xf32>
    %77 = vector.shape_cast %76 : vector<1x1x32xf32> to vector<1x32xf32>
    %78 = vector.broadcast %77 : vector<1x32xf32> to vector<16x32xf32>
    %79 = arith.mulf %14, %78 : vector<16x32xf32>
    %cst_33 = arith.constant dense<0.000000e+00> : vector<16x16xf32>
    %80 = tpu.matmul %79, %15, %cst_33 {dimension_numbers = #tpu.dot_dimension_numbers<[1], [1], [0], [0], [0, 0, 1, 0], [], []>} : vector<16x32xf32>, vector<16x32xf32>, vector<16x16xf32> -> vector<16x16xf32>
    %81 = arith.addf %80, %17 : vector<16x16xf32>
    %cst_34 = arith.constant dense<0xFF800000> : vector<16xf32>
    %82 = vector.multi_reduction <maximumf>, %81, %cst_34 [1] : vector<16x16xf32> to vector<16xf32>
    %83 = vector.shape_cast %82 : vector<16xf32> to vector<16x1xf32>
    %84 = vector.broadcast %83 : vector<16x1xf32> to vector<16x16xf32>
    %85 = arith.subf %81, %84 : vector<16x16xf32>
    %86 = math.exp %85 : vector<16x16xf32>
    %cst_35 = arith.constant dense<0.000000e+00> : vector<16xf32>
    %87 = vector.multi_reduction <add>, %86, %cst_35 [1] : vector<16x16xf32> to vector<16xf32>
    %88 = vector.shape_cast %87 : vector<16xf32> to vector<16x1xf32>
    %89 = vector.broadcast %88 : vector<16x1xf32> to vector<16x16xf32>
    %90 = arith.divf %86, %89 : vector<16x16xf32>
    %91 = vector.broadcast %77 : vector<1x32xf32> to vector<16x32xf32>
    %92 = arith.mulf %16, %91 : vector<16x32xf32>
    %cst_36 = arith.constant dense<0.000000e+00> : vector<16x32xf32>
    %93 = tpu.matmul %90, %92, %cst_36 {dimension_numbers = #tpu.dot_dimension_numbers<[1], [0], [0], [1], [0, 0, 1, 1], [], []>} : vector<16x16xf32>, vector<16x32xf32>, vector<16x32xf32> -> vector<16x32xf32>
    %94 = arith.addf %75, %93 : vector<16x32xf32>
    %c4 = arith.constant 4 : index
    %c0_37 = arith.constant 0 : index
    %c0_38 = arith.constant 0 : index
    %95 = vector.load %arg2[%c4, %c0_37, %c0_38] : memref<8x1x32xf32, #tpu.memory_space<vmem>>, vector<1x1x32xf32>
    %96 = vector.shape_cast %95 : vector<1x1x32xf32> to vector<1x32xf32>
    %97 = vector.broadcast %96 : vector<1x32xf32> to vector<16x32xf32>
    %98 = arith.mulf %14, %97 : vector<16x32xf32>
    %cst_39 = arith.constant dense<0.000000e+00> : vector<16x16xf32>
    %99 = tpu.matmul %98, %15, %cst_39 {dimension_numbers = #tpu.dot_dimension_numbers<[1], [1], [0], [0], [0, 0, 1, 0], [], []>} : vector<16x32xf32>, vector<16x32xf32>, vector<16x16xf32> -> vector<16x16xf32>
    %100 = arith.addf %99, %17 : vector<16x16xf32>
    %cst_40 = arith.constant dense<0xFF800000> : vector<16xf32>
    %101 = vector.multi_reduction <maximumf>, %100, %cst_40 [1] : vector<16x16xf32> to vector<16xf32>
    %102 = vector.shape_cast %101 : vector<16xf32> to vector<16x1xf32>
    %103 = vector.broadcast %102 : vector<16x1xf32> to vector<16x16xf32>
    %104 = arith.subf %100, %103 : vector<16x16xf32>
    %105 = math.exp %104 : vector<16x16xf32>
    %cst_41 = arith.constant dense<0.000000e+00> : vector<16xf32>
    %106 = vector.multi_reduction <add>, %105, %cst_41 [1] : vector<16x16xf32> to vector<16xf32>
    %107 = vector.shape_cast %106 : vector<16xf32> to vector<16x1xf32>
    %108 = vector.broadcast %107 : vector<16x1xf32> to vector<16x16xf32>
    %109 = arith.divf %105, %108 : vector<16x16xf32>
    %110 = vector.broadcast %96 : vector<1x32xf32> to vector<16x32xf32>
    %111 = arith.mulf %16, %110 : vector<16x32xf32>
    %cst_42 = arith.constant dense<0.000000e+00> : vector<16x32xf32>
    %112 = tpu.matmul %109, %111, %cst_42 {dimension_numbers = #tpu.dot_dimension_numbers<[1], [0], [0], [1], [0, 0, 1, 1], [], []>} : vector<16x16xf32>, vector<16x32xf32>, vector<16x32xf32> -> vector<16x32xf32>
    %113 = arith.addf %94, %112 : vector<16x32xf32>
    %c5 = arith.constant 5 : index
    %c0_43 = arith.constant 0 : index
    %c0_44 = arith.constant 0 : index
    %114 = vector.load %arg2[%c5, %c0_43, %c0_44] : memref<8x1x32xf32, #tpu.memory_space<vmem>>, vector<1x1x32xf32>
    %115 = vector.shape_cast %114 : vector<1x1x32xf32> to vector<1x32xf32>
    %116 = vector.broadcast %115 : vector<1x32xf32> to vector<16x32xf32>
    %117 = arith.mulf %14, %116 : vector<16x32xf32>
    %cst_45 = arith.constant dense<0.000000e+00> : vector<16x16xf32>
    %118 = tpu.matmul %117, %15, %cst_45 {dimension_numbers = #tpu.dot_dimension_numbers<[1], [1], [0], [0], [0, 0, 1, 0], [], []>} : vector<16x32xf32>, vector<16x32xf32>, vector<16x16xf32> -> vector<16x16xf32>
    %119 = arith.addf %118, %17 : vector<16x16xf32>
    %cst_46 = arith.constant dense<0xFF800000> : vector<16xf32>
    %120 = vector.multi_reduction <maximumf>, %119, %cst_46 [1] : vector<16x16xf32> to vector<16xf32>
    %121 = vector.shape_cast %120 : vector<16xf32> to vector<16x1xf32>
    %122 = vector.broadcast %121 : vector<16x1xf32> to vector<16x16xf32>
    %123 = arith.subf %119, %122 : vector<16x16xf32>
    %124 = math.exp %123 : vector<16x16xf32>
    %cst_47 = arith.constant dense<0.000000e+00> : vector<16xf32>
    %125 = vector.multi_reduction <add>, %124, %cst_47 [1] : vector<16x16xf32> to vector<16xf32>
    %126 = vector.shape_cast %125 : vector<16xf32> to vector<16x1xf32>
    %127 = vector.broadcast %126 : vector<16x1xf32> to vector<16x16xf32>
    %128 = arith.divf %124, %127 : vector<16x16xf32>
    %129 = vector.broadcast %115 : vector<1x32xf32> to vector<16x32xf32>
    %130 = arith.mulf %16, %129 : vector<16x32xf32>
    %cst_48 = arith.constant dense<0.000000e+00> : vector<16x32xf32>
    %131 = tpu.matmul %128, %130, %cst_48 {dimension_numbers = #tpu.dot_dimension_numbers<[1], [0], [0], [1], [0, 0, 1, 1], [], []>} : vector<16x16xf32>, vector<16x32xf32>, vector<16x32xf32> -> vector<16x32xf32>
    %132 = arith.addf %113, %131 : vector<16x32xf32>
    %c6 = arith.constant 6 : index
    %c0_49 = arith.constant 0 : index
    %c0_50 = arith.constant 0 : index
    %133 = vector.load %arg2[%c6, %c0_49, %c0_50] : memref<8x1x32xf32, #tpu.memory_space<vmem>>, vector<1x1x32xf32>
    %134 = vector.shape_cast %133 : vector<1x1x32xf32> to vector<1x32xf32>
    %135 = vector.broadcast %134 : vector<1x32xf32> to vector<16x32xf32>
    %136 = arith.mulf %14, %135 : vector<16x32xf32>
    %cst_51 = arith.constant dense<0.000000e+00> : vector<16x16xf32>
    %137 = tpu.matmul %136, %15, %cst_51 {dimension_numbers = #tpu.dot_dimension_numbers<[1], [1], [0], [0], [0, 0, 1, 0], [], []>} : vector<16x32xf32>, vector<16x32xf32>, vector<16x16xf32> -> vector<16x16xf32>
    %138 = arith.addf %137, %17 : vector<16x16xf32>
    %cst_52 = arith.constant dense<0xFF800000> : vector<16xf32>
    %139 = vector.multi_reduction <maximumf>, %138, %cst_52 [1] : vector<16x16xf32> to vector<16xf32>
    %140 = vector.shape_cast %139 : vector<16xf32> to vector<16x1xf32>
    %141 = vector.broadcast %140 : vector<16x1xf32> to vector<16x16xf32>
    %142 = arith.subf %138, %141 : vector<16x16xf32>
    %143 = math.exp %142 : vector<16x16xf32>
    %cst_53 = arith.constant dense<0.000000e+00> : vector<16xf32>
    %144 = vector.multi_reduction <add>, %143, %cst_53 [1] : vector<16x16xf32> to vector<16xf32>
    %145 = vector.shape_cast %144 : vector<16xf32> to vector<16x1xf32>
    %146 = vector.broadcast %145 : vector<16x1xf32> to vector<16x16xf32>
    %147 = arith.divf %143, %146 : vector<16x16xf32>
    %148 = vector.broadcast %134 : vector<1x32xf32> to vector<16x32xf32>
    %149 = arith.mulf %16, %148 : vector<16x32xf32>
    %cst_54 = arith.constant dense<0.000000e+00> : vector<16x32xf32>
    %150 = tpu.matmul %147, %149, %cst_54 {dimension_numbers = #tpu.dot_dimension_numbers<[1], [0], [0], [1], [0, 0, 1, 1], [], []>} : vector<16x16xf32>, vector<16x32xf32>, vector<16x32xf32> -> vector<16x32xf32>
    %151 = arith.addf %132, %150 : vector<16x32xf32>
    %c7 = arith.constant 7 : index
    %c0_55 = arith.constant 0 : index
    %c0_56 = arith.constant 0 : index
    %152 = vector.load %arg2[%c7, %c0_55, %c0_56] : memref<8x1x32xf32, #tpu.memory_space<vmem>>, vector<1x1x32xf32>
    %153 = vector.shape_cast %152 : vector<1x1x32xf32> to vector<1x32xf32>
    %154 = vector.broadcast %153 : vector<1x32xf32> to vector<16x32xf32>
    %155 = arith.mulf %14, %154 : vector<16x32xf32>
    %cst_57 = arith.constant dense<0.000000e+00> : vector<16x16xf32>
    %156 = tpu.matmul %155, %15, %cst_57 {dimension_numbers = #tpu.dot_dimension_numbers<[1], [1], [0], [0], [0, 0, 1, 0], [], []>} : vector<16x32xf32>, vector<16x32xf32>, vector<16x16xf32> -> vector<16x16xf32>
    %157 = arith.addf %156, %17 : vector<16x16xf32>
    %cst_58 = arith.constant dense<0xFF800000> : vector<16xf32>
    %158 = vector.multi_reduction <maximumf>, %157, %cst_58 [1] : vector<16x16xf32> to vector<16xf32>
    %159 = vector.shape_cast %158 : vector<16xf32> to vector<16x1xf32>
    %160 = vector.broadcast %159 : vector<16x1xf32> to vector<16x16xf32>
    %161 = arith.subf %157, %160 : vector<16x16xf32>
    %162 = math.exp %161 : vector<16x16xf32>
    %cst_59 = arith.constant dense<0.000000e+00> : vector<16xf32>
    %163 = vector.multi_reduction <add>, %162, %cst_59 [1] : vector<16x16xf32> to vector<16xf32>
    %164 = vector.shape_cast %163 : vector<16xf32> to vector<16x1xf32>
    %165 = vector.broadcast %164 : vector<16x1xf32> to vector<16x16xf32>
    %166 = arith.divf %162, %165 : vector<16x16xf32>
    %167 = vector.broadcast %153 : vector<1x32xf32> to vector<16x32xf32>
    %168 = arith.mulf %16, %167 : vector<16x32xf32>
    %cst_60 = arith.constant dense<0.000000e+00> : vector<16x32xf32>
    %169 = tpu.matmul %166, %168, %cst_60 {dimension_numbers = #tpu.dot_dimension_numbers<[1], [0], [0], [1], [0, 0, 1, 1], [], []>} : vector<16x16xf32>, vector<16x32xf32>, vector<16x32xf32> -> vector<16x32xf32>
    %170 = arith.addf %151, %169 : vector<16x32xf32>
    %171 = arith.truncf %170 : vector<16x32xf32> to vector<16x32xbf16>
    %c0_61 = arith.constant 0 : index
    %c0_62 = arith.constant 0 : index
    %c0_63 = arith.constant 0 : index
    %172 = vector.load %arg6[%c0_61, %c0_62, %c0_63] : memref<1x32x32xbf16, #tpu.memory_space<vmem>>, vector<1x32x32xbf16>
    %173 = vector.shape_cast %172 : vector<1x32x32xbf16> to vector<32x32xbf16>
    %cst_64 = arith.constant dense<0.000000e+00> : vector<16x32xf32>
    %174 = tpu.matmul %171, %173, %cst_64 {dimension_numbers = #tpu.dot_dimension_numbers<[1], [0], [0], [1], [0, 0, 1, 1], [], []>} : vector<16x32xbf16>, vector<32x32xbf16>, vector<16x32xf32> -> vector<16x32xf32>
    %c0_65 = arith.constant 0 : index
    %c0_66 = arith.constant 0 : index
    %c0_67 = arith.constant 0 : index
    %175 = vector.load %arg7[%c0_65, %c0_66, %c0_67] : memref<1x1x32xf32, #tpu.memory_space<vmem>>, vector<1x1x32xf32>
    %176 = vector.shape_cast %175 : vector<1x1x32xf32> to vector<1x32xf32>
    %177 = vector.broadcast %176 : vector<1x32xf32> to vector<16x32xf32>
    %178 = arith.addf %174, %177 : vector<16x32xf32>
    %179 = arith.addf %3, %178 : vector<16x32xf32>
    %cst_68 = arith.constant dense<0.000000e+00> : vector<16xf32>
    %180 = vector.multi_reduction <add>, %179, %cst_68 [1] : vector<16x32xf32> to vector<16xf32>
    %181 = vector.shape_cast %180 : vector<16xf32> to vector<16x1xf32>
    %cst_69 = arith.constant 3.200000e+01 : f32
    %182 = vector.broadcast %cst_69 : f32 to vector<16x1xf32>
    %183 = arith.divf %181, %182 : vector<16x1xf32>
    %184 = vector.broadcast %183 : vector<16x1xf32> to vector<16x32xf32>
    %185 = arith.subf %179, %184 : vector<16x32xf32>
    %186 = arith.mulf %185, %185 : vector<16x32xf32>
    %cst_70 = arith.constant dense<0.000000e+00> : vector<16xf32>
    %187 = vector.multi_reduction <add>, %186, %cst_70 [1] : vector<16x32xf32> to vector<16xf32>
    %188 = vector.shape_cast %187 : vector<16xf32> to vector<16x1xf32>
    %cst_71 = arith.constant 3.200000e+01 : f32
    %189 = vector.broadcast %cst_71 : f32 to vector<16x1xf32>
    %190 = arith.divf %188, %189 : vector<16x1xf32>
    %191 = vector.broadcast %183 : vector<16x1xf32> to vector<16x32xf32>
    %192 = arith.subf %179, %191 : vector<16x32xf32>
    %cst_72 = arith.constant 9.99999974E-6 : f32
    %193 = vector.broadcast %cst_72 : f32 to vector<16x1xf32>
    %194 = arith.addf %190, %193 : vector<16x1xf32>
    %195 = math.rsqrt %194 : vector<16x1xf32>
    %196 = vector.broadcast %195 : vector<16x1xf32> to vector<16x32xf32>
    %197 = arith.mulf %192, %196 : vector<16x32xf32>
    %c0_73 = arith.constant 0 : index
    %c0_74 = arith.constant 0 : index
    %c0_75 = arith.constant 0 : index
    %198 = vector.load %arg8[%c0_73, %c0_74, %c0_75] : memref<1x1x32xf32, #tpu.memory_space<vmem>>, vector<1x1x32xf32>
    %199 = vector.shape_cast %198 : vector<1x1x32xf32> to vector<1x32xf32>
    %200 = vector.broadcast %199 : vector<1x32xf32> to vector<16x32xf32>
    %201 = arith.mulf %197, %200 : vector<16x32xf32>
    %c0_76 = arith.constant 0 : index
    %c0_77 = arith.constant 0 : index
    %c0_78 = arith.constant 0 : index
    %202 = vector.load %arg9[%c0_76, %c0_77, %c0_78] : memref<1x1x32xf32, #tpu.memory_space<vmem>>, vector<1x1x32xf32>
    %203 = vector.shape_cast %202 : vector<1x1x32xf32> to vector<1x32xf32>
    %204 = vector.broadcast %203 : vector<1x32xf32> to vector<16x32xf32>
    %205 = arith.addf %201, %204 : vector<16x32xf32>
    %206 = arith.truncf %205 : vector<16x32xf32> to vector<16x32xbf16>
    %c0_79 = arith.constant 0 : index
    %c0_80 = arith.constant 0 : index
    %c0_81 = arith.constant 0 : index
    %207 = vector.load %arg10[%c0_79, %c0_80, %c0_81] : memref<1x32x2048xbf16, #tpu.memory_space<vmem>>, vector<1x32x2048xbf16>
    %208 = vector.shape_cast %207 : vector<1x32x2048xbf16> to vector<32x2048xbf16>
    %cst_82 = arith.constant dense<0.000000e+00> : vector<16x2048xf32>
    %209 = tpu.matmul %206, %208, %cst_82 {dimension_numbers = #tpu.dot_dimension_numbers<[1], [0], [0], [1], [0, 0, 1, 1], [], []>} : vector<16x32xbf16>, vector<32x2048xbf16>, vector<16x2048xf32> -> vector<16x2048xf32>
    %c0_83 = arith.constant 0 : index
    %c0_84 = arith.constant 0 : index
    %c0_85 = arith.constant 0 : index
    %210 = vector.load %arg11[%c0_83, %c0_84, %c0_85] : memref<1x1x2048xf32, #tpu.memory_space<vmem>>, vector<1x1x2048xf32>
    %211 = vector.shape_cast %210 : vector<1x1x2048xf32> to vector<1x2048xf32>
    %212 = vector.broadcast %211 : vector<1x2048xf32> to vector<16x2048xf32>
    %213 = arith.addf %209, %212 : vector<16x2048xf32>
    %cst_86 = arith.constant 5.000000e-01 : f32
    %214 = vector.broadcast %cst_86 : f32 to vector<16x2048xf32>
    %215 = arith.mulf %214, %213 : vector<16x2048xf32>
    %cst_87 = arith.constant 0.707106769 : f32
    %216 = vector.broadcast %cst_87 : f32 to vector<16x2048xf32>
    %217 = arith.mulf %213, %216 : vector<16x2048xf32>
    %218 = math.erf %217 : vector<16x2048xf32>
    %cst_88 = arith.constant 1.000000e+00 : f32
    %219 = vector.broadcast %cst_88 : f32 to vector<16x2048xf32>
    %220 = arith.addf %219, %218 : vector<16x2048xf32>
    %221 = arith.mulf %215, %220 : vector<16x2048xf32>
    %222 = arith.truncf %221 : vector<16x2048xf32> to vector<16x2048xbf16>
    %c0_89 = arith.constant 0 : index
    %c0_90 = arith.constant 0 : index
    %c0_91 = arith.constant 0 : index
    %223 = vector.load %arg12[%c0_89, %c0_90, %c0_91] : memref<1x32x2048xbf16, #tpu.memory_space<vmem>>, vector<1x32x2048xbf16>
    %224 = vector.shape_cast %223 : vector<1x32x2048xbf16> to vector<32x2048xbf16>
    %cst_92 = arith.constant dense<0.000000e+00> : vector<16x32xf32>
    %225 = tpu.matmul %222, %224, %cst_92 {dimension_numbers = #tpu.dot_dimension_numbers<[1], [1], [0], [0], [0, 0, 1, 0], [], []>} : vector<16x2048xbf16>, vector<32x2048xbf16>, vector<16x32xf32> -> vector<16x32xf32>
    %c0_93 = arith.constant 0 : index
    %c0_94 = arith.constant 0 : index
    %c0_95 = arith.constant 0 : index
    %226 = vector.load %arg13[%c0_93, %c0_94, %c0_95] : memref<1x1x32xf32, #tpu.memory_space<vmem>>, vector<1x1x32xf32>
    %227 = vector.shape_cast %226 : vector<1x1x32xf32> to vector<1x32xf32>
    %228 = vector.broadcast %227 : vector<1x32xf32> to vector<16x32xf32>
    %229 = arith.addf %225, %228 : vector<16x32xf32>
    %230 = arith.addf %205, %229 : vector<16x32xf32>
    %cst_96 = arith.constant dense<0.000000e+00> : vector<16xf32>
    %231 = vector.multi_reduction <add>, %230, %cst_96 [1] : vector<16x32xf32> to vector<16xf32>
    %232 = vector.shape_cast %231 : vector<16xf32> to vector<16x1xf32>
    %cst_97 = arith.constant 3.200000e+01 : f32
    %233 = vector.broadcast %cst_97 : f32 to vector<16x1xf32>
    %234 = arith.divf %232, %233 : vector<16x1xf32>
    %235 = vector.broadcast %234 : vector<16x1xf32> to vector<16x32xf32>
    %236 = arith.subf %230, %235 : vector<16x32xf32>
    %237 = arith.mulf %236, %236 : vector<16x32xf32>
    %cst_98 = arith.constant dense<0.000000e+00> : vector<16xf32>
    %238 = vector.multi_reduction <add>, %237, %cst_98 [1] : vector<16x32xf32> to vector<16xf32>
    %239 = vector.shape_cast %238 : vector<16xf32> to vector<16x1xf32>
    %cst_99 = arith.constant 3.200000e+01 : f32
    %240 = vector.broadcast %cst_99 : f32 to vector<16x1xf32>
    %241 = arith.divf %239, %240 : vector<16x1xf32>
    %242 = vector.broadcast %234 : vector<16x1xf32> to vector<16x32xf32>
    %243 = arith.subf %230, %242 : vector<16x32xf32>
    %cst_100 = arith.constant 9.99999974E-6 : f32
    %244 = vector.broadcast %cst_100 : f32 to vector<16x1xf32>
    %245 = arith.addf %241, %244 : vector<16x1xf32>
    %246 = math.rsqrt %245 : vector<16x1xf32>
    %247 = vector.broadcast %246 : vector<16x1xf32> to vector<16x32xf32>
    %248 = arith.mulf %243, %247 : vector<16x32xf32>
    %c0_101 = arith.constant 0 : index
    %c0_102 = arith.constant 0 : index
    %c0_103 = arith.constant 0 : index
    %249 = vector.load %arg14[%c0_101, %c0_102, %c0_103] : memref<1x1x32xf32, #tpu.memory_space<vmem>>, vector<1x1x32xf32>
    %250 = vector.shape_cast %249 : vector<1x1x32xf32> to vector<1x32xf32>
    %251 = vector.broadcast %250 : vector<1x32xf32> to vector<16x32xf32>
    %252 = arith.mulf %248, %251 : vector<16x32xf32>
    %c0_104 = arith.constant 0 : index
    %c0_105 = arith.constant 0 : index
    %c0_106 = arith.constant 0 : index
    %253 = vector.load %arg15[%c0_104, %c0_105, %c0_106] : memref<1x1x32xf32, #tpu.memory_space<vmem>>, vector<1x1x32xf32>
    %254 = vector.shape_cast %253 : vector<1x1x32xf32> to vector<1x32xf32>
    %255 = vector.broadcast %254 : vector<1x32xf32> to vector<16x32xf32>
    %256 = arith.addf %252, %255 : vector<16x32xf32>
    %c0_107 = arith.constant 0 : index
    %c0_108 = arith.constant 0 : index
    %257 = vector.load %arg17[%c0_107, %c0_108] : memref<16x32xf32, #tpu.memory_space<vmem>>, vector<16x32xf32>
    tpu.vector_store %arg17[%c0_107, %c0_108], %256 {strides = array<i32>} : memref<16x32xf32, #tpu.memory_space<vmem>>, vector<16x32xf32>,
    %c3_i32 = arith.constant 3 : i32
    %258 = arith.cmpi eq, %arg0, %c3_i32 : i32
    %259 = arith.extui %258 : i1 to i32
    %c0_i32_109 = arith.constant 0 : i32
    %260 = arith.cmpi ne, %259, %c0_i32_109 : i32
    scf.if %260 {
      %c0_110 = arith.constant 0 : index
      %c0_111 = arith.constant 0 : index
      %261 = vector.load %arg16[%c0_110, %c0_111] : memref<16x32xf32, #tpu.memory_space<vmem>>, vector<16x32xf32>
      tpu.vector_store %arg16[%c0_110, %c0_111], %256 {strides = array<i32>} : memref<16x32xf32, #tpu.memory_space<vmem>>, vector<16x32xf32>,
    } else {
    }
    return
  }
  func.func @transform_0(%arg0: i32) -> (i32, i32) {
    %c0_i32 = arith.constant 0 : i32
    %c0_i32_0 = arith.constant 0 : i32
    %c0_i32_1 = arith.constant 0 : i32
    return %c0_i32, %c0_i32_0 : i32, i32
  }
  func.func @transform_1(%arg0: i32) -> (i32, i32, i32) {
    %c0_i32 = arith.constant 0 : i32
    %c0_i32_0 = arith.constant 0 : i32
    %c0_i32_1 = arith.constant 0 : i32
    %c0_i32_2 = arith.constant 0 : i32
    return %c0_i32, %c0_i32_0, %c0_i32_1 : i32, i32, i32
  }
  func.func @transform_2(%arg0: i32) -> (i32, i32) {
    %c0_i32 = arith.constant 0 : i32
    %c0_i32_0 = arith.constant 0 : i32
    %c0_i32_1 = arith.constant 0 : i32
    return %c0_i32, %c0_i32_0 : i32, i32
  }
  func.func @transform_3(%arg0: i32) -> (i32, i32, i32) {
    %c0_i32 = arith.constant 0 : i32
    %c0_i32_0 = arith.constant 0 : i32
    %c0_i32_1 = arith.constant 0 : i32
    return %arg0, %c0_i32, %c0_i32_0 : i32, i32, i32
  }
  func.func @transform_4(%arg0: i32) -> (i32, i32, i32) {
    %c0_i32 = arith.constant 0 : i32
    %c0_i32_0 = arith.constant 0 : i32
    %c0_i32_1 = arith.constant 0 : i32
    return %arg0, %c0_i32, %c0_i32_0 : i32, i32, i32
  }
  func.func @transform_5(%arg0: i32) -> (i32, i32, i32) {
    %c0_i32 = arith.constant 0 : i32
    %c0_i32_0 = arith.constant 0 : i32
    %c0_i32_1 = arith.constant 0 : i32
    return %arg0, %c0_i32, %c0_i32_0 : i32, i32, i32
  }
  func.func @transform_6(%arg0: i32) -> (i32, i32, i32) {
    %c0_i32 = arith.constant 0 : i32
    %c0_i32_0 = arith.constant 0 : i32
    %c0_i32_1 = arith.constant 0 : i32
    return %arg0, %c0_i32, %c0_i32_0 : i32, i32, i32
  }
  func.func @transform_7(%arg0: i32) -> (i32, i32, i32) {
    %c0_i32 = arith.constant 0 : i32
    %c0_i32_0 = arith.constant 0 : i32
    %c0_i32_1 = arith.constant 0 : i32
    return %arg0, %c0_i32, %c0_i32_0 : i32, i32, i32
  }
  func.func @transform_8(%arg0: i32) -> (i32, i32, i32) {
    %c0_i32 = arith.constant 0 : i32
    %c0_i32_0 = arith.constant 0 : i32
    %c0_i32_1 = arith.constant 0 : i32
    return %arg0, %c0_i32, %c0_i32_0 : i32, i32, i32
  }
  func.func @transform_9(%arg0: i32) -> (i32, i32, i32) {
    %c0_i32 = arith.constant 0 : i32
    %c0_i32_0 = arith.constant 0 : i32
    %c0_i32_1 = arith.constant 0 : i32
    return %arg0, %c0_i32, %c0_i32_0 : i32, i32, i32
  }
  func.func @transform_10(%arg0: i32) -> (i32, i32, i32) {
    %c0_i32 = arith.constant 0 : i32
    %c0_i32_0 = arith.constant 0 : i32
    %c0_i32_1 = arith.constant 0 : i32
    return %arg0, %c0_i32, %c0_i32_0 : i32, i32, i32
  }
  func.func @transform_11(%arg0: i32) -> (i32, i32, i32) {
    %c0_i32 = arith.constant 0 : i32
    %c0_i32_0 = arith.constant 0 : i32
    %c0_i32_1 = arith.constant 0 : i32
    return %arg0, %c0_i32, %c0_i32_0 : i32, i32, i32
  }
  func.func @transform_12(%arg0: i32) -> (i32, i32, i32) {
    %c0_i32 = arith.constant 0 : i32
    %c0_i32_0 = arith.constant 0 : i32
    %c0_i32_1 = arith.constant 0 : i32
    return %arg0, %c0_i32, %c0_i32_0 : i32, i32, i32
  }
  func.func @transform_13(%arg0: i32) -> (i32, i32, i32) {
    %c0_i32 = arith.constant 0 : i32
    %c0_i32_0 = arith.constant 0 : i32
    %c0_i32_1 = arith.constant 0 : i32
    return %arg0, %c0_i32, %c0_i32_0 : i32, i32, i32
  }
  func.func @transform_14(%arg0: i32) -> (i32, i32, i32) {
    %c0_i32 = arith.constant 0 : i32
    %c0_i32_0 = arith.constant 0 : i32
    %c0_i32_1 = arith.constant 0 : i32
    return %arg0, %c0_i32, %c0_i32_0 : i32, i32, i32
  }
  func.func @transform_15(%arg0: i32) -> (i32, i32) {
    %c0_i32 = arith.constant 0 : i32
    %c0_i32_0 = arith.constant 0 : i32
    %c0_i32_1 = arith.constant 0 : i32
    return %c0_i32, %c0_i32_0 : i32, i32
  }
}

</mosaic_0001>

<llo_original>
// kernel: memo_transformer_forward.1
$region0: #{memo_transformer_forward.1}
  #allocation0 [shape = 'u32[]', space=smem, size = 0x4, offset = 0x4, fixed_abs, tag = 'smem constant byte address 0x4 - core index']
  #allocation1 [shape = 'u32[144,128]{1,0:T(1,128)}', space=vmem, size = 0x12000, scoped, tag = 'internal scratch']
  #allocation2 [shape = 'f32[16,32]{1,0:T(8,128)}', space=vmem, size = 0x2000, scoped, tag = 'scratch operand']
  %s0 = inlined_call_operand.vmem [shape: f32[16,32], index: 0, kind: input, shape index: {}]
  %s1 = inlined_call_operand.vmem [shape: f32[8,1,32], index: 1, kind: input, shape index: {}]
  %s2 = inlined_call_operand.vmem [shape: f32[16,16], index: 2, kind: input, shape index: {}]
  %s3 = inlined_call_operand.vmem [shape: bf16[4,32,96], index: 3, kind: input, shape index: {}]
  %s4 = inlined_call_operand.vmem [shape: f32[4,1,96], index: 4, kind: input, shape index: {}]
  %s5 = inlined_call_operand.hbm [shape: bf16[4,32,32], index: 5, kind: input, shape index: {}]
  %s6 = inlined_call_operand.vmem [shape: f32[4,1,32], index: 6, kind: input, shape index: {}]
  %s7 = inlined_call_operand.vmem [shape: f32[4,1,32], index: 7, kind: input, shape index: {}]
  %s8 = inlined_call_operand.vmem [shape: f32[4,1,32], index: 8, kind: input, shape index: {}]
  %s9 = inlined_call_operand.hbm [shape: bf16[4,32,2048], index: 9, kind: input, shape index: {}]
  %s10 = inlined_call_operand.hbm [shape: f32[4,1,2048], index: 10, kind: input, shape index: {}]
  %s11 = inlined_call_operand.hbm [shape: bf16[4,32,2048], index: 11, kind: input, shape index: {}]
  %s12 = inlined_call_operand.vmem [shape: f32[4,1,32], index: 12, kind: input, shape index: {}]
  %s13 = inlined_call_operand.vmem [shape: f32[4,1,32], index: 13, kind: input, shape index: {}]
  %s14 = inlined_call_operand.vmem [shape: f32[4,1,32], index: 14, kind: input, shape index: {}]
  %s15 = inlined_call_operand.vmem [shape: f32[16,32], index: 15, kind: output, shape index: {}]
  %s16 = sld [smem:[#allocation0]]
  $region117: #{memo_transformer_forward.1} parent=0
    _
  %s18 = ssub.s32 1, %s16
  %s19 = scalar_select 0, %s18, %s16
  $region1: #{memo_transformer_forward.1} parent=0
    #allocation3 [shape = 'u8[16384]{0}', space=vmem, size = 0x4000, scoped, tag = 'input window, operand 5']
    #allocation4 [shape = 's32[2]{0}', space=sflag, size = 0x8, scoped, tag = 'scoped memory for memo_transformer_forward.1']
    #allocation5 [shape = 'u8[262144]{0}', space=vmem, size = 0x40000, scoped, tag = 'input window, operand 9']
    #allocation6 [shape = 's32[2]{0}', space=sflag, size = 0x8, scoped, tag = 'scoped memory for memo_transformer_forward.1']
    #allocation7 [shape = 'u8[16384]{0}', space=vmem, size = 0x4000, scoped, tag = 'input window, operand 10']
    #allocation8 [shape = 'u8[262144]{0}', space=vmem, size = 0x40000, scoped, tag = 'input window, operand 11']
    #allocation9 [shape = 's32[2]{0}', space=sflag, size = 0x8, scoped, tag = 'scoped memory for memo_transformer_forward.1']
    %20 = vsyncpa [#allocation4], 0
    %s21 = scalar_lea.sflag [#allocation4], 1
    %22 = vsyncpa %s21, 0
    %23 = vsyncpa [#allocation6], 0
    %s24 = scalar_lea.sflag [#allocation6], 1
    %25 = vsyncpa %s24, 0
    %26 = vsyncpa [#allocation9], 0
    %s27 = scalar_lea.sflag [#allocation9], 1
    %28 = vsyncpa %s27, 0
    loop: start=0, step=1, limit=6
    $region2: #{memo_transformer_forward.1} parent=1 // loop_pre_header
      _
    $region3: #{memo_transformer_forward.1} parent=1 // loop_header
      %s30 = sphi 0, %s34
      %p31 = scmp.ge.s32.totalorder %s30, 6
      %s38 = sphi 0, %s38
      %s40 = sphi 0, %s38
      %s41 = sphi 0, %s40
      %s55 = sphi 0, %s41
      %s59 = sphi 0, %s59
      %s61 = sphi 0, %s59
      %s62 = sphi 0, %s61
      %s76 = sphi 0, %s62
      %s80 = sphi 0, %s80
      %s82 = sphi 0, %s80
      %s83 = sphi 0, %s82
      %s97 = sphi 0, %s83
      %s103 = sphi 0, %s105
      %s106 = sphi 0, %s103
      %s107 = sphi 0, %s106
      %s123 = sphi 0, %s107
      %s129 = sphi 0, %s131
      %s132 = sphi 0, %s129
      %s133 = sphi 0, %s132
      %s149 = sphi 0, %s133
      %s155 = sphi 0, %s157
      %s158 = sphi 0, %s155
      %s159 = sphi 0, %s158
      %s175 = sphi 0, %s159
      %s181 = sphi 0, %s183
      %s184 = sphi 0, %s181
      %s185 = sphi 0, %s184
      %s201 = sphi 0, %s185
      %s207 = sphi 0, %s209
      %s210 = sphi 0, %s207
      %s211 = sphi 0, %s210
      %s227 = sphi 0, %s211
      %s233 = sphi 0, %s235
      %s236 = sphi 0, %s233
      %s237 = sphi 0, %s236
      %s253 = sphi 0, %s237
      %s259 = sphi 0, %s261
      %s262 = sphi 0, %s259
      %s263 = sphi 0, %s262
      %s279 = sphi 0, %s263
      %s285 = sphi 0, %s287
      %s288 = sphi 0, %s285
      %s289 = sphi 0, %s288
      %s305 = sphi 0, %s289
      %s311 = sphi 0, %s313
      %s314 = sphi 0, %s311
      %s315 = sphi 0, %s314
      %s331 = sphi 0, %s315
      %s337 = sphi 0, %s339
      %s340 = sphi 0, %s337
      %s341 = sphi 0, %s340
      %s357 = sphi 0, %s341
      %s363 = sphi 0, %s365
      %s366 = sphi 0, %s363
      %s367 = sphi 0, %s366
      %s383 = sphi 0, %s367
      %s389 = sphi 0, %s391
      %s392 = sphi 0, %s389
      %s393 = sphi 0, %s392
      %s409 = sphi 0, %s393
      %s413 = sphi 0, %s413
      %s415 = sphi 0, %s413
      %s416 = sphi 0, %s415
      %s430 = sphi 0, %s416
    $region4: #{memo_transformer_forward.1} parent=1 // loop_header_branch
      %33 = sbr.rel (%p31) target = $region8
    $region5: #{memo_transformer_forward.1} parent=1 // loop_body
      %s35 = ssub.s32 %s30, 1
      %s36 = ssub.s32 %s30, 2
      %s37 = sadd.s32 %s30, 1
      %s39 = sadd.s32 %s38, 1
      %p42 = scmp.eq.s32.totalorder %s30, 3
      %p43 = scmp.ne.s32.totalorder %s38, %s40
      %p44 = scmp.eq.s32.totalorder %s30, 0
      %p45 = por %p43, %p44
      %p46 = scmp.ne.s32.totalorder %s38, %s40
      %p47 = scmp.eq.s32.totalorder %s35, 3
      %p48 = por %p46, %p47
      %p49 = scmp.ne.s32.totalorder %s40, %s41
      %p50 = scmp.eq.s32.totalorder %s35, 0
      %p51 = por %p49, %p50
      %p52 = scmp.ne.s32.totalorder %s40, %s41
      %p53 = scmp.eq.s32.totalorder %s36, 3
      %p54 = por %p52, %p53
      %p56 = scmp.ne.s32.totalorder %s41, %s55
      %p57 = scmp.eq.s32.totalorder %s36, 0
      %p58 = por %p56, %p57
      %s60 = sadd.s32 %s59, 1
      %p63 = scmp.eq.s32.totalorder %s30, 3
      %p64 = scmp.ne.s32.totalorder %s59, %s61
      %p65 = scmp.eq.s32.totalorder %s30, 0
      %p66 = por %p64, %p65
      %p67 = scmp.ne.s32.totalorder %s59, %s61
      %p68 = scmp.eq.s32.totalorder %s35, 3
      %p69 = por %p67, %p68
      %p70 = scmp.ne.s32.totalorder %s61, %s62
      %p71 = scmp.eq.s32.totalorder %s35, 0
      %p72 = por %p70, %p71
      %p73 = scmp.ne.s32.totalorder %s61, %s62
      %p74 = scmp.eq.s32.totalorder %s36, 3
      %p75 = por %p73, %p74
      %p77 = scmp.ne.s32.totalorder %s62, %s76
      %p78 = scmp.eq.s32.totalorder %s36, 0
      %p79 = por %p77, %p78
      %s81 = sadd.s32 %s80, 1
      %p84 = scmp.eq.s32.totalorder %s30, 3
      %p85 = scmp.ne.s32.totalorder %s80, %s82
      %p86 = scmp.eq.s32.totalorder %s30, 0
      %p87 = por %p85, %p86
      %p88 = scmp.ne.s32.totalorder %s80, %s82
      %p89 = scmp.eq.s32.totalorder %s35, 3
      %p90 = por %p88, %p89
      %p91 = scmp.ne.s32.totalorder %s82, %s83
      %p92 = scmp.eq.s32.totalorder %s35, 0
      %p93 = por %p91, %p92
      %p94 = scmp.ne.s32.totalorder %s82, %s83
      %p95 = scmp.eq.s32.totalorder %s36, 3
      %p96 = por %p94, %p95
      %p98 = scmp.ne.s32.totalorder %s83, %s97
      %p99 = scmp.eq.s32.totalorder %s36, 0
      %p100 = por %p98, %p99
      %s101 = ssub.s32 %s30, %s37
      %p102 = scmp.eq.s32.totalorder %s101, 0
      %s104 = sadd.s32 %s103, 1
      %s105 = scalar_select %p102, %s103, %s104
      %p108 = pneg %p102
      %p109 = scmp.eq.s32.totalorder %s30, 3
      %p110 = por %p108, %p109
      %p111 = scmp.ne.s32.totalorder %s103, %s106
      %p112 = scmp.eq.s32.totalorder %s30, 0
      %p113 = por %p111, %p112
      %p114 = scmp.ne.s32.totalorder %s103, %s106
      %p115 = scmp.eq.s32.totalorder %s35, 3
      %p116 = por %p114, %p115
      %p117 = scmp.ne.s32.totalorder %s106, %s107
      %p118 = scmp.eq.s32.totalorder %s35, 0
      %p119 = por %p117, %p118
      %p120 = scmp.ne.s32.totalorder %s106, %s107
      %p121 = scmp.eq.s32.totalorder %s36, 3
      %p122 = por %p120, %p121
      %p124 = scmp.ne.s32.totalorder %s107, %s123
      %p125 = scmp.eq.s32.totalorder %s36, 0
      %p126 = por %p124, %p125
      %s127 = ssub.s32 %s30, %s37
      %p128 = scmp.eq.s32.totalorder %s127, 0
      %s130 = sadd.s32 %s129, 1
      %s131 = scalar_select %p128, %s129, %s130
      %p134 = pneg %p128
      %p135 = scmp.eq.s32.totalorder %s30, 3
      %p136 = por %p134, %p135
      %p137 = scmp.ne.s32.totalorder %s129, %s132
      %p138 = scmp.eq.s32.totalorder %s30, 0
      %p139 = por %p137, %p138
      %p140 = scmp.ne.s32.totalorder %s129, %s132
      %p141 = scmp.eq.s32.totalorder %s35, 3
      %p142 = por %p140, %p141
      %p143 = scmp.ne.s32.totalorder %s132, %s133
      %p144 = scmp.eq.s32.totalorder %s35, 0
      %p145 = por %p143, %p144
      %p146 = scmp.ne.s32.totalorder %s132, %s133
      %p147 = scmp.eq.s32.totalorder %s36, 3
      %p148 = por %p146, %p147
      %p150 = scmp.ne.s32.totalorder %s133, %s149
      %p151 = scmp.eq.s32.totalorder %s36, 0
      %p152 = por %p150, %p151
      %s153 = ssub.s32 %s30, %s37
      %p154 = scmp.eq.s32.totalorder %s153, 0
      %s156 = sadd.s32 %s155, 1
      %s157 = scalar_select %p154, %s155, %s156
      %p160 = pneg %p154
      %p161 = scmp.eq.s32.totalorder %s30, 3
      %p162 = por %p160, %p161
      %p163 = scmp.ne.s32.totalorder %s155, %s158
      %p164 = scmp.eq.s32.totalorder %s30, 0
      %p165 = por %p163, %p164
      %p166 = scmp.ne.s32.totalorder %s155, %s158
      %p167 = scmp.eq.s32.totalorder %s35, 3
      %p168 = por %p166, %p167
      %p169 = scmp.ne.s32.totalorder %s158, %s159
      %p170 = scmp.eq.s32.totalorder %s35, 0
      %p171 = por %p169, %p170
      %p172 = scmp.ne.s32.totalorder %s158, %s159
      %p173 = scmp.eq.s32.totalorder %s36, 3
      %p174 = por %p172, %p173
      %p176 = scmp.ne.s32.totalorder %s159, %s175
      %p177 = scmp.eq.s32.totalorder %s36, 0
      %p178 = por %p176, %p177
      %s179 = ssub.s32 %s30, %s37
      %p180 = scmp.eq.s32.totalorder %s179, 0
      %s182 = sadd.s32 %s181, 1
      %s183 = scalar_select %p180, %s181, %s182
      %p186 = pneg %p180
      %p187 = scmp.eq.s32.totalorder %s30, 3
      %p188 = por %p186, %p187
      %p189 = scmp.ne.s32.totalorder %s181, %s184
      %p190 = scmp.eq.s32.totalorder %s30, 0
      %p191 = por %p189, %p190
      %p192 = scmp.ne.s32.totalorder %s181, %s184
      %p193 = scmp.eq.s32.totalorder %s35, 3
      %p194 = por %p192, %p193
      %p195 = scmp.ne.s32.totalorder %s184, %s185
      %p196 = scmp.eq.s32.totalorder %s35, 0
      %p197 = por %p195, %p196
      %p198 = scmp.ne.s32.totalorder %s184, %s185
      %p199 = scmp.eq.s32.totalorder %s36, 3
      %p200 = por %p198, %p199
      %p202 = scmp.ne.s32.totalorder %s185, %s201
      %p203 = scmp.eq.s32.totalorder %s36, 0
      %p204 = por %p202, %p203
      %s205 = ssub.s32 %s30, %s37
      %p206 = scmp.eq.s32.totalorder %s205, 0
      %s208 = sadd.s32 %s207, 1
      %s209 = scalar_select %p206, %s207, %s208
      %p212 = pneg %p206
      %p213 = scmp.eq.s32.totalorder %s30, 3
      %p214 = por %p212, %p213
      %p215 = scmp.ne.s32.totalorder %s207, %s210
      %p216 = scmp.eq.s32.totalorder %s30, 0
      %p217 = por %p215, %p216
      %p218 = scmp.ne.s32.totalorder %s207, %s210
      %p219 = scmp.eq.s32.totalorder %s35, 3
      %p220 = por %p218, %p219
      %p221 = scmp.ne.s32.totalorder %s210, %s211
      %p222 = scmp.eq.s32.totalorder %s35, 0
      %p223 = por %p221, %p222
      %p224 = scmp.ne.s32.totalorder %s210, %s211
      %p225 = scmp.eq.s32.totalorder %s36, 3
      %p226 = por %p224, %p225
      %p228 = scmp.ne.s32.totalorder %s211, %s227
      %p229 = scmp.eq.s32.totalorder %s36, 0
      %p230 = por %p228, %p229
      %s231 = ssub.s32 %s30, %s37
      %p232 = scmp.eq.s32.totalorder %s231, 0
      %s234 = sadd.s32 %s233, 1
      %s235 = scalar_select %p232, %s233, %s234
      %p238 = pneg %p232
      %p239 = scmp.eq.s32.totalorder %s30, 3
      %p240 = por %p238, %p239
      %p241 = scmp.ne.s32.totalorder %s233, %s236
      %p242 = scmp.eq.s32.totalorder %s30, 0
      %p243 = por %p241, %p242
      %p244 = scmp.ne.s32.totalorder %s233, %s236
      %p245 = scmp.eq.s32.totalorder %s35, 3
      %p246 = por %p244, %p245
      %p247 = scmp.ne.s32.totalorder %s236, %s237
      %p248 = scmp.eq.s32.totalorder %s35, 0
      %p249 = por %p247, %p248
      %p250 = scmp.ne.s32.totalorder %s236, %s237
      %p251 = scmp.eq.s32.totalorder %s36, 3
      %p252 = por %p250, %p251
      %p254 = scmp.ne.s32.totalorder %s237, %s253
      %p255 = scmp.eq.s32.totalorder %s36, 0
      %p256 = por %p254, %p255
      %s257 = ssub.s32 %s30, %s37
      %p258 = scmp.eq.s32.totalorder %s257, 0
      %s260 = sadd.s32 %s259, 1
      %s261 = scalar_select %p258, %s259, %s260
      %p264 = pneg %p258
      %p265 = scmp.eq.s32.totalorder %s30, 3
      %p266 = por %p264, %p265
      %p267 = scmp.ne.s32.totalorder %s259, %s262
      %p268 = scmp.eq.s32.totalorder %s30, 0
      %p269 = por %p267, %p268
      %p270 = scmp.ne.s32.totalorder %s259, %s262
      %p271 = scmp.eq.s32.totalorder %s35, 3
      %p272 = por %p270, %p271
      %p273 = scmp.ne.s32.totalorder %s262, %s263
      %p274 = scmp.eq.s32.totalorder %s35, 0
      %p275 = por %p273, %p274
      %p276 = scmp.ne.s32.totalorder %s262, %s263
      %p277 = scmp.eq.s32.totalorder %s36, 3
      %p278 = por %p276, %p277
      %p280 = scmp.ne.s32.totalorder %s263, %s279
      %p281 = scmp.eq.s32.totalorder %s36, 0
      %p282 = por %p280, %p281
      %s283 = ssub.s32 %s30, %s37
      %p284 = scmp.eq.s32.totalorder %s283, 0
      %s286 = sadd.s32 %s285, 1
      %s287 = scalar_select %p284, %s285, %s286
      %p290 = pneg %p284
      %p291 = scmp.eq.s32.totalorder %s30, 3
      %p292 = por %p290, %p291
      %p293 = scmp.ne.s32.totalorder %s285, %s288
      %p294 = scmp.eq.s32.totalorder %s30, 0
      %p295 = por %p293, %p294
      %p296 = scmp.ne.s32.totalorder %s285, %s288
      %p297 = scmp.eq.s32.totalorder %s35, 3
      %p298 = por %p296, %p297
      %p299 = scmp.ne.s32.totalorder %s288, %s289
      %p300 = scmp.eq.s32.totalorder %s35, 0
      %p301 = por %p299, %p300
      %p302 = scmp.ne.s32.totalorder %s288, %s289
      %p303 = scmp.eq.s32.totalorder %s36, 3
      %p304 = por %p302, %p303
      %p306 = scmp.ne.s32.totalorder %s289, %s305
      %p307 = scmp.eq.s32.totalorder %s36, 0
      %p308 = por %p306, %p307
      %s309 = ssub.s32 %s30, %s37
      %p310 = scmp.eq.s32.totalorder %s309, 0
      %s312 = sadd.s32 %s311, 1
      %s313 = scalar_select %p310, %s311, %s312
      %p316 = pneg %p310
      %p317 = scmp.eq.s32.totalorder %s30, 3
      %p318 = por %p316, %p317
      %p319 = scmp.ne.s32.totalorder %s311, %s314
      %p320 = scmp.eq.s32.totalorder %s30, 0
      %p321 = por %p319, %p320
      %p322 = scmp.ne.s32.totalorder %s311, %s314
      %p323 = scmp.eq.s32.totalorder %s35, 3
      %p324 = por %p322, %p323
      %p325 = scmp.ne.s32.totalorder %s314, %s315
      %p326 = scmp.eq.s32.totalorder %s35, 0
      %p327 = por %p325, %p326
      %p328 = scmp.ne.s32.totalorder %s314, %s315
      %p329 = scmp.eq.s32.totalorder %s36, 3
      %p330 = por %p328, %p329
      %p332 = scmp.ne.s32.totalorder %s315, %s331
      %p333 = scmp.eq.s32.totalorder %s36, 0
      %p334 = por %p332, %p333
      %s335 = ssub.s32 %s30, %s37
      %p336 = scmp.eq.s32.totalorder %s335, 0
      %s338 = sadd.s32 %s337, 1
      %s339 = scalar_select %p336, %s337, %s338
      %p342 = pneg %p336
      %p343 = scmp.eq.s32.totalorder %s30, 3
      %p344 = por %p342, %p343
      %p345 = scmp.ne.s32.totalorder %s337, %s340
      %p346 = scmp.eq.s32.totalorder %s30, 0
      %p347 = por %p345, %p346
      %p348 = scmp.ne.s32.totalorder %s337, %s340
      %p349 = scmp.eq.s32.totalorder %s35, 3
      %p350 = por %p348, %p349
      %p351 = scmp.ne.s32.totalorder %s340, %s341
      %p352 = scmp.eq.s32.totalorder %s35, 0
      %p353 = por %p351, %p352
      %p354 = scmp.ne.s32.totalorder %s340, %s341
      %p355 = scmp.eq.s32.totalorder %s36, 3
      %p356 = por %p354, %p355
      %p358 = scmp.ne.s32.totalorder %s341, %s357
      %p359 = scmp.eq.s32.totalorder %s36, 0
      %p360 = por %p358, %p359
      %s361 = ssub.s32 %s30, %s37
      %p362 = scmp.eq.s32.totalorder %s361, 0
      %s364 = sadd.s32 %s363, 1
      %s365 = scalar_select %p362, %s363, %s364
      %p368 = pneg %p362
      %p369 = scmp.eq.s32.totalorder %s30, 3
      %p370 = por %p368, %p369
      %p371 = scmp.ne.s32.totalorder %s363, %s366
      %p372 = scmp.eq.s32.totalorder %s30, 0
      %p373 = por %p371, %p372
      %p374 = scmp.ne.s32.totalorder %s363, %s366
      %p375 = scmp.eq.s32.totalorder %s35, 3
      %p376 = por %p374, %p375
      %p377 = scmp.ne.s32.totalorder %s366, %s367
      %p378 = scmp.eq.s32.totalorder %s35, 0
      %p379 = por %p377, %p378
      %p380 = scmp.ne.s32.totalorder %s366, %s367
      %p381 = scmp.eq.s32.totalorder %s36, 3
      %p382 = por %p380, %p381
      %p384 = scmp.ne.s32.totalorder %s367, %s383
      %p385 = scmp.eq.s32.totalorder %s36, 0
      %p386 = por %p384, %p385
      %s387 = ssub.s32 %s30, %s37
      %p388 = scmp.eq.s32.totalorder %s387, 0
      %s390 = sadd.s32 %s389, 1
      %s391 = scalar_select %p388, %s389, %s390
      %p394 = pneg %p388
      %p395 = scmp.eq.s32.totalorder %s30, 3
      %p396 = por %p394, %p395
      %p397 = scmp.ne.s32.totalorder %s389, %s392
      %p398 = scmp.eq.s32.totalorder %s30, 0
      %p399 = por %p397, %p398
      %p400 = scmp.ne.s32.totalorder %s389, %s392
      %p401 = scmp.eq.s32.totalorder %s35, 3
      %p402 = por %p400, %p401
      %p403 = scmp.ne.s32.totalorder %s392, %s393
      %p404 = scmp.eq.s32.totalorder %s35, 0
      %p405 = por %p403, %p404
      %p406 = scmp.ne.s32.totalorder %s392, %s393
      %p407 = scmp.eq.s32.totalorder %s36, 3
      %p408 = por %p406, %p407
      %p410 = scmp.ne.s32.totalorder %s393, %s409
      %p411 = scmp.eq.s32.totalorder %s36, 0
      %p412 = por %p410, %p411
      %s414 = sadd.s32 %s413, 1
      %p417 = scmp.eq.s32.totalorder %s30, 3
      %p418 = scmp.ne.s32.totalorder %s413, %s415
      %p419 = scmp.eq.s32.totalorder %s30, 0
      %p420 = por %p418, %p419
      %p421 = scmp.ne.s32.totalorder %s413, %s415
      %p422 = scmp.eq.s32.totalorder %s35, 3
      %p423 = por %p421, %p422
      %p424 = scmp.ne.s32.totalorder %s415, %s416
      %p425 = scmp.eq.s32.totalorder %s35, 0
      %p426 = por %p424, %p425
      %p427 = scmp.ne.s32.totalorder %s415, %s416
      %p428 = scmp.eq.s32.totalorder %s36, 3
      %p429 = por %p427, %p428
      %p431 = scmp.ne.s32.totalorder %s416, %s430
      %p432 = scmp.eq.s32.totalorder %s36, 0
      %p433 = por %p431, %p432
      %p434 = scmp.le.s32.totalorder 1, %s30
      %p435 = scmp.lt.s32.totalorder %s30, 5
      %p436 = pnand %p434, %p435
      %p437 = pneg %p436
      // Predicated region
      $region9: #{memo_transformer_forward.1} parent=5 // pred_check
        _
      $region10: #{memo_transformer_forward.1} parent=5 // pred_check_branch
        %439 = sbr.rel (%p436) target = $region12
      $region11: #{memo_transformer_forward.1} parent=5 // pred_region
        %s440 = ssub.s32 %s30, 1
        // Predicated region
        $region13: #{memo_transformer_forward.1} parent=11 // pred_check
          %p441 = pneg %p51
        $region14: #{memo_transformer_forward.1} parent=11 // pred_check_branch
          %443 = sbr.rel (%p441) target = $region16
        $region15: #{memo_transformer_forward.1} parent=11 // pred_region
          _
        $region16: #{memo_transformer_forward.1} parent=11 // pred_fallthru
          _
        // Predicated region
        $region17: #{memo_transformer_forward.1} parent=11 // pred_check
          %p444 = pneg %p72
        $region18: #{memo_transformer_forward.1} parent=11 // pred_check_branch
          %446 = sbr.rel (%p444) target = $region20
        $region19: #{memo_transformer_forward.1} parent=11 // pred_region
          _
        $region20: #{memo_transformer_forward.1} parent=11 // pred_fallthru
          _
        // Predicated region
        $region21: #{memo_transformer_forward.1} parent=11 // pred_check
          %p447 = pneg %p93
        $region22: #{memo_transformer_forward.1} parent=11 // pred_check_branch
          %449 = sbr.rel (%p447) target = $region24
        $region23: #{memo_transformer_forward.1} parent=11 // pred_region
          _
        $region24: #{memo_transformer_forward.1} parent=11 // pred_fallthru
          _
      $region12: #{memo_transformer_forward.1} parent=5 // pred_fallthru
        _
      %p450 = scmp.lt.s32.totalorder %s30, 4
      // Predicated region
      $region25: #{memo_transformer_forward.1} parent=5 // pred_check
        %p451 = pneg %p450
      $region26: #{memo_transformer_forward.1} parent=5 // pred_check_branch
        %453 = sbr.rel (%p451) target = $region28
      $region27: #{memo_transformer_forward.1} parent=5 // pred_region
        // Predicated region
        $region29: #{memo_transformer_forward.1} parent=27 // pred_check
          %p454 = pneg %p113
        $region30: #{memo_transformer_forward.1} parent=27 // pred_check_branch
          %456 = sbr.rel (%p454) target = $region32
        $region31: #{memo_transformer_forward.1} parent=27 // pred_region
          %p457 = scmp.lt.s32.totalorder %s30, 3
          %s458 = scalar_select %p457, %s30, 3
          %s459 = smul.addr %s458, 4
          %s460 = smul.addr %s459, 4
          %s461 = scalar_lea.vmem %s3, %s460
        $region32: #{memo_transformer_forward.1} parent=27 // pred_fallthru
          _
        // Predicated region
        $region33: #{memo_transformer_forward.1} parent=27 // pred_check
          %p462 = pneg %p139
        $region34: #{memo_transformer_forward.1} parent=27 // pred_check_branch
          %464 = sbr.rel (%p462) target = $region36
        $region35: #{memo_transformer_forward.1} parent=27 // pred_region
          %p465 = scmp.lt.s32.totalorder %s30, 3
          %s466 = scalar_select %p465, %s30, 3
          %s467 = scalar_lea.vmem %s4, %s466
        $region36: #{memo_transformer_forward.1} parent=27 // pred_fallthru
          _
        // Predicated region
        $region37: #{memo_transformer_forward.1} parent=27 // pred_check
          %p468 = pneg %p165
        $region38: #{memo_transformer_forward.1} parent=27 // pred_check_branch
          %470 = sbr.rel (%p468) target = $region40
        $region39: #{memo_transformer_forward.1} parent=27 // pred_region
          %s471 = sand.u32 %s155, 1
          %s472 = scalar_lea.sflag [#allocation4], %s471
          %s473 = sand.u32 %s155, 1
          %s474 = smul.addr %s473, 16
          %s475 = scalar_lea.vmem [#allocation3], %s474
          %s477 = ssub.s32 256, 256
          %478 = vsyncadd %s472, %s477
          %s479 = smul.addr %s30, 4
          %s480 = smul.addr %s479, 64
          %s481 = scalar_lea.hbm %s5, %s480
          %s482 = sshll.u32 %s475, 4
          %s483 = int_to_ptr.vmem [resolvable:$true] %s482
          %488 = dma.hbm_to_vmem [thread:$0]  %s481, 256, %s483, %s472, 64, 64, 4
        $region40: #{memo_transformer_forward.1} parent=27 // pred_fallthru
          _
        // Predicated region
        $region41: #{memo_transformer_forward.1} parent=27 // pred_check
          %p489 = pneg %p191
        $region42: #{memo_transformer_forward.1} parent=27 // pred_check_branch
          %491 = sbr.rel (%p489) target = $region44
        $region43: #{memo_transformer_forward.1} parent=27 // pred_region
          %p492 = scmp.lt.s32.totalorder %s30, 3
          %s493 = scalar_select %p492, %s30, 3
          %s494 = scalar_lea.vmem %s6, %s493
        $region44: #{memo_transformer_forward.1} parent=27 // pred_fallthru
          _
        // Predicated region
        $region45: #{memo_transformer_forward.1} parent=27 // pred_check
          %p495 = pneg %p217
        $region46: #{memo_transformer_forward.1} parent=27 // pred_check_branch
          %497 = sbr.rel (%p495) target = $region48
        $region47: #{memo_transformer_forward.1} parent=27 // pred_region
          %p498 = scmp.lt.s32.totalorder %s30, 3
          %s499 = scalar_select %p498, %s30, 3
          %s500 = scalar_lea.vmem %s7, %s499
        $region48: #{memo_transformer_forward.1} parent=27 // pred_fallthru
          _
        // Predicated region
        $region49: #{memo_transformer_forward.1} parent=27 // pred_check
          %p501 = pneg %p243
        $region50: #{memo_transformer_forward.1} parent=27 // pred_check_branch
          %503 = sbr.rel (%p501) target = $region52
        $region51: #{memo_transformer_forward.1} parent=27 // pred_region
          %p504 = scmp.lt.s32.totalorder %s30, 3
          %s505 = scalar_select %p504, %s30, 3
          %s506 = scalar_lea.vmem %s8, %s505
        $region52: #{memo_transformer_forward.1} parent=27 // pred_fallthru
          _
        // Predicated region
        $region53: #{memo_transformer_forward.1} parent=27 // pred_check
          %p507 = pneg %p269
        $region54: #{memo_transformer_forward.1} parent=27 // pred_check_branch
          %509 = sbr.rel (%p507) target = $region56
        $region55: #{memo_transformer_forward.1} parent=27 // pred_region
          %s510 = sand.u32 %s30, 1
          %s511 = scalar_lea.sflag [#allocation6], %s510
          %s512 = sand.u32 %s259, 1
          %s513 = smul.addr %s512, 256
          %s514 = scalar_lea.vmem [#allocation5], %s513
          %s516 = ssub.s32 4096, 4096
          %517 = vsyncadd %s511, %s516
          %s518 = smul.addr %s30, 64
          %s519 = smul.addr %s518, 64
          %s520 = scalar_lea.hbm %s9, %s519
          %s521 = sshll.u32 %s514, 4
          %s522 = int_to_ptr.vmem [resolvable:$true] %s521
          %527 = dma.hbm_to_vmem [thread:$0]  %s520, 4096, %s522, %s511, 1024, 1024, 64
        $region56: #{memo_transformer_forward.1} parent=27 // pred_fallthru
          _
        // Predicated region
        $region57: #{memo_transformer_forward.1} parent=27 // pred_check
          %p528 = pneg %p295
        $region58: #{memo_transformer_forward.1} parent=27 // pred_check_branch
          %530 = sbr.rel (%p528) target = $region60
        $region59: #{memo_transformer_forward.1} parent=27 // pred_region
          %s531 = sand.u32 %s30, 1
          %s532 = scalar_lea.sflag [#allocation6], %s531
          %s533 = sand.u32 %s285, 1
          %s534 = smul.addr %s533, 16
          %s535 = scalar_lea.vmem [#allocation7], %s534
          %s537 = ssub.s32 256, 256
          %538 = vsyncadd %s532, %s537
          %s539 = smul.addr %s30, 16
          %s540 = smul.addr %s539, 16
          %s541 = scalar_lea.hbm %s10, %s540
          %s543 = sshll.u32 %s535, 4
          %s544 = int_to_ptr.vmem [resolvable:$true] %s543
          %546 = dma.hbm_to_vmem [thread:$0]  %s541, 256, %s544, %s532
        $region60: #{memo_transformer_forward.1} parent=27 // pred_fallthru
          _
        // Predicated region
        $region61: #{memo_transformer_forward.1} parent=27 // pred_check
          %p547 = pneg %p321
        $region62: #{memo_transformer_forward.1} parent=27 // pred_check_branch
          %549 = sbr.rel (%p547) target = $region64
        $region63: #{memo_transformer_forward.1} parent=27 // pred_region
          %s550 = sand.u32 %s311, 1
          %s551 = scalar_lea.sflag [#allocation9], %s550
          %s552 = sand.u32 %s311, 1
          %s553 = smul.addr %s552, 256
          %s554 = scalar_lea.vmem [#allocation8], %s553
          %s556 = ssub.s32 4096, 4096
          %557 = vsyncadd %s551, %s556
          %s558 = smul.addr %s30, 64
          %s559 = smul.addr %s558, 64
          %s560 = scalar_lea.hbm %s11, %s559
          %s561 = sshll.u32 %s554, 4
          %s562 = int_to_ptr.vmem [resolvable:$true] %s561
          %567 = dma.hbm_to_vmem [thread:$0]  %s560, 4096, %s562, %s551, 1024, 1024, 64
        $region64: #{memo_transformer_forward.1} parent=27 // pred_fallthru
          _
        // Predicated region
        $region65: #{memo_transformer_forward.1} parent=27 // pred_check
          %p568 = pneg %p347
        $region66: #{memo_transformer_forward.1} parent=27 // pred_check_branch
          %570 = sbr.rel (%p568) target = $region68
        $region67: #{memo_transformer_forward.1} parent=27 // pred_region
          %p571 = scmp.lt.s32.totalorder %s30, 3
          %s572 = scalar_select %p571, %s30, 3
          %s573 = scalar_lea.vmem %s12, %s572
        $region68: #{memo_transformer_forward.1} parent=27 // pred_fallthru
          _
        // Predicated region
        $region69: #{memo_transformer_forward.1} parent=27 // pred_check
          %p574 = pneg %p373
        $region70: #{memo_transformer_forward.1} parent=27 // pred_check_branch
          %576 = sbr.rel (%p574) target = $region72
        $region71: #{memo_transformer_forward.1} parent=27 // pred_region
          %p577 = scmp.lt.s32.totalorder %s30, 3
          %s578 = scalar_select %p577, %s30, 3
          %s579 = scalar_lea.vmem %s13, %s578
        $region72: #{memo_transformer_forward.1} parent=27 // pred_fallthru
          _
        // Predicated region
        $region73: #{memo_transformer_forward.1} parent=27 // pred_check
          %p580 = pneg %p399
        $region74: #{memo_transformer_forward.1} parent=27 // pred_check_branch
          %582 = sbr.rel (%p580) target = $region76
        $region75: #{memo_transformer_forward.1} parent=27 // pred_region
          %p583 = scmp.lt.s32.totalorder %s30, 3
          %s584 = scalar_select %p583, %s30, 3
          %s585 = scalar_lea.vmem %s14, %s584
        $region76: #{memo_transformer_forward.1} parent=27 // pred_fallthru
          _
      $region28: #{memo_transformer_forward.1} parent=5 // pred_fallthru
        _
      %p586 = scmp.le.s32.totalorder 1, %s30
      %p587 = scmp.lt.s32.totalorder %s30, 5
      %p588 = pnand %p586, %p587
      %p589 = pneg %p588
      // Predicated region
      $region77: #{memo_transformer_forward.1} parent=5 // pred_check
        _
      $region78: #{memo_transformer_forward.1} parent=5 // pred_check_branch
        %591 = sbr.rel (%p588) target = $region80
      $region79: #{memo_transformer_forward.1} parent=5 // pred_region
        %s592 = ssub.s32 %s30, 1
        %s593 = sand.u32 %s158, 1
        %s594 = scalar_lea.sflag [#allocation4], %s593
        %s595 = sand.u32 %s158, 1
        %s596 = smul.addr %s595, 16
        %s597 = scalar_lea.vmem [#allocation3], %s596
        // Predicated region
        $region81: #{memo_transformer_forward.1} parent=79 // pred_check
          %p598 = pneg %p171
        $region82: #{memo_transformer_forward.1} parent=79 // pred_check_branch
          %600 = sbr.rel (%p598) target = $region84
        $region83: #{memo_transformer_forward.1} parent=79 // pred_region
          %601 = dma.done %s594, 256
        $region84: #{memo_transformer_forward.1} parent=79 // pred_fallthru
          _
        %s602 = sand.u32 %s35, 1
        %s603 = scalar_lea.sflag [#allocation6], %s602
        %s604 = sand.u32 %s262, 1
        %s605 = smul.addr %s604, 256
        %s606 = scalar_lea.vmem [#allocation5], %s605
        // Predicated region
        $region85: #{memo_transformer_forward.1} parent=79 // pred_check
          %p607 = pneg %p275
        $region86: #{memo_transformer_forward.1} parent=79 // pred_check_branch
          %609 = sbr.rel (%p607) target = $region88
        $region87: #{memo_transformer_forward.1} parent=79 // pred_region
          %610 = dma.done %s603, 4096
        $region88: #{memo_transformer_forward.1} parent=79 // pred_fallthru
          _
        %s611 = sand.u32 %s35, 1
        %s612 = scalar_lea.sflag [#allocation6], %s611
        %s613 = sand.u32 %s288, 1
        %s614 = smul.addr %s613, 16
        %s615 = scalar_lea.vmem [#allocation7], %s614
        // Predicated region
        $region89: #{memo_transformer_forward.1} parent=79 // pred_check
          %p616 = pneg %p301
        $region90: #{memo_transformer_forward.1} parent=79 // pred_check_branch
          %618 = sbr.rel (%p616) target = $region92
        $region91: #{memo_transformer_forward.1} parent=79 // pred_region
          %619 = dma.done %s612, 256
        $region92: #{memo_transformer_forward.1} parent=79 // pred_fallthru
          _
        %s620 = sand.u32 %s314, 1
        %s621 = scalar_lea.sflag [#allocation9], %s620
        %s622 = sand.u32 %s314, 1
        %s623 = smul.addr %s622, 256
        %s624 = scalar_lea.vmem [#allocation8], %s623
        // Predicated region
        $region93: #{memo_transformer_forward.1} parent=79 // pred_check
          %p625 = pneg %p327
        $region94: #{memo_transformer_forward.1} parent=79 // pred_check_branch
          %627 = sbr.rel (%p625) target = $region96
        $region95: #{memo_transformer_forward.1} parent=79 // pred_region
          %628 = dma.done %s621, 4096
        $region96: #{memo_transformer_forward.1} parent=79 // pred_fallthru
          _
        %p629 = pneg %p51
        %p630 = pneg %p48
        %p631 = pneg %p72
        %p632 = pneg %p69
        %p633 = pneg %p93
        %p634 = pneg %p90
        %p635 = scmp.lt.s32.totalorder %s35, 3
        %s636 = scalar_select %p635, %s35, 3
        %s637 = smul.addr %s636, 4
        %s638 = smul.addr %s637, 4
        %s639 = scalar_lea.vmem %s3, %s638
        %p640 = pneg %p119
        %p641 = pneg %p116
        %p642 = scmp.lt.s32.totalorder %s35, 3
        %s643 = scalar_select %p642, %s35, 3
        %s644 = scalar_lea.vmem %s4, %s643
        %p645 = pneg %p145
        %p646 = pneg %p142
        %s647 = sand.u32 %s158, 1
        %s648 = scalar_lea.sflag [#allocation4], %s647
        %s649 = sand.u32 %s158, 1
        %s650 = smul.addr %s649, 16
        %s651 = scalar_lea.vmem [#allocation3], %s650
        %p652 = pneg %p171
        %p653 = pneg %p168
        %p654 = scmp.lt.s32.totalorder %s35, 3
        %s655 = scalar_select %p654, %s35, 3
        %s656 = scalar_lea.vmem %s6, %s655
        %p657 = pneg %p197
        %p658 = pneg %p194
        %p659 = scmp.lt.s32.totalorder %s35, 3
        %s660 = scalar_select %p659, %s35, 3
        %s661 = scalar_lea.vmem %s7, %s660
        %p662 = pneg %p223
        %p663 = pneg %p220
        %p664 = scmp.lt.s32.totalorder %s35, 3
        %s665 = scalar_select %p664, %s35, 3
        %s666 = scalar_lea.vmem %s8, %s665
        %p667 = pneg %p249
        %p668 = pneg %p246
        %s669 = sand.u32 %s35, 1
        %s670 = scalar_lea.sflag [#allocation6], %s669
        %s671 = sand.u32 %s262, 1
        %s672 = smul.addr %s671, 256
        %s673 = scalar_lea.vmem [#allocation5], %s672
        %p674 = pneg %p275
        %p675 = pneg %p272
        %s676 = sand.u32 %s35, 1
        %s677 = scalar_lea.sflag [#allocation6], %s676
        %s678 = sand.u32 %s288, 1
        %s679 = smul.addr %s678, 16
        %s680 = scalar_lea.vmem [#allocation7], %s679
        %p681 = pneg %p301
        %p682 = pneg %p298
        %s683 = sand.u32 %s314, 1
        %s684 = scalar_lea.sflag [#allocation9], %s683
        %s685 = sand.u32 %s314, 1
        %s686 = smul.addr %s685, 256
        %s687 = scalar_lea.vmem [#allocation8], %s686
        %p688 = pneg %p327
        %p689 = pneg %p324
        %p690 = scmp.lt.s32.totalorder %s35, 3
        %s691 = scalar_select %p690, %s35, 3
        %s692 = scalar_lea.vmem %s12, %s691
        %p693 = pneg %p353
        %p694 = pneg %p350
        %p695 = scmp.lt.s32.totalorder %s35, 3
        %s696 = scalar_select %p695, %s35, 3
        %s697 = scalar_lea.vmem %s13, %s696
        %p698 = pneg %p379
        %p699 = pneg %p376
        %p700 = scmp.lt.s32.totalorder %s35, 3
        %s701 = scalar_select %p700, %s35, 3
        %s702 = scalar_lea.vmem %s14, %s701
        %p703 = pneg %p405
        %p704 = pneg %p402
        %p705 = pneg %p426
        %p706 = pneg %p423
        %p707 = scmp.lt.s32.totalorder %s35, 3
        %s708 = scalar_select %p707, %s35, 3
        %s709 = smul.addr %s708, 4
        %s710 = smul.addr %s709, 4
        %s711 = scalar_lea.vmem %s3, %s710
        %p712 = scmp.lt.s32.totalorder %s35, 3
        %s713 = scalar_select %p712, %s35, 3
        %s714 = scalar_lea.vmem %s4, %s713
        %p715 = scmp.lt.s32.totalorder %s35, 3
        %s716 = scalar_select %p715, %s35, 3
        %s717 = scalar_lea.vmem %s6, %s716
        %p718 = scmp.lt.s32.totalorder %s35, 3
        %s719 = scalar_select %p718, %s35, 3
        %s720 = scalar_lea.vmem %s7, %s719
        %p721 = scmp.lt.s32.totalorder %s35, 3
        %s722 = scalar_select %p721, %s35, 3
        %s723 = scalar_lea.vmem %s8, %s722
        %p724 = scmp.lt.s32.totalorder %s35, 3
        %s725 = scalar_select %p724, %s35, 3
        %s726 = scalar_lea.vmem %s12, %s725
        %p727 = scmp.lt.s32.totalorder %s35, 3
        %s728 = scalar_select %p727, %s35, 3
        %s729 = scalar_lea.vmem %s13, %s728
        %p730 = scmp.lt.s32.totalorder %s35, 3
        %s731 = scalar_select %p730, %s35, 3
        %s732 = scalar_lea.vmem %s14, %s731
        %p734 = scmp.eq.s32.totalorder %s35, 0
        // Predicated region
        $region97: #{memo_transformer_forward.1} parent=79 // pred_check
          %p735 = pneg %p734
        $region98: #{memo_transformer_forward.1} parent=79 // pred_check_branch
          %737 = sbr.rel (%p735) target = $region100
        $region99: #{memo_transformer_forward.1} parent=79 // pred_region
          %v738 = vld [vmem:[%s0] sm:$0xff]
          %v739 = vld [vmem:[%s0 + $0x8] sm:$0xff]
          %vm740 = vcmask 261120
          %741 = vst.msk [vmem:[#allocation2] sm:$0xff] %vm740, %v738
          %742 = vst.msk [vmem:[#allocation2 + $0x8] sm:$0xff] %vm740, %v739
        $region100: #{memo_transformer_forward.1} parent=79 // pred_fallthru
          _
        %v743 = vld [vmem:[#allocation2] sm:$0xff]
        %v744 = vld [vmem:[#allocation2 + $0x8] sm:$0xff]
        %v745 = vpack.c.bf16 %v744, %v743
        %v746 = vld [vmem:[%s711] sm:$0xf]
        %v747 = vld [vmem:[%s711 + $0x4] sm:$0xf]
        %v748 = vld [vmem:[%s711 + $0x8] sm:$0xf]
        %v749 = vld [vmem:[%s711 + $0xc] sm:$0xf]
        %v750 = vld [vmem:[%s714] sm:$0x1]
        %v752 = vlaneseq
        %v753 = vshrl.u32 %v752, 7
        %v754 = vsub.s32 0, %v753
        %v755 = vrot.slane %v750, %v754
        %v761 = vunpack.c.l.b16 %v746
        %v762 = vunpack.c.l.b16 %v747
        %v763 = vunpack.c.l.b16 %v748
        %v764 = vunpack.c.l.b16 %v749
        %v765 = vpack.c.b16 %v762, %v761
        %v766 = vpack.c.b16 %v764, %v763
        %vm769 = vcmask 261120
        %v771 = vsel %vm769, %v745, 0
        %773 = vmatprep.subr.bf16.mxu0 0
        %774 = vmatpush1.bf16.msra.mxu0 0
        %775 = vmatprep.subr.bf16.mxu0 0
        %776 = vmatpush1.bf16.msra.mxu0 0
        %777 = vmatprep.subr.bf16.mxu0 0
        %778 = vmatpush1.bf16.msra.mxu0 0
        %779 = vmatprep.subr.bf16.mxu0 0
        %780 = vmatpush1.bf16.msra.mxu0 0
        %781 = vmatprep.subr.bf16.mxu0 0
        %782 = vmatpush1.bf16.msra.mxu0 0
        %783 = vmatprep.subr.bf16.mxu0 0
        %784 = vmatpush1.bf16.msra.mxu0 0
        %785 = vmatprep.subr.bf16.mxu0 0
        %786 = vmatpush1.bf16.msra.mxu0 %v766
        %787 = vmatprep.subr.bf16.mxu0 0
        %788 = vmatpush1.bf16.msra.mxu0 %v765
        %789 = vmatprep.subr.bf16.mxu0 0
        %790 = vmatpush2.bf16.msra.mxu0 0
        %791 = vmatprep.subr.bf16.mxu0 0
        %792 = vmatpush2.bf16.msra.mxu0 0
        %793 = vmatprep.subr.bf16.mxu0 0
        %794 = vmatpush2.bf16.msra.mxu0 0
        %795 = vmatprep.subr.bf16.mxu0 0
        %796 = vmatpush2.bf16.msra.mxu0 0
        %797 = vmatprep.subr.bf16.mxu0 0
        %798 = vmatpush2.bf16.msra.mxu0 0
        %799 = vmatprep.subr.bf16.mxu0 0
        %800 = vmatpush2.bf16.msra.mxu0 0
        %801 = vmatprep.subr.bf16.mxu0 0
        %802 = vmatpush2.bf16.msra.mxu0 0
        %803 = vmatprep.subr.bf16.mxu0 0
        %804 = vmatpush2.bf16.msra.mxu0 0
        %805 = vmatprep.mubr.bf16.mxu0 0
        %806 = vmatmul.mubr.bf16.gmra.mxu0 %v771
        %v807 = vpop.f32.mrf.mxu0
        %v808 = vadd.f32 %v755, %v807
        %v809 = vpop.f32.mrf.mxu0
        %v810 = vpop.f32.mrf.mxu0
        %v811 = vadd.f32 %v755, %v810
        %v812 = vpop.f32.mrf.mxu0
        %813 = vdwg.mxu0
        %v814 = vmul.f32 %v808, 0.5
        %v815 = vmul.f32 %v811, 0.5
        %v816 = vld [vmem:[%s2] sm:$0xff]
        %v817 = vld [vmem:[%s2 + $0x8] sm:$0xff]
        %v818 = vld [vmem:[%s1] sm:$0x1]
        %v820 = vlaneseq
        %v821 = vshrl.u32 %v820, 7
        %v822 = vsub.s32 0, %v821
        %v823 = vrot.slane %v818, %v822
        %v825 = vmul.f32 %v814, %v823
        %v826 = vmul.f32 %v815, %v823
        %829 = vrot.lane.b32.xlu0 %v808, 96
        %v830 = vpop.permute.xlu0 %829
        %831 = vrot.lane.b32.xlu0 %v811, 96
        %v832 = vpop.permute.xlu0 %831
        %v834 = vsel %vm769, %v825, 0
        %v837 = vsel %vm769, %v826, 0
        %v839 = vsel %vm769, %v830, 0
        %v841 = vsel %vm769, %v832, 0
        %843 = vmatprep.subr.mxu0 0.0
        %844 = vmatpush1.xpose.msra.mxu0 0.0
        %845 = vmatprep.subr.mxu0 0.0
        %846 = vmatpush1.xpose.msra.mxu0 0.0
        %847 = vmatprep.subr.mxu0 0.0
        %848 = vmatpush1.xpose.msra.mxu0 0.0
        %849 = vmatprep.subr.mxu0 0.0
        %850 = vmatpush1.xpose.msra.mxu0 0.0
        %851 = vmatprep.subr.mxu0 0.0
        %852 = vmatpush1.xpose.msra.mxu0 0.0
        %853 = vmatprep.subr.mxu0 0.0
        %854 = vmatpush1.xpose.msra.mxu0 0.0
        %855 = vmatprep.subr.mxu0 0.0
        %856 = vmatpush1.xpose.msra.mxu0 0.0
        %857 = vmatprep.subr.mxu0 0.0
        %858 = vmatpush1.xpose.msra.mxu0 0.0
        %859 = vmatprep.subr.mxu0 0.0
        %860 = vmatpush1.xpose.msra.mxu0 0.0
        %861 = vmatprep.subr.mxu0 0.0
        %862 = vmatpush1.xpose.msra.mxu0 0.0
        %863 = vmatprep.subr.mxu0 0.0
        %864 = vmatpush1.xpose.msra.mxu0 0.0
        %865 = vmatprep.subr.mxu0 0.0
        %866 = vmatpush1.xpose.msra.mxu0 0.0
        %867 = vmatprep.subr.mxu0 0.0
        %868 = vmatpush1.xpose.msra.mxu0 0.0
        %869 = vmatprep.subr.mxu0 0.0
        %870 = vmatpush1.xpose.msra.mxu0 0.0
        %871 = vmatprep.subr.mxu0 0.0
        %872 = vmatpush1.xpose.msra.mxu0 %v841
        %873 = vmatprep.subr.mxu0 0.0
        %874 = vmatpush1.xpose.msra.mxu0 %v839
        %875 = vmatprep.subr.mxu0 0.0
        %876 = vmatpush2.xpose.msra.mxu0 0.0
        %877 = vmatprep.subr.mxu0 0.0
        %878 = vmatpush2.xpose.msra.mxu0 0.0
        %879 = vmatprep.subr.mxu0 0.0
        %880 = vmatpush2.xpose.msra.mxu0 0.0
        %881 = vmatprep.subr.mxu0 0.0
        %882 = vmatpush2.xpose.msra.mxu0 0.0
        %883 = vmatprep.subr.mxu0 0.0
        %884 = vmatpush2.xpose.msra.mxu0 0.0
        %885 = vmatprep.subr.mxu0 0.0
        %886 = vmatpush2.xpose.msra.mxu0 0.0
        %887 = vmatprep.subr.mxu0 0.0
        %888 = vmatpush2.xpose.msra.mxu0 0.0
        %889 = vmatprep.subr.mxu0 0.0
        %890 = vmatpush2.xpose.msra.mxu0 0.0
        %891 = vmatprep.subr.mxu0 0.0
        %892 = vmatpush2.xpose.msra.mxu0 0.0
        %893 = vmatprep.subr.mxu0 0.0
        %894 = vmatpush2.xpose.msra.mxu0 0.0
        %895 = vmatprep.subr.mxu0 0.0
        %896 = vmatpush2.xpose.msra.mxu0 0.0
        %897 = vmatprep.subr.mxu0 0.0
        %898 = vmatpush2.xpose.msra.mxu0 0.0
        %899 = vmatprep.subr.mxu0 0.0
        %900 = vmatpush2.xpose.msra.mxu0 0.0
        %901 = vmatprep.subr.mxu0 0.0
        %902 = vmatpush2.xpose.msra.mxu0 0.0
        %903 = vmatprep.subr.mxu0 0.0
        %904 = vmatpush2.xpose.msra.mxu0 0.0
        %905 = vmatprep.subr.mxu0 0.0
        %906 = vmatpush2.xpose.msra.mxu0 0.0
        %907 = vmatprep.mubr.f32.mxu0 0.0
        %908 = vmatmul.mubr.f32.gmra.mxu0 %v834
        %v909 = vpop.f32.mrf.mxu0
        %v910 = vadd.f32 %v816, %v909
        %v911 = vpop.f32.mrf.mxu0
        %912 = vmatprep.mubr.f32.mxu0 0.0
        %913 = vmatmul.mubr.f32.gmra.mxu0 %v837
        %v914 = vpop.f32.mrf.mxu0
        %v915 = vadd.f32 %v817, %v914
        %v916 = vpop.f32.mrf.mxu0
        %917 = vdwg.mxu0
        %vm918 = vcmask 130048
        %v919 = vsel %vm918, %v910, -inf
        %920 = vmax.xlane.f32.xlu0 %v919
        %v921 = vpop.xlane.xlu0 %920
        %v922 = vsel %vm918, %v915, -inf
        %923 = vmax.xlane.f32.xlu0 %v922
        %v924 = vpop.xlane.xlu0 %923
        %v925 = vsub.f32 %v910, %v921
        %v926 = vsub.f32 %v915, %v924
        %v927 = vmul.f32 %v925, 1.442695
        %v928 = vpow.pop %v927
        %v929 = vmul.f32 %v926, 1.442695
        %v930 = vpow.pop %v929
        %v931 = vsel %vm918, %v928, 0.0
        %932 = vadd.xlane.f32.xlu0 %v931
        %v933 = vpop.xlane.xlu0 %932
        %v934 = vsel %vm918, %v930, 0.0
        %935 = vadd.xlane.f32.xlu0 %v934
        %v936 = vpop.xlane.xlu0 %935
        %v937 = vrcp.pop %v933
        %v938 = vmul.f32 %v928, %v937
        %v939 = vrcp.pop %v936
        %v940 = vmul.f32 %v930, %v939
        %941 = vrot.lane.b32.xlu0 %v823, 64
        %v942 = vpop.permute.xlu0 %941
        %v944 = vmul.f32 %v808, %v942
        %v945 = vmul.f32 %v811, %v942
        %s946 = scalar_lea.vmem %s1, 1
        %v947 = vld [vmem:[%s946] sm:$0x1]
        %v949 = vlaneseq
        %v950 = vshrl.u32 %v949, 7
        %v951 = vsub.s32 0, %v950
        %v952 = vrot.slane %v947, %v951
        %v954 = vmul.f32 %v814, %v952
        %v955 = vmul.f32 %v815, %v952
        %v957 = vsel %vm769, %v954, 0
        %v960 = vsel %vm769, %v955, 0
        %962 = vmatprep.subr.mxu0 0.0
        %963 = vmatpush1.xpose.msra.mxu0 0.0
        %964 = vmatprep.subr.mxu0 0.0
        %965 = vmatpush1.xpose.msra.mxu0 0.0
        %966 = vmatprep.subr.mxu0 0.0
        %967 = vmatpush1.xpose.msra.mxu0 0.0
        %968 = vmatprep.subr.mxu0 0.0
        %969 = vmatpush1.xpose.msra.mxu0 0.0
        %970 = vmatprep.subr.mxu0 0.0
        %971 = vmatpush1.xpose.msra.mxu0 0.0
        %972 = vmatprep.subr.mxu0 0.0
        %973 = vmatpush1.xpose.msra.mxu0 0.0
        %974 = vmatprep.subr.mxu0 0.0
        %975 = vmatpush1.xpose.msra.mxu0 0.0
        %976 = vmatprep.subr.mxu0 0.0
        %977 = vmatpush1.xpose.msra.mxu0 0.0
        %978 = vmatprep.subr.mxu0 0.0
        %979 = vmatpush1.xpose.msra.mxu0 0.0
        %980 = vmatprep.subr.mxu0 0.0
        %981 = vmatpush1.xpose.msra.mxu0 0.0
        %982 = vmatprep.subr.mxu0 0.0
        %983 = vmatpush1.xpose.msra.mxu0 0.0
        %984 = vmatprep.subr.mxu0 0.0
        %985 = vmatpush1.xpose.msra.mxu0 0.0
        %986 = vmatprep.subr.mxu0 0.0
        %987 = vmatpush1.xpose.msra.mxu0 0.0
        %988 = vmatprep.subr.mxu0 0.0
        %989 = vmatpush1.xpose.msra.mxu0 0.0
        %990 = vmatprep.subr.mxu0 0.0
        %991 = vmatpush1.xpose.msra.mxu0 %v841
        %992 = vmatprep.subr.mxu0 0.0
        %993 = vmatpush1.xpose.msra.mxu0 %v839
        %994 = vmatprep.subr.mxu0 0.0
        %995 = vmatpush2.xpose.msra.mxu0 0.0
        %996 = vmatprep.subr.mxu0 0.0
        %997 = vmatpush2.xpose.msra.mxu0 0.0
        %998 = vmatprep.subr.mxu0 0.0
        %999 = vmatpush2.xpose.msra.mxu0 0.0
        %1000 = vmatprep.subr.mxu0 0.0
        %1001 = vmatpush2.xpose.msra.mxu0 0.0
        %1002 = vmatprep.subr.mxu0 0.0
        %1003 = vmatpush2.xpose.msra.mxu0 0.0
        %1004 = vmatprep.subr.mxu0 0.0
        %1005 = vmatpush2.xpose.msra.mxu0 0.0
        %1006 = vmatprep.subr.mxu0 0.0
        %1007 = vmatpush2.xpose.msra.mxu0 0.0
        %1008 = vmatprep.subr.mxu0 0.0
        %1009 = vmatpush2.xpose.msra.mxu0 0.0
        %1010 = vmatprep.subr.mxu0 0.0
        %1011 = vmatpush2.xpose.msra.mxu0 0.0
        %1012 = vmatprep.subr.mxu0 0.0
        %1013 = vmatpush2.xpose.msra.mxu0 0.0
        %1014 = vmatprep.subr.mxu0 0.0
        %1015 = vmatpush2.xpose.msra.mxu0 0.0
        %1016 = vmatprep.subr.mxu0 0.0
        %1017 = vmatpush2.xpose.msra.mxu0 0.0
        %1018 = vmatprep.subr.mxu0 0.0
        %1019 = vmatpush2.xpose.msra.mxu0 0.0
        %1020 = vmatprep.subr.mxu0 0.0
        %1021 = vmatpush2.xpose.msra.mxu0 0.0
        %1022 = vmatprep.subr.mxu0 0.0
        %1023 = vmatpush2.xpose.msra.mxu0 0.0
        %1024 = vmatprep.subr.mxu0 0.0
        %1025 = vmatpush2.xpose.msra.mxu0 0.0
        %1026 = vmatprep.mubr.f32.mxu0 0.0
        %1027 = vmatmul.mubr.f32.gmra.mxu0 %v957
        %v1028 = vpop.f32.mrf.mxu0
        %v1029 = vadd.f32 %v816, %v1028
        %v1030 = vpop.f32.mrf.mxu0
        %1031 = vmatprep.mubr.f32.mxu0 0.0
        %1032 = vmatmul.mubr.f32.gmra.mxu0 %v960
        %v1033 = vpop.f32.mrf.mxu0
        %v1034 = vadd.f32 %v817, %v1033
        %v1035 = vpop.f32.mrf.mxu0
        %1036 = vdwg.mxu0
        %v1037 = vsel %vm918, %v1029, -inf
        %1038 = vmax.xlane.f32.xlu0 %v1037
        %v1039 = vpop.xlane.xlu0 %1038
        %v1040 = vsel %vm918, %v1034, -inf
        %1041 = vmax.xlane.f32.xlu0 %v1040
        %v1042 = vpop.xlane.xlu0 %1041
        %v1043 = vsub.f32 %v1029, %v1039
        %v1044 = vsub.f32 %v1034, %v1042
        %v1045 = vmul.f32 %v1043, 1.442695
        %v1046 = vpow.pop %v1045
        %v1047 = vmul.f32 %v1044, 1.442695
        %v1048 = vpow.pop %v1047
        %v1049 = vsel %vm918, %v1046, 0.0
        %1050 = vadd.xlane.f32.xlu0 %v1049
        %v1051 = vpop.xlane.xlu0 %1050
        %v1052 = vsel %vm918, %v1048, 0.0
        %1053 = vadd.xlane.f32.xlu0 %v1052
        %v1054 = vpop.xlane.xlu0 %1053
        %v1055 = vrcp.pop %v1051
        %v1056 = vmul.f32 %v1046, %v1055
        %v1057 = vrcp.pop %v1054
        %v1058 = vmul.f32 %v1048, %v1057
        %1059 = vrot.lane.b32.xlu0 %v952, 64
        %v1060 = vpop.permute.xlu0 %1059
        %v1062 = vmul.f32 %v808, %v1060
        %v1063 = vmul.f32 %v811, %v1060
        %1066 = vrot.lane.b32.xlu0 %v1062, 64
        %v1067 = vpop.permute.xlu0 %1066
        %1068 = vrot.lane.b32.xlu0 %v1063, 64
        %v1069 = vpop.permute.xlu0 %1068
        %v1073 = vsel %vm918, %v1056, 0
        %v1076 = vsel %vm918, %v1058, 0
        %1078 = vmatprep.subr.mxu0 0.0
        %1079 = vmatpush1.msra.mxu0 0.0
        %1080 = vmatprep.subr.mxu0 0.0
        %1081 = vmatpush1.msra.mxu0 0.0
        %1082 = vmatprep.subr.mxu0 0.0
        %1083 = vmatpush1.msra.mxu0 0.0
        %1084 = vmatprep.subr.mxu0 0.0
        %1085 = vmatpush1.msra.mxu0 0.0
        %1086 = vmatprep.subr.mxu0 0.0
        %1087 = vmatpush1.msra.mxu0 0.0
        %1088 = vmatprep.subr.mxu0 0.0
        %1089 = vmatpush1.msra.mxu0 0.0
        %1090 = vmatprep.subr.mxu0 0.0
        %1091 = vmatpush1.msra.mxu0 0.0
        %1092 = vmatprep.subr.mxu0 0.0
        %1093 = vmatpush1.msra.mxu0 0.0
        %1094 = vmatprep.subr.mxu0 0.0
        %1095 = vmatpush1.msra.mxu0 0.0
        %1096 = vmatprep.subr.mxu0 0.0
        %1097 = vmatpush1.msra.mxu0 0.0
        %1098 = vmatprep.subr.mxu0 0.0
        %1099 = vmatpush1.msra.mxu0 0.0
        %1100 = vmatprep.subr.mxu0 0.0
        %1101 = vmatpush1.msra.mxu0 0.0
        %1102 = vmatprep.subr.mxu0 0.0
        %1103 = vmatpush1.msra.mxu0 0.0
        %1104 = vmatprep.subr.mxu0 0.0
        %1105 = vmatpush1.msra.mxu0 0.0
        %1106 = vmatprep.subr.mxu0 0.0
        %1107 = vmatpush1.msra.mxu0 %v1069
        %1108 = vmatprep.subr.mxu0 0.0
        %1109 = vmatpush1.msra.mxu0 %v1067
        %1110 = vmatprep.subr.mxu0 0.0
        %1111 = vmatpush2.msra.mxu0 0.0
        %1112 = vmatprep.subr.mxu0 0.0
        %1113 = vmatpush2.msra.mxu0 0.0
        %1114 = vmatprep.subr.mxu0 0.0
        %1115 = vmatpush2.msra.mxu0 0.0
        %1116 = vmatprep.subr.mxu0 0.0
        %1117 = vmatpush2.msra.mxu0 0.0
        %1118 = vmatprep.subr.mxu0 0.0
        %1119 = vmatpush2.msra.mxu0 0.0
        %1120 = vmatprep.subr.mxu0 0.0
        %1121 = vmatpush2.msra.mxu0 0.0
        %1122 = vmatprep.subr.mxu0 0.0
        %1123 = vmatpush2.msra.mxu0 0.0
        %1124 = vmatprep.subr.mxu0 0.0
        %1125 = vmatpush2.msra.mxu0 0.0
        %1126 = vmatprep.subr.mxu0 0.0
        %1127 = vmatpush2.msra.mxu0 0.0
        %1128 = vmatprep.subr.mxu0 0.0
        %1129 = vmatpush2.msra.mxu0 0.0
        %1130 = vmatprep.subr.mxu0 0.0
        %1131 = vmatpush2.msra.mxu0 0.0
        %1132 = vmatprep.subr.mxu0 0.0
        %1133 = vmatpush2.msra.mxu0 0.0
        %1134 = vmatprep.subr.mxu0 0.0
        %1135 = vmatpush2.msra.mxu0 0.0
        %1136 = vmatprep.subr.mxu0 0.0
        %1137 = vmatpush2.msra.mxu0 0.0
        %1138 = vmatprep.subr.mxu0 0.0
        %1139 = vmatpush2.msra.mxu0 0.0
        %1140 = vmatprep.subr.mxu0 0.0
        %1141 = vmatpush2.msra.mxu0 0.0
        %1142 = vmatprep.mubr.f32.mxu0 0.0
        %1143 = vmatmul.mubr.f32.gmra.mxu0 %v1073
        %v1144 = vpop.f32.mrf.mxu0
        %v1145 = vadd.f32 0.0, %v1144
        %v1146 = vpop.f32.mrf.mxu0
        %1147 = vmatprep.mubr.f32.mxu0 0.0
        %1148 = vmatmul.mubr.f32.gmra.mxu0 %v1076
        %v1149 = vpop.f32.mrf.mxu0
        %v1150 = vadd.f32 0.0, %v1149
        %v1151 = vpop.f32.mrf.mxu0
        %1152 = vdwg.mxu0
        %1155 = vrot.lane.b32.xlu0 %v944, 64
        %v1156 = vpop.permute.xlu0 %1155
        %1157 = vrot.lane.b32.xlu0 %v945, 64
        %v1158 = vpop.permute.xlu0 %1157
        %v1162 = vsel %vm918, %v938, 0
        %v1165 = vsel %vm918, %v940, 0
        %1167 = vmatprep.subr.mxu0 0.0
        %1168 = vmatpush1.msra.mxu0 0.0
        %1169 = vmatprep.subr.mxu0 0.0
        %1170 = vmatpush1.msra.mxu0 0.0
        %1171 = vmatprep.subr.mxu0 0.0
        %1172 = vmatpush1.msra.mxu0 0.0
        %1173 = vmatprep.subr.mxu0 0.0
        %1174 = vmatpush1.msra.mxu0 0.0
        %1175 = vmatprep.subr.mxu0 0.0
        %1176 = vmatpush1.msra.mxu0 0.0
        %1177 = vmatprep.subr.mxu0 0.0
        %1178 = vmatpush1.msra.mxu0 0.0
        %1179 = vmatprep.subr.mxu0 0.0
        %1180 = vmatpush1.msra.mxu0 0.0
        %1181 = vmatprep.subr.mxu0 0.0
        %1182 = vmatpush1.msra.mxu0 0.0
        %1183 = vmatprep.subr.mxu0 0.0
        %1184 = vmatpush1.msra.mxu0 0.0
        %1185 = vmatprep.subr.mxu0 0.0
        %1186 = vmatpush1.msra.mxu0 0.0
        %1187 = vmatprep.subr.mxu0 0.0
        %1188 = vmatpush1.msra.mxu0 0.0
        %1189 = vmatprep.subr.mxu0 0.0
        %1190 = vmatpush1.msra.mxu0 0.0
        %1191 = vmatprep.subr.mxu0 0.0
        %1192 = vmatpush1.msra.mxu0 0.0
        %1193 = vmatprep.subr.mxu0 0.0
        %1194 = vmatpush1.msra.mxu0 0.0
        %1195 = vmatprep.subr.mxu0 0.0
        %1196 = vmatpush1.msra.mxu0 %v1158
        %1197 = vmatprep.subr.mxu0 0.0
        %1198 = vmatpush1.msra.mxu0 %v1156
        %1199 = vmatprep.subr.mxu0 0.0
        %1200 = vmatpush2.msra.mxu0 0.0
        %1201 = vmatprep.subr.mxu0 0.0
        %1202 = vmatpush2.msra.mxu0 0.0
        %1203 = vmatprep.subr.mxu0 0.0
        %1204 = vmatpush2.msra.mxu0 0.0
        %1205 = vmatprep.subr.mxu0 0.0
        %1206 = vmatpush2.msra.mxu0 0.0
        %1207 = vmatprep.subr.mxu0 0.0
        %1208 = vmatpush2.msra.mxu0 0.0
        %1209 = vmatprep.subr.mxu0 0.0
        %1210 = vmatpush2.msra.mxu0 0.0
        %1211 = vmatprep.subr.mxu0 0.0
        %1212 = vmatpush2.msra.mxu0 0.0
        %1213 = vmatprep.subr.mxu0 0.0
        %1214 = vmatpush2.msra.mxu0 0.0
        %1215 = vmatprep.subr.mxu0 0.0
        %1216 = vmatpush2.msra.mxu0 0.0
        %1217 = vmatprep.subr.mxu0 0.0
        %1218 = vmatpush2.msra.mxu0 0.0
        %1219 = vmatprep.subr.mxu0 0.0
        %1220 = vmatpush2.msra.mxu0 0.0
        %1221 = vmatprep.subr.mxu0 0.0
        %1222 = vmatpush2.msra.mxu0 0.0
        %1223 = vmatprep.subr.mxu0 0.0
        %1224 = vmatpush2.msra.mxu0 0.0
        %1225 = vmatprep.subr.mxu0 0.0
        %1226 = vmatpush2.msra.mxu0 0.0
        %1227 = vmatprep.subr.mxu0 0.0
        %1228 = vmatpush2.msra.mxu0 0.0
        %1229 = vmatprep.subr.mxu0 0.0
        %1230 = vmatpush2.msra.mxu0 0.0
        %1231 = vmatprep.mubr.f32.mxu0 0.0
        %1232 = vmatmul.mubr.f32.gmra.mxu0 %v1162
        %v1233 = vpop.f32.mrf.mxu0
        %v1234 = vadd.f32 %v1145, %v1233
        %v1235 = vpop.f32.mrf.mxu0
        %1236 = vmatprep.mubr.f32.mxu0 0.0
        %1237 = vmatmul.mubr.f32.gmra.mxu0 %v1165
        %v1238 = vpop.f32.mrf.mxu0
        %v1239 = vadd.f32 %v1150, %v1238
        %v1240 = vpop.f32.mrf.mxu0
        %1241 = vdwg.mxu0
        %s1242 = scalar_lea.vmem %s1, 2
        %v1243 = vld [vmem:[%s1242] sm:$0x1]
        %v1245 = vlaneseq
        %v1246 = vshrl.u32 %v1245, 7
        %v1247 = vsub.s32 0, %v1246
        %v1248 = vrot.slane %v1243, %v1247
        %v1250 = vmul.f32 %v814, %v1248
        %v1251 = vmul.f32 %v815, %v1248
        %v1253 = vsel %vm769, %v1250, 0
        %v1256 = vsel %vm769, %v1251, 0
        %1258 = vmatprep.subr.mxu0 0.0
        %1259 = vmatpush1.xpose.msra.mxu0 0.0
        %1260 = vmatprep.subr.mxu0 0.0
        %1261 = vmatpush1.xpose.msra.mxu0 0.0
        %1262 = vmatprep.subr.mxu0 0.0
        %1263 = vmatpush1.xpose.msra.mxu0 0.0
        %1264 = vmatprep.subr.mxu0 0.0
        %1265 = vmatpush1.xpose.msra.mxu0 0.0
        %1266 = vmatprep.subr.mxu0 0.0
        %1267 = vmatpush1.xpose.msra.mxu0 0.0
        %1268 = vmatprep.subr.mxu0 0.0
        %1269 = vmatpush1.xpose.msra.mxu0 0.0
        %1270 = vmatprep.subr.mxu0 0.0
        %1271 = vmatpush1.xpose.msra.mxu0 0.0
        %1272 = vmatprep.subr.mxu0 0.0
        %1273 = vmatpush1.xpose.msra.mxu0 0.0
        %1274 = vmatprep.subr.mxu0 0.0
        %1275 = vmatpush1.xpose.msra.mxu0 0.0
        %1276 = vmatprep.subr.mxu0 0.0
        %1277 = vmatpush1.xpose.msra.mxu0 0.0
        %1278 = vmatprep.subr.mxu0 0.0
        %1279 = vmatpush1.xpose.msra.mxu0 0.0
        %1280 = vmatprep.subr.mxu0 0.0
        %1281 = vmatpush1.xpose.msra.mxu0 0.0
        %1282 = vmatprep.subr.mxu0 0.0
        %1283 = vmatpush1.xpose.msra.mxu0 0.0
        %1284 = vmatprep.subr.mxu0 0.0
        %1285 = vmatpush1.xpose.msra.mxu0 0.0
        %1286 = vmatprep.subr.mxu0 0.0
        %1287 = vmatpush1.xpose.msra.mxu0 %v841
        %1288 = vmatprep.subr.mxu0 0.0
        %1289 = vmatpush1.xpose.msra.mxu0 %v839
        %1290 = vmatprep.subr.mxu0 0.0
        %1291 = vmatpush2.xpose.msra.mxu0 0.0
        %1292 = vmatprep.subr.mxu0 0.0
        %1293 = vmatpush2.xpose.msra.mxu0 0.0
        %1294 = vmatprep.subr.mxu0 0.0
        %1295 = vmatpush2.xpose.msra.mxu0 0.0
        %1296 = vmatprep.subr.mxu0 0.0
        %1297 = vmatpush2.xpose.msra.mxu0 0.0
        %1298 = vmatprep.subr.mxu0 0.0
        %1299 = vmatpush2.xpose.msra.mxu0 0.0
        %1300 = vmatprep.subr.mxu0 0.0
        %1301 = vmatpush2.xpose.msra.mxu0 0.0
        %1302 = vmatprep.subr.mxu0 0.0
        %1303 = vmatpush2.xpose.msra.mxu0 0.0
        %1304 = vmatprep.subr.mxu0 0.0
        %1305 = vmatpush2.xpose.msra.mxu0 0.0
        %1306 = vmatprep.subr.mxu0 0.0
        %1307 = vmatpush2.xpose.msra.mxu0 0.0
        %1308 = vmatprep.subr.mxu0 0.0
        %1309 = vmatpush2.xpose.msra.mxu0 0.0
        %1310 = vmatprep.subr.mxu0 0.0
        %1311 = vmatpush2.xpose.msra.mxu0 0.0
        %1312 = vmatprep.subr.mxu0 0.0
        %1313 = vmatpush2.xpose.msra.mxu0 0.0
        %1314 = vmatprep.subr.mxu0 0.0
        %1315 = vmatpush2.xpose.msra.mxu0 0.0
        %1316 = vmatprep.subr.mxu0 0.0
        %1317 = vmatpush2.xpose.msra.mxu0 0.0
        %1318 = vmatprep.subr.mxu0 0.0
        %1319 = vmatpush2.xpose.msra.mxu0 0.0
        %1320 = vmatprep.subr.mxu0 0.0
        %1321 = vmatpush2.xpose.msra.mxu0 0.0
        %1322 = vmatprep.mubr.f32.mxu0 0.0
        %1323 = vmatmul.mubr.f32.gmra.mxu0 %v1253
        %v1324 = vpop.f32.mrf.mxu0
        %v1325 = vadd.f32 %v816, %v1324
        %v1326 = vpop.f32.mrf.mxu0
        %1327 = vmatprep.mubr.f32.mxu0 0.0
        %1328 = vmatmul.mubr.f32.gmra.mxu0 %v1256
        %v1329 = vpop.f32.mrf.mxu0
        %v1330 = vadd.f32 %v817, %v1329
        %v1331 = vpop.f32.mrf.mxu0
        %1332 = vdwg.mxu0
        %v1333 = vsel %vm918, %v1325, -inf
        %1334 = vmax.xlane.f32.xlu0 %v1333
        %v1335 = vpop.xlane.xlu0 %1334
        %v1336 = vsel %vm918, %v1330, -inf
        %1337 = vmax.xlane.f32.xlu0 %v1336
        %v1338 = vpop.xlane.xlu0 %1337
        %v1339 = vsub.f32 %v1325, %v1335
        %v1340 = vsub.f32 %v1330, %v1338
        %v1341 = vmul.f32 %v1339, 1.442695
        %v1342 = vpow.pop %v1341
        %v1343 = vmul.f32 %v1340, 1.442695
        %v1344 = vpow.pop %v1343
        %v1345 = vsel %vm918, %v1342, 0.0
        %1346 = vadd.xlane.f32.xlu0 %v1345
        %v1347 = vpop.xlane.xlu0 %1346
        %v1348 = vsel %vm918, %v1344, 0.0
        %1349 = vadd.xlane.f32.xlu0 %v1348
        %v1350 = vpop.xlane.xlu0 %1349
        %v1351 = vrcp.pop %v1347
        %v1352 = vmul.f32 %v1342, %v1351
        %v1353 = vrcp.pop %v1350
        %v1354 = vmul.f32 %v1344, %v1353
        %1355 = vrot.lane.b32.xlu0 %v1248, 64
        %v1356 = vpop.permute.xlu0 %1355
        %v1358 = vmul.f32 %v808, %v1356
        %v1359 = vmul.f32 %v811, %v1356
        %1362 = vrot.lane.b32.xlu0 %v1358, 64
        %v1363 = vpop.permute.xlu0 %1362
        %1364 = vrot.lane.b32.xlu0 %v1359, 64
        %v1365 = vpop.permute.xlu0 %1364
        %v1369 = vsel %vm918, %v1352, 0
        %v1372 = vsel %vm918, %v1354, 0
        %1374 = vmatprep.subr.mxu0 0.0
        %1375 = vmatpush1.msra.mxu0 0.0
        %1376 = vmatprep.subr.mxu0 0.0
        %1377 = vmatpush1.msra.mxu0 0.0
        %1378 = vmatprep.subr.mxu0 0.0
        %1379 = vmatpush1.msra.mxu0 0.0
        %1380 = vmatprep.subr.mxu0 0.0
        %1381 = vmatpush1.msra.mxu0 0.0
        %1382 = vmatprep.subr.mxu0 0.0
        %1383 = vmatpush1.msra.mxu0 0.0
        %1384 = vmatprep.subr.mxu0 0.0
        %1385 = vmatpush1.msra.mxu0 0.0
        %1386 = vmatprep.subr.mxu0 0.0
        %1387 = vmatpush1.msra.mxu0 0.0
        %1388 = vmatprep.subr.mxu0 0.0
        %1389 = vmatpush1.msra.mxu0 0.0
        %1390 = vmatprep.subr.mxu0 0.0
        %1391 = vmatpush1.msra.mxu0 0.0
        %1392 = vmatprep.subr.mxu0 0.0
        %1393 = vmatpush1.msra.mxu0 0.0
        %1394 = vmatprep.subr.mxu0 0.0
        %1395 = vmatpush1.msra.mxu0 0.0
        %1396 = vmatprep.subr.mxu0 0.0
        %1397 = vmatpush1.msra.mxu0 0.0
        %1398 = vmatprep.subr.mxu0 0.0
        %1399 = vmatpush1.msra.mxu0 0.0
        %1400 = vmatprep.subr.mxu0 0.0
        %1401 = vmatpush1.msra.mxu0 0.0
        %1402 = vmatprep.subr.mxu0 0.0
        %1403 = vmatpush1.msra.mxu0 %v1365
        %1404 = vmatprep.subr.mxu0 0.0
        %1405 = vmatpush1.msra.mxu0 %v1363
        %1406 = vmatprep.subr.mxu0 0.0
        %1407 = vmatpush2.msra.mxu0 0.0
        %1408 = vmatprep.subr.mxu0 0.0
        %1409 = vmatpush2.msra.mxu0 0.0
        %1410 = vmatprep.subr.mxu0 0.0
        %1411 = vmatpush2.msra.mxu0 0.0
        %1412 = vmatprep.subr.mxu0 0.0
        %1413 = vmatpush2.msra.mxu0 0.0
        %1414 = vmatprep.subr.mxu0 0.0
        %1415 = vmatpush2.msra.mxu0 0.0
        %1416 = vmatprep.subr.mxu0 0.0
        %1417 = vmatpush2.msra.mxu0 0.0
        %1418 = vmatprep.subr.mxu0 0.0
        %1419 = vmatpush2.msra.mxu0 0.0
        %1420 = vmatprep.subr.mxu0 0.0
        %1421 = vmatpush2.msra.mxu0 0.0
        %1422 = vmatprep.subr.mxu0 0.0
        %1423 = vmatpush2.msra.mxu0 0.0
        %1424 = vmatprep.subr.mxu0 0.0
        %1425 = vmatpush2.msra.mxu0 0.0
        %1426 = vmatprep.subr.mxu0 0.0
        %1427 = vmatpush2.msra.mxu0 0.0
        %1428 = vmatprep.subr.mxu0 0.0
        %1429 = vmatpush2.msra.mxu0 0.0
        %1430 = vmatprep.subr.mxu0 0.0
        %1431 = vmatpush2.msra.mxu0 0.0
        %1432 = vmatprep.subr.mxu0 0.0
        %1433 = vmatpush2.msra.mxu0 0.0
        %1434 = vmatprep.subr.mxu0 0.0
        %1435 = vmatpush2.msra.mxu0 0.0
        %1436 = vmatprep.subr.mxu0 0.0
        %1437 = vmatpush2.msra.mxu0 0.0
        %1438 = vmatprep.mubr.f32.mxu0 0.0
        %1439 = vmatmul.mubr.f32.gmra.mxu0 %v1369
        %v1440 = vpop.f32.mrf.mxu0
        %v1441 = vadd.f32 0.0, %v1440
        %v1442 = vpop.f32.mrf.mxu0
        %1443 = vmatprep.mubr.f32.mxu0 0.0
        %1444 = vmatmul.mubr.f32.gmra.mxu0 %v1372
        %v1445 = vpop.f32.mrf.mxu0
        %v1446 = vadd.f32 0.0, %v1445
        %v1447 = vpop.f32.mrf.mxu0
        %1448 = vdwg.mxu0
        %v1449 = vadd.f32 %v1234, %v1441
        %v1450 = vadd.f32 %v1239, %v1446
        %s1451 = scalar_lea.vmem %s1, 3
        %v1452 = vld [vmem:[%s1451] sm:$0x1]
        %v1454 = vlaneseq
        %v1455 = vshrl.u32 %v1454, 7
        %v1456 = vsub.s32 0, %v1455
        %v1457 = vrot.slane %v1452, %v1456
        %v1459 = vmul.f32 %v814, %v1457
        %v1460 = vmul.f32 %v815, %v1457
        %v1462 = vsel %vm769, %v1459, 0
        %v1465 = vsel %vm769, %v1460, 0
        %1467 = vmatprep.subr.mxu0 0.0
        %1468 = vmatpush1.xpose.msra.mxu0 0.0
        %1469 = vmatprep.subr.mxu0 0.0
        %1470 = vmatpush1.xpose.msra.mxu0 0.0
        %1471 = vmatprep.subr.mxu0 0.0
        %1472 = vmatpush1.xpose.msra.mxu0 0.0
        %1473 = vmatprep.subr.mxu0 0.0
        %1474 = vmatpush1.xpose.msra.mxu0 0.0
        %1475 = vmatprep.subr.mxu0 0.0
        %1476 = vmatpush1.xpose.msra.mxu0 0.0
        %1477 = vmatprep.subr.mxu0 0.0
        %1478 = vmatpush1.xpose.msra.mxu0 0.0
        %1479 = vmatprep.subr.mxu0 0.0
        %1480 = vmatpush1.xpose.msra.mxu0 0.0
        %1481 = vmatprep.subr.mxu0 0.0
        %1482 = vmatpush1.xpose.msra.mxu0 0.0
        %1483 = vmatprep.subr.mxu0 0.0
        %1484 = vmatpush1.xpose.msra.mxu0 0.0
        %1485 = vmatprep.subr.mxu0 0.0
        %1486 = vmatpush1.xpose.msra.mxu0 0.0
        %1487 = vmatprep.subr.mxu0 0.0
        %1488 = vmatpush1.xpose.msra.mxu0 0.0
        %1489 = vmatprep.subr.mxu0 0.0
        %1490 = vmatpush1.xpose.msra.mxu0 0.0
        %1491 = vmatprep.subr.mxu0 0.0
        %1492 = vmatpush1.xpose.msra.mxu0 0.0
        %1493 = vmatprep.subr.mxu0 0.0
        %1494 = vmatpush1.xpose.msra.mxu0 0.0
        %1495 = vmatprep.subr.mxu0 0.0
        %1496 = vmatpush1.xpose.msra.mxu0 %v841
        %1497 = vmatprep.subr.mxu0 0.0
        %1498 = vmatpush1.xpose.msra.mxu0 %v839
        %1499 = vmatprep.subr.mxu0 0.0
        %1500 = vmatpush2.xpose.msra.mxu0 0.0
        %1501 = vmatprep.subr.mxu0 0.0
        %1502 = vmatpush2.xpose.msra.mxu0 0.0
        %1503 = vmatprep.subr.mxu0 0.0
        %1504 = vmatpush2.xpose.msra.mxu0 0.0
        %1505 = vmatprep.subr.mxu0 0.0
        %1506 = vmatpush2.xpose.msra.mxu0 0.0
        %1507 = vmatprep.subr.mxu0 0.0
        %1508 = vmatpush2.xpose.msra.mxu0 0.0
        %1509 = vmatprep.subr.mxu0 0.0
        %1510 = vmatpush2.xpose.msra.mxu0 0.0
        %1511 = vmatprep.subr.mxu0 0.0
        %1512 = vmatpush2.xpose.msra.mxu0 0.0
        %1513 = vmatprep.subr.mxu0 0.0
        %1514 = vmatpush2.xpose.msra.mxu0 0.0
        %1515 = vmatprep.subr.mxu0 0.0
        %1516 = vmatpush2.xpose.msra.mxu0 0.0
        %1517 = vmatprep.subr.mxu0 0.0
        %1518 = vmatpush2.xpose.msra.mxu0 0.0
        %1519 = vmatprep.subr.mxu0 0.0
        %1520 = vmatpush2.xpose.msra.mxu0 0.0
        %1521 = vmatprep.subr.mxu0 0.0
        %1522 = vmatpush2.xpose.msra.mxu0 0.0
        %1523 = vmatprep.subr.mxu0 0.0
        %1524 = vmatpush2.xpose.msra.mxu0 0.0
        %1525 = vmatprep.subr.mxu0 0.0
        %1526 = vmatpush2.xpose.msra.mxu0 0.0
        %1527 = vmatprep.subr.mxu0 0.0
        %1528 = vmatpush2.xpose.msra.mxu0 0.0
        %1529 = vmatprep.subr.mxu0 0.0
        %1530 = vmatpush2.xpose.msra.mxu0 0.0
        %1531 = vmatprep.mubr.f32.mxu0 0.0
        %1532 = vmatmul.mubr.f32.gmra.mxu0 %v1462
        %v1533 = vpop.f32.mrf.mxu0
        %v1534 = vadd.f32 %v816, %v1533
        %v1535 = vpop.f32.mrf.mxu0
        %1536 = vmatprep.mubr.f32.mxu0 0.0
        %1537 = vmatmul.mubr.f32.gmra.mxu0 %v1465
        %v1538 = vpop.f32.mrf.mxu0
        %v1539 = vadd.f32 %v817, %v1538
        %v1540 = vpop.f32.mrf.mxu0
        %1541 = vdwg.mxu0
        %v1542 = vsel %vm918, %v1534, -inf
        %1543 = vmax.xlane.f32.xlu0 %v1542
        %v1544 = vpop.xlane.xlu0 %1543
        %v1545 = vsel %vm918, %v1539, -inf
        %1546 = vmax.xlane.f32.xlu0 %v1545
        %v1547 = vpop.xlane.xlu0 %1546
        %v1548 = vsub.f32 %v1534, %v1544
        %v1549 = vsub.f32 %v1539, %v1547
        %v1550 = vmul.f32 %v1548, 1.442695
        %v1551 = vpow.pop %v1550
        %v1552 = vmul.f32 %v1549, 1.442695
        %v1553 = vpow.pop %v1552
        %v1554 = vsel %vm918, %v1551, 0.0
        %1555 = vadd.xlane.f32.xlu0 %v1554
        %v1556 = vpop.xlane.xlu0 %1555
        %v1557 = vsel %vm918, %v1553, 0.0
        %1558 = vadd.xlane.f32.xlu0 %v1557
        %v1559 = vpop.xlane.xlu0 %1558
        %v1560 = vrcp.pop %v1556
        %v1561 = vmul.f32 %v1551, %v1560
        %v1562 = vrcp.pop %v1559
        %v1563 = vmul.f32 %v1553, %v1562
        %1564 = vrot.lane.b32.xlu0 %v1457, 64
        %v1565 = vpop.permute.xlu0 %1564
        %v1567 = vmul.f32 %v808, %v1565
        %v1568 = vmul.f32 %v811, %v1565
        %1571 = vrot.lane.b32.xlu0 %v1567, 64
        %v1572 = vpop.permute.xlu0 %1571
        %1573 = vrot.lane.b32.xlu0 %v1568, 64
        %v1574 = vpop.permute.xlu0 %1573
        %v1578 = vsel %vm918, %v1561, 0
        %v1581 = vsel %vm918, %v1563, 0
        %1583 = vmatprep.subr.mxu0 0.0
        %1584 = vmatpush1.msra.mxu0 0.0
        %1585 = vmatprep.subr.mxu0 0.0
        %1586 = vmatpush1.msra.mxu0 0.0
        %1587 = vmatprep.subr.mxu0 0.0
        %1588 = vmatpush1.msra.mxu0 0.0
        %1589 = vmatprep.subr.mxu0 0.0
        %1590 = vmatpush1.msra.mxu0 0.0
        %1591 = vmatprep.subr.mxu0 0.0
        %1592 = vmatpush1.msra.mxu0 0.0
        %1593 = vmatprep.subr.mxu0 0.0
        %1594 = vmatpush1.msra.mxu0 0.0
        %1595 = vmatprep.subr.mxu0 0.0
        %1596 = vmatpush1.msra.mxu0 0.0
        %1597 = vmatprep.subr.mxu0 0.0
        %1598 = vmatpush1.msra.mxu0 0.0
        %1599 = vmatprep.subr.mxu0 0.0
        %1600 = vmatpush1.msra.mxu0 0.0
        %1601 = vmatprep.subr.mxu0 0.0
        %1602 = vmatpush1.msra.mxu0 0.0
        %1603 = vmatprep.subr.mxu0 0.0
        %1604 = vmatpush1.msra.mxu0 0.0
        %1605 = vmatprep.subr.mxu0 0.0
        %1606 = vmatpush1.msra.mxu0 0.0
        %1607 = vmatprep.subr.mxu0 0.0
        %1608 = vmatpush1.msra.mxu0 0.0
        %1609 = vmatprep.subr.mxu0 0.0
        %1610 = vmatpush1.msra.mxu0 0.0
        %1611 = vmatprep.subr.mxu0 0.0
        %1612 = vmatpush1.msra.mxu0 %v1574
        %1613 = vmatprep.subr.mxu0 0.0
        %1614 = vmatpush1.msra.mxu0 %v1572
        %1615 = vmatprep.subr.mxu0 0.0
        %1616 = vmatpush2.msra.mxu0 0.0
        %1617 = vmatprep.subr.mxu0 0.0
        %1618 = vmatpush2.msra.mxu0 0.0
        %1619 = vmatprep.subr.mxu0 0.0
        %1620 = vmatpush2.msra.mxu0 0.0
        %1621 = vmatprep.subr.mxu0 0.0
        %1622 = vmatpush2.msra.mxu0 0.0
        %1623 = vmatprep.subr.mxu0 0.0
        %1624 = vmatpush2.msra.mxu0 0.0
        %1625 = vmatprep.subr.mxu0 0.0
        %1626 = vmatpush2.msra.mxu0 0.0
        %1627 = vmatprep.subr.mxu0 0.0
        %1628 = vmatpush2.msra.mxu0 0.0
        %1629 = vmatprep.subr.mxu0 0.0
        %1630 = vmatpush2.msra.mxu0 0.0
        %1631 = vmatprep.subr.mxu0 0.0
        %1632 = vmatpush2.msra.mxu0 0.0
        %1633 = vmatprep.subr.mxu0 0.0
        %1634 = vmatpush2.msra.mxu0 0.0
        %1635 = vmatprep.subr.mxu0 0.0
        %1636 = vmatpush2.msra.mxu0 0.0
        %1637 = vmatprep.subr.mxu0 0.0
        %1638 = vmatpush2.msra.mxu0 0.0
        %1639 = vmatprep.subr.mxu0 0.0
        %1640 = vmatpush2.msra.mxu0 0.0
        %1641 = vmatprep.subr.mxu0 0.0
        %1642 = vmatpush2.msra.mxu0 0.0
        %1643 = vmatprep.subr.mxu0 0.0
        %1644 = vmatpush2.msra.mxu0 0.0
        %1645 = vmatprep.subr.mxu0 0.0
        %1646 = vmatpush2.msra.mxu0 0.0
        %1647 = vmatprep.mubr.f32.mxu0 0.0
        %1648 = vmatmul.mubr.f32.gmra.mxu0 %v1578
        %v1649 = vpop.f32.mrf.mxu0
        %v1650 = vadd.f32 0.0, %v1649
        %v1651 = vpop.f32.mrf.mxu0
        %1652 = vmatprep.mubr.f32.mxu0 0.0
        %1653 = vmatmul.mubr.f32.gmra.mxu0 %v1581
        %v1654 = vpop.f32.mrf.mxu0
        %v1655 = vadd.f32 0.0, %v1654
        %v1656 = vpop.f32.mrf.mxu0
        %1657 = vdwg.mxu0
        %v1658 = vadd.f32 %v1449, %v1650
        %v1659 = vadd.f32 %v1450, %v1655
        %s1660 = scalar_lea.vmem %s1, 4
        %v1661 = vld [vmem:[%s1660] sm:$0x1]
        %v1663 = vlaneseq
        %v1664 = vshrl.u32 %v1663, 7
        %v1665 = vsub.s32 0, %v1664
        %v1666 = vrot.slane %v1661, %v1665
        %v1668 = vmul.f32 %v814, %v1666
        %v1669 = vmul.f32 %v815, %v1666
        %v1671 = vsel %vm769, %v1668, 0
        %v1674 = vsel %vm769, %v1669, 0
        %1676 = vmatprep.subr.mxu0 0.0
        %1677 = vmatpush1.xpose.msra.mxu0 0.0
        %1678 = vmatprep.subr.mxu0 0.0
        %1679 = vmatpush1.xpose.msra.mxu0 0.0
        %1680 = vmatprep.subr.mxu0 0.0
        %1681 = vmatpush1.xpose.msra.mxu0 0.0
        %1682 = vmatprep.subr.mxu0 0.0
        %1683 = vmatpush1.xpose.msra.mxu0 0.0
        %1684 = vmatprep.subr.mxu0 0.0
        %1685 = vmatpush1.xpose.msra.mxu0 0.0
        %1686 = vmatprep.subr.mxu0 0.0
        %1687 = vmatpush1.xpose.msra.mxu0 0.0
        %1688 = vmatprep.subr.mxu0 0.0
        %1689 = vmatpush1.xpose.msra.mxu0 0.0
        %1690 = vmatprep.subr.mxu0 0.0
        %1691 = vmatpush1.xpose.msra.mxu0 0.0
        %1692 = vmatprep.subr.mxu0 0.0
        %1693 = vmatpush1.xpose.msra.mxu0 0.0
        %1694 = vmatprep.subr.mxu0 0.0
        %1695 = vmatpush1.xpose.msra.mxu0 0.0
        %1696 = vmatprep.subr.mxu0 0.0
        %1697 = vmatpush1.xpose.msra.mxu0 0.0
        %1698 = vmatprep.subr.mxu0 0.0
        %1699 = vmatpush1.xpose.msra.mxu0 0.0
        %1700 = vmatprep.subr.mxu0 0.0
        %1701 = vmatpush1.xpose.msra.mxu0 0.0
        %1702 = vmatprep.subr.mxu0 0.0
        %1703 = vmatpush1.xpose.msra.mxu0 0.0
        %1704 = vmatprep.subr.mxu0 0.0
        %1705 = vmatpush1.xpose.msra.mxu0 %v841
        %1706 = vmatprep.subr.mxu0 0.0
        %1707 = vmatpush1.xpose.msra.mxu0 %v839
        %1708 = vmatprep.subr.mxu0 0.0
        %1709 = vmatpush2.xpose.msra.mxu0 0.0
        %1710 = vmatprep.subr.mxu0 0.0
        %1711 = vmatpush2.xpose.msra.mxu0 0.0
        %1712 = vmatprep.subr.mxu0 0.0
        %1713 = vmatpush2.xpose.msra.mxu0 0.0
        %1714 = vmatprep.subr.mxu0 0.0
        %1715 = vmatpush2.xpose.msra.mxu0 0.0
        %1716 = vmatprep.subr.mxu0 0.0
        %1717 = vmatpush2.xpose.msra.mxu0 0.0
        %1718 = vmatprep.subr.mxu0 0.0
        %1719 = vmatpush2.xpose.msra.mxu0 0.0
        %1720 = vmatprep.subr.mxu0 0.0
        %1721 = vmatpush2.xpose.msra.mxu0 0.0
        %1722 = vmatprep.subr.mxu0 0.0
        %1723 = vmatpush2.xpose.msra.mxu0 0.0
        %1724 = vmatprep.subr.mxu0 0.0
        %1725 = vmatpush2.xpose.msra.mxu0 0.0
        %1726 = vmatprep.subr.mxu0 0.0
        %1727 = vmatpush2.xpose.msra.mxu0 0.0
        %1728 = vmatprep.subr.mxu0 0.0
        %1729 = vmatpush2.xpose.msra.mxu0 0.0
        %1730 = vmatprep.subr.mxu0 0.0
        %1731 = vmatpush2.xpose.msra.mxu0 0.0
        %1732 = vmatprep.subr.mxu0 0.0
        %1733 = vmatpush2.xpose.msra.mxu0 0.0
        %1734 = vmatprep.subr.mxu0 0.0
        %1735 = vmatpush2.xpose.msra.mxu0 0.0
        %1736 = vmatprep.subr.mxu0 0.0
        %1737 = vmatpush2.xpose.msra.mxu0 0.0
        %1738 = vmatprep.subr.mxu0 0.0
        %1739 = vmatpush2.xpose.msra.mxu0 0.0
        %1740 = vmatprep.mubr.f32.mxu0 0.0
        %1741 = vmatmul.mubr.f32.gmra.mxu0 %v1671
        %v1742 = vpop.f32.mrf.mxu0
        %v1743 = vadd.f32 %v816, %v1742
        %v1744 = vpop.f32.mrf.mxu0
        %1745 = vmatprep.mubr.f32.mxu0 0.0
        %1746 = vmatmul.mubr.f32.gmra.mxu0 %v1674
        %v1747 = vpop.f32.mrf.mxu0
        %v1748 = vadd.f32 %v817, %v1747
        %v1749 = vpop.f32.mrf.mxu0
        %1750 = vdwg.mxu0
        %v1751 = vsel %vm918, %v1743, -inf
        %1752 = vmax.xlane.f32.xlu0 %v1751
        %v1753 = vpop.xlane.xlu0 %1752
        %v1754 = vsel %vm918, %v1748, -inf
        %1755 = vmax.xlane.f32.xlu0 %v1754
        %v1756 = vpop.xlane.xlu0 %1755
        %v1757 = vsub.f32 %v1743, %v1753
        %v1758 = vsub.f32 %v1748, %v1756
        %v1759 = vmul.f32 %v1757, 1.442695
        %v1760 = vpow.pop %v1759
        %v1761 = vmul.f32 %v1758, 1.442695
        %v1762 = vpow.pop %v1761
        %v1763 = vsel %vm918, %v1760, 0.0
        %1764 = vadd.xlane.f32.xlu0 %v1763
        %v1765 = vpop.xlane.xlu0 %1764
        %v1766 = vsel %vm918, %v1762, 0.0
        %1767 = vadd.xlane.f32.xlu0 %v1766
        %v1768 = vpop.xlane.xlu0 %1767
        %v1769 = vrcp.pop %v1765
        %v1770 = vmul.f32 %v1760, %v1769
        %v1771 = vrcp.pop %v1768
        %v1772 = vmul.f32 %v1762, %v1771
        %1773 = vrot.lane.b32.xlu0 %v1666, 64
        %v1774 = vpop.permute.xlu0 %1773
        %v1776 = vmul.f32 %v808, %v1774
        %v1777 = vmul.f32 %v811, %v1774
        %1780 = vrot.lane.b32.xlu0 %v1776, 64
        %v1781 = vpop.permute.xlu0 %1780
        %1782 = vrot.lane.b32.xlu0 %v1777, 64
        %v1783 = vpop.permute.xlu0 %1782
        %v1787 = vsel %vm918, %v1770, 0
        %v1790 = vsel %vm918, %v1772, 0
        %1792 = vmatprep.subr.mxu0 0.0
        %1793 = vmatpush1.msra.mxu0 0.0
        %1794 = vmatprep.subr.mxu0 0.0
        %1795 = vmatpush1.msra.mxu0 0.0
        %1796 = vmatprep.subr.mxu0 0.0
        %1797 = vmatpush1.msra.mxu0 0.0
        %1798 = vmatprep.subr.mxu0 0.0
        %1799 = vmatpush1.msra.mxu0 0.0
        %1800 = vmatprep.subr.mxu0 0.0
        %1801 = vmatpush1.msra.mxu0 0.0
        %1802 = vmatprep.subr.mxu0 0.0
        %1803 = vmatpush1.msra.mxu0 0.0
        %1804 = vmatprep.subr.mxu0 0.0
        %1805 = vmatpush1.msra.mxu0 0.0
        %1806 = vmatprep.subr.mxu0 0.0
        %1807 = vmatpush1.msra.mxu0 0.0
        %1808 = vmatprep.subr.mxu0 0.0
        %1809 = vmatpush1.msra.mxu0 0.0
        %1810 = vmatprep.subr.mxu0 0.0
        %1811 = vmatpush1.msra.mxu0 0.0
        %1812 = vmatprep.subr.mxu0 0.0
        %1813 = vmatpush1.msra.mxu0 0.0
        %1814 = vmatprep.subr.mxu0 0.0
        %1815 = vmatpush1.msra.mxu0 0.0
        %1816 = vmatprep.subr.mxu0 0.0
        %1817 = vmatpush1.msra.mxu0 0.0
        %1818 = vmatprep.subr.mxu0 0.0
        %1819 = vmatpush1.msra.mxu0 0.0
        %1820 = vmatprep.subr.mxu0 0.0
        %1821 = vmatpush1.msra.mxu0 %v1783
        %1822 = vmatprep.subr.mxu0 0.0
        %1823 = vmatpush1.msra.mxu0 %v1781
        %1824 = vmatprep.subr.mxu0 0.0
        %1825 = vmatpush2.msra.mxu0 0.0
        %1826 = vmatprep.subr.mxu0 0.0
        %1827 = vmatpush2.msra.mxu0 0.0
        %1828 = vmatprep.subr.mxu0 0.0
        %1829 = vmatpush2.msra.mxu0 0.0
        %1830 = vmatprep.subr.mxu0 0.0
        %1831 = vmatpush2.msra.mxu0 0.0
        %1832 = vmatprep.subr.mxu0 0.0
        %1833 = vmatpush2.msra.mxu0 0.0
        %1834 = vmatprep.subr.mxu0 0.0
        %1835 = vmatpush2.msra.mxu0 0.0
        %1836 = vmatprep.subr.mxu0 0.0
        %1837 = vmatpush2.msra.mxu0 0.0
        %1838 = vmatprep.subr.mxu0 0.0
        %1839 = vmatpush2.msra.mxu0 0.0
        %1840 = vmatprep.subr.mxu0 0.0
        %1841 = vmatpush2.msra.mxu0 0.0
        %1842 = vmatprep.subr.mxu0 0.0
        %1843 = vmatpush2.msra.mxu0 0.0
        %1844 = vmatprep.subr.mxu0 0.0
        %1845 = vmatpush2.msra.mxu0 0.0
        %1846 = vmatprep.subr.mxu0 0.0
        %1847 = vmatpush2.msra.mxu0 0.0
        %1848 = vmatprep.subr.mxu0 0.0
        %1849 = vmatpush2.msra.mxu0 0.0
        %1850 = vmatprep.subr.mxu0 0.0
        %1851 = vmatpush2.msra.mxu0 0.0
        %1852 = vmatprep.subr.mxu0 0.0
        %1853 = vmatpush2.msra.mxu0 0.0
        %1854 = vmatprep.subr.mxu0 0.0
        %1855 = vmatpush2.msra.mxu0 0.0
        %1856 = vmatprep.mubr.f32.mxu0 0.0
        %1857 = vmatmul.mubr.f32.gmra.mxu0 %v1787
        %v1858 = vpop.f32.mrf.mxu0
        %v1859 = vadd.f32 0.0, %v1858
        %v1860 = vpop.f32.mrf.mxu0
        %1861 = vmatprep.mubr.f32.mxu0 0.0
        %1862 = vmatmul.mubr.f32.gmra.mxu0 %v1790
        %v1863 = vpop.f32.mrf.mxu0
        %v1864 = vadd.f32 0.0, %v1863
        %v1865 = vpop.f32.mrf.mxu0
        %1866 = vdwg.mxu0
        %v1867 = vadd.f32 %v1658, %v1859
        %v1868 = vadd.f32 %v1659, %v1864
        %s1869 = scalar_lea.vmem %s1, 5
        %v1870 = vld [vmem:[%s1869] sm:$0x1]
        %v1872 = vlaneseq
        %v1873 = vshrl.u32 %v1872, 7
        %v1874 = vsub.s32 0, %v1873
        %v1875 = vrot.slane %v1870, %v1874
        %v1877 = vmul.f32 %v814, %v1875
        %v1878 = vmul.f32 %v815, %v1875
        %v1880 = vsel %vm769, %v1877, 0
        %v1883 = vsel %vm769, %v1878, 0
        %1885 = vmatprep.subr.mxu0 0.0
        %1886 = vmatpush1.xpose.msra.mxu0 0.0
        %1887 = vmatprep.subr.mxu0 0.0
        %1888 = vmatpush1.xpose.msra.mxu0 0.0
        %1889 = vmatprep.subr.mxu0 0.0
        %1890 = vmatpush1.xpose.msra.mxu0 0.0
        %1891 = vmatprep.subr.mxu0 0.0
        %1892 = vmatpush1.xpose.msra.mxu0 0.0
        %1893 = vmatprep.subr.mxu0 0.0
        %1894 = vmatpush1.xpose.msra.mxu0 0.0
        %1895 = vmatprep.subr.mxu0 0.0
        %1896 = vmatpush1.xpose.msra.mxu0 0.0
        %1897 = vmatprep.subr.mxu0 0.0
        %1898 = vmatpush1.xpose.msra.mxu0 0.0
        %1899 = vmatprep.subr.mxu0 0.0
        %1900 = vmatpush1.xpose.msra.mxu0 0.0
        %1901 = vmatprep.subr.mxu0 0.0
        %1902 = vmatpush1.xpose.msra.mxu0 0.0
        %1903 = vmatprep.subr.mxu0 0.0
        %1904 = vmatpush1.xpose.msra.mxu0 0.0
        %1905 = vmatprep.subr.mxu0 0.0
        %1906 = vmatpush1.xpose.msra.mxu0 0.0
        %1907 = vmatprep.subr.mxu0 0.0
        %1908 = vmatpush1.xpose.msra.mxu0 0.0
        %1909 = vmatprep.subr.mxu0 0.0
        %1910 = vmatpush1.xpose.msra.mxu0 0.0
        %1911 = vmatprep.subr.mxu0 0.0
        %1912 = vmatpush1.xpose.msra.mxu0 0.0
        %1913 = vmatprep.subr.mxu0 0.0
        %1914 = vmatpush1.xpose.msra.mxu0 %v841
        %1915 = vmatprep.subr.mxu0 0.0
        %1916 = vmatpush1.xpose.msra.mxu0 %v839
        %1917 = vmatprep.subr.mxu0 0.0
        %1918 = vmatpush2.xpose.msra.mxu0 0.0
        %1919 = vmatprep.subr.mxu0 0.0
        %1920 = vmatpush2.xpose.msra.mxu0 0.0
        %1921 = vmatprep.subr.mxu0 0.0
        %1922 = vmatpush2.xpose.msra.mxu0 0.0
        %1923 = vmatprep.subr.mxu0 0.0
        %1924 = vmatpush2.xpose.msra.mxu0 0.0
        %1925 = vmatprep.subr.mxu0 0.0
        %1926 = vmatpush2.xpose.msra.mxu0 0.0
        %1927 = vmatprep.subr.mxu0 0.0
        %1928 = vmatpush2.xpose.msra.mxu0 0.0
        %1929 = vmatprep.subr.mxu0 0.0
        %1930 = vmatpush2.xpose.msra.mxu0 0.0
        %1931 = vmatprep.subr.mxu0 0.0
        %1932 = vmatpush2.xpose.msra.mxu0 0.0
        %1933 = vmatprep.subr.mxu0 0.0
        %1934 = vmatpush2.xpose.msra.mxu0 0.0
        %1935 = vmatprep.subr.mxu0 0.0
        %1936 = vmatpush2.xpose.msra.mxu0 0.0
        %1937 = vmatprep.subr.mxu0 0.0
        %1938 = vmatpush2.xpose.msra.mxu0 0.0
        %1939 = vmatprep.subr.mxu0 0.0
        %1940 = vmatpush2.xpose.msra.mxu0 0.0
        %1941 = vmatprep.subr.mxu0 0.0
        %1942 = vmatpush2.xpose.msra.mxu0 0.0
        %1943 = vmatprep.subr.mxu0 0.0
        %1944 = vmatpush2.xpose.msra.mxu0 0.0
        %1945 = vmatprep.subr.mxu0 0.0
        %1946 = vmatpush2.xpose.msra.mxu0 0.0
        %1947 = vmatprep.subr.mxu0 0.0
        %1948 = vmatpush2.xpose.msra.mxu0 0.0
        %1949 = vmatprep.mubr.f32.mxu0 0.0
        %1950 = vmatmul.mubr.f32.gmra.mxu0 %v1880
        %v1951 = vpop.f32.mrf.mxu0
        %v1952 = vadd.f32 %v816, %v1951
        %v1953 = vpop.f32.mrf.mxu0
        %1954 = vmatprep.mubr.f32.mxu0 0.0
        %1955 = vmatmul.mubr.f32.gmra.mxu0 %v1883
        %v1956 = vpop.f32.mrf.mxu0
        %v1957 = vadd.f32 %v817, %v1956
        %v1958 = vpop.f32.mrf.mxu0
        %1959 = vdwg.mxu0
        %v1960 = vsel %vm918, %v1952, -inf
        %1961 = vmax.xlane.f32.xlu0 %v1960
        %v1962 = vpop.xlane.xlu0 %1961
        %v1963 = vsel %vm918, %v1957, -inf
        %1964 = vmax.xlane.f32.xlu0 %v1963
        %v1965 = vpop.xlane.xlu0 %1964
        %v1966 = vsub.f32 %v1952, %v1962
        %v1967 = vsub.f32 %v1957, %v1965
        %v1968 = vmul.f32 %v1966, 1.442695
        %v1969 = vpow.pop %v1968
        %v1970 = vmul.f32 %v1967, 1.442695
        %v1971 = vpow.pop %v1970
        %v1972 = vsel %vm918, %v1969, 0.0
        %1973 = vadd.xlane.f32.xlu0 %v1972
        %v1974 = vpop.xlane.xlu0 %1973
        %v1975 = vsel %vm918, %v1971, 0.0
        %1976 = vadd.xlane.f32.xlu0 %v1975
        %v1977 = vpop.xlane.xlu0 %1976
        %v1978 = vrcp.pop %v1974
        %v1979 = vmul.f32 %v1969, %v1978
        %v1980 = vrcp.pop %v1977
        %v1981 = vmul.f32 %v1971, %v1980
        %1982 = vrot.lane.b32.xlu0 %v1875, 64
        %v1983 = vpop.permute.xlu0 %1982
        %v1985 = vmul.f32 %v808, %v1983
        %v1986 = vmul.f32 %v811, %v1983
        %1989 = vrot.lane.b32.xlu0 %v1985, 64
        %v1990 = vpop.permute.xlu0 %1989
        %1991 = vrot.lane.b32.xlu0 %v1986, 64
        %v1992 = vpop.permute.xlu0 %1991
        %v1996 = vsel %vm918, %v1979, 0
        %v1999 = vsel %vm918, %v1981, 0
        %2001 = vmatprep.subr.mxu0 0.0
        %2002 = vmatpush1.msra.mxu0 0.0
        %2003 = vmatprep.subr.mxu0 0.0
        %2004 = vmatpush1.msra.mxu0 0.0
        %2005 = vmatprep.subr.mxu0 0.0
        %2006 = vmatpush1.msra.mxu0 0.0
        %2007 = vmatprep.subr.mxu0 0.0
        %2008 = vmatpush1.msra.mxu0 0.0
        %2009 = vmatprep.subr.mxu0 0.0
        %2010 = vmatpush1.msra.mxu0 0.0
        %2011 = vmatprep.subr.mxu0 0.0
        %2012 = vmatpush1.msra.mxu0 0.0
        %2013 = vmatprep.subr.mxu0 0.0
        %2014 = vmatpush1.msra.mxu0 0.0
        %2015 = vmatprep.subr.mxu0 0.0
        %2016 = vmatpush1.msra.mxu0 0.0
        %2017 = vmatprep.subr.mxu0 0.0
        %2018 = vmatpush1.msra.mxu0 0.0
        %2019 = vmatprep.subr.mxu0 0.0
        %2020 = vmatpush1.msra.mxu0 0.0
        %2021 = vmatprep.subr.mxu0 0.0
        %2022 = vmatpush1.msra.mxu0 0.0
        %2023 = vmatprep.subr.mxu0 0.0
        %2024 = vmatpush1.msra.mxu0 0.0
        %2025 = vmatprep.subr.mxu0 0.0
        %2026 = vmatpush1.msra.mxu0 0.0
        %2027 = vmatprep.subr.mxu0 0.0
        %2028 = vmatpush1.msra.mxu0 0.0
        %2029 = vmatprep.subr.mxu0 0.0
        %2030 = vmatpush1.msra.mxu0 %v1992
        %2031 = vmatprep.subr.mxu0 0.0
        %2032 = vmatpush1.msra.mxu0 %v1990
        %2033 = vmatprep.subr.mxu0 0.0
        %2034 = vmatpush2.msra.mxu0 0.0
        %2035 = vmatprep.subr.mxu0 0.0
        %2036 = vmatpush2.msra.mxu0 0.0
        %2037 = vmatprep.subr.mxu0 0.0
        %2038 = vmatpush2.msra.mxu0 0.0
        %2039 = vmatprep.subr.mxu0 0.0
        %2040 = vmatpush2.msra.mxu0 0.0
        %2041 = vmatprep.subr.mxu0 0.0
        %2042 = vmatpush2.msra.mxu0 0.0
        %2043 = vmatprep.subr.mxu0 0.0
        %2044 = vmatpush2.msra.mxu0 0.0
        %2045 = vmatprep.subr.mxu0 0.0
        %2046 = vmatpush2.msra.mxu0 0.0
        %2047 = vmatprep.subr.mxu0 0.0
        %2048 = vmatpush2.msra.mxu0 0.0
        %2049 = vmatprep.subr.mxu0 0.0
        %2050 = vmatpush2.msra.mxu0 0.0
        %2051 = vmatprep.subr.mxu0 0.0
        %2052 = vmatpush2.msra.mxu0 0.0
        %2053 = vmatprep.subr.mxu0 0.0
        %2054 = vmatpush2.msra.mxu0 0.0
        %2055 = vmatprep.subr.mxu0 0.0
        %2056 = vmatpush2.msra.mxu0 0.0
        %2057 = vmatprep.subr.mxu0 0.0
        %2058 = vmatpush2.msra.mxu0 0.0
        %2059 = vmatprep.subr.mxu0 0.0
        %2060 = vmatpush2.msra.mxu0 0.0
        %2061 = vmatprep.subr.mxu0 0.0
        %2062 = vmatpush2.msra.mxu0 0.0
        %2063 = vmatprep.subr.mxu0 0.0
        %2064 = vmatpush2.msra.mxu0 0.0
        %2065 = vmatprep.mubr.f32.mxu0 0.0
        %2066 = vmatmul.mubr.f32.gmra.mxu0 %v1996
        %v2067 = vpop.f32.mrf.mxu0
        %v2068 = vadd.f32 0.0, %v2067
        %v2069 = vpop.f32.mrf.mxu0
        %2070 = vmatprep.mubr.f32.mxu0 0.0
        %2071 = vmatmul.mubr.f32.gmra.mxu0 %v1999
        %v2072 = vpop.f32.mrf.mxu0
        %v2073 = vadd.f32 0.0, %v2072
        %v2074 = vpop.f32.mrf.mxu0
        %2075 = vdwg.mxu0
        %v2076 = vadd.f32 %v1867, %v2068
        %v2077 = vadd.f32 %v1868, %v2073
        %s2078 = scalar_lea.vmem %s1, 6
        %v2079 = vld [vmem:[%s2078] sm:$0x1]
        %v2081 = vlaneseq
        %v2082 = vshrl.u32 %v2081, 7
        %v2083 = vsub.s32 0, %v2082
        %v2084 = vrot.slane %v2079, %v2083
        %v2086 = vmul.f32 %v814, %v2084
        %v2087 = vmul.f32 %v815, %v2084
        %v2089 = vsel %vm769, %v2086, 0
        %v2092 = vsel %vm769, %v2087, 0
        %2094 = vmatprep.subr.mxu0 0.0
        %2095 = vmatpush1.xpose.msra.mxu0 0.0
        %2096 = vmatprep.subr.mxu0 0.0
        %2097 = vmatpush1.xpose.msra.mxu0 0.0
        %2098 = vmatprep.subr.mxu0 0.0
        %2099 = vmatpush1.xpose.msra.mxu0 0.0
        %2100 = vmatprep.subr.mxu0 0.0
        %2101 = vmatpush1.xpose.msra.mxu0 0.0
        %2102 = vmatprep.subr.mxu0 0.0
        %2103 = vmatpush1.xpose.msra.mxu0 0.0
        %2104 = vmatprep.subr.mxu0 0.0
        %2105 = vmatpush1.xpose.msra.mxu0 0.0
        %2106 = vmatprep.subr.mxu0 0.0
        %2107 = vmatpush1.xpose.msra.mxu0 0.0
        %2108 = vmatprep.subr.mxu0 0.0
        %2109 = vmatpush1.xpose.msra.mxu0 0.0
        %2110 = vmatprep.subr.mxu0 0.0
        %2111 = vmatpush1.xpose.msra.mxu0 0.0
        %2112 = vmatprep.subr.mxu0 0.0
        %2113 = vmatpush1.xpose.msra.mxu0 0.0
        %2114 = vmatprep.subr.mxu0 0.0
        %2115 = vmatpush1.xpose.msra.mxu0 0.0
        %2116 = vmatprep.subr.mxu0 0.0
        %2117 = vmatpush1.xpose.msra.mxu0 0.0
        %2118 = vmatprep.subr.mxu0 0.0
        %2119 = vmatpush1.xpose.msra.mxu0 0.0
        %2120 = vmatprep.subr.mxu0 0.0
        %2121 = vmatpush1.xpose.msra.mxu0 0.0
        %2122 = vmatprep.subr.mxu0 0.0
        %2123 = vmatpush1.xpose.msra.mxu0 %v841
        %2124 = vmatprep.subr.mxu0 0.0
        %2125 = vmatpush1.xpose.msra.mxu0 %v839
        %2126 = vmatprep.subr.mxu0 0.0
        %2127 = vmatpush2.xpose.msra.mxu0 0.0
        %2128 = vmatprep.subr.mxu0 0.0
        %2129 = vmatpush2.xpose.msra.mxu0 0.0
        %2130 = vmatprep.subr.mxu0 0.0
        %2131 = vmatpush2.xpose.msra.mxu0 0.0
        %2132 = vmatprep.subr.mxu0 0.0
        %2133 = vmatpush2.xpose.msra.mxu0 0.0
        %2134 = vmatprep.subr.mxu0 0.0
        %2135 = vmatpush2.xpose.msra.mxu0 0.0
        %2136 = vmatprep.subr.mxu0 0.0
        %2137 = vmatpush2.xpose.msra.mxu0 0.0
        %2138 = vmatprep.subr.mxu0 0.0
        %2139 = vmatpush2.xpose.msra.mxu0 0.0
        %2140 = vmatprep.subr.mxu0 0.0
        %2141 = vmatpush2.xpose.msra.mxu0 0.0
        %2142 = vmatprep.subr.mxu0 0.0
        %2143 = vmatpush2.xpose.msra.mxu0 0.0
        %2144 = vmatprep.subr.mxu0 0.0
        %2145 = vmatpush2.xpose.msra.mxu0 0.0
        %2146 = vmatprep.subr.mxu0 0.0
        %2147 = vmatpush2.xpose.msra.mxu0 0.0
        %2148 = vmatprep.subr.mxu0 0.0
        %2149 = vmatpush2.xpose.msra.mxu0 0.0
        %2150 = vmatprep.subr.mxu0 0.0
        %2151 = vmatpush2.xpose.msra.mxu0 0.0
        %2152 = vmatprep.subr.mxu0 0.0
        %2153 = vmatpush2.xpose.msra.mxu0 0.0
        %2154 = vmatprep.subr.mxu0 0.0
        %2155 = vmatpush2.xpose.msra.mxu0 0.0
        %2156 = vmatprep.subr.mxu0 0.0
        %2157 = vmatpush2.xpose.msra.mxu0 0.0
        %2158 = vmatprep.mubr.f32.mxu0 0.0
        %2159 = vmatmul.mubr.f32.gmra.mxu0 %v2089
        %v2160 = vpop.f32.mrf.mxu0
        %v2161 = vadd.f32 %v816, %v2160
        %v2162 = vpop.f32.mrf.mxu0
        %2163 = vmatprep.mubr.f32.mxu0 0.0
        %2164 = vmatmul.mubr.f32.gmra.mxu0 %v2092
        %v2165 = vpop.f32.mrf.mxu0
        %v2166 = vadd.f32 %v817, %v2165
        %v2167 = vpop.f32.mrf.mxu0
        %2168 = vdwg.mxu0
        %v2169 = vsel %vm918, %v2161, -inf
        %2170 = vmax.xlane.f32.xlu0 %v2169
        %v2171 = vpop.xlane.xlu0 %2170
        %v2172 = vsel %vm918, %v2166, -inf
        %2173 = vmax.xlane.f32.xlu0 %v2172
        %v2174 = vpop.xlane.xlu0 %2173
        %v2175 = vsub.f32 %v2161, %v2171
        %v2176 = vsub.f32 %v2166, %v2174
        %v2177 = vmul.f32 %v2175, 1.442695
        %v2178 = vpow.pop %v2177
        %v2179 = vmul.f32 %v2176, 1.442695
        %v2180 = vpow.pop %v2179
        %v2181 = vsel %vm918, %v2178, 0.0
        %2182 = vadd.xlane.f32.xlu0 %v2181
        %v2183 = vpop.xlane.xlu0 %2182
        %v2184 = vsel %vm918, %v2180, 0.0
        %2185 = vadd.xlane.f32.xlu0 %v2184
        %v2186 = vpop.xlane.xlu0 %2185
        %v2187 = vrcp.pop %v2183
        %v2188 = vmul.f32 %v2178, %v2187
        %v2189 = vrcp.pop %v2186
        %v2190 = vmul.f32 %v2180, %v2189
        %2191 = vrot.lane.b32.xlu0 %v2084, 64
        %v2192 = vpop.permute.xlu0 %2191
        %v2194 = vmul.f32 %v808, %v2192
        %v2195 = vmul.f32 %v811, %v2192
        %2198 = vrot.lane.b32.xlu0 %v2194, 64
        %v2199 = vpop.permute.xlu0 %2198
        %2200 = vrot.lane.b32.xlu0 %v2195, 64
        %v2201 = vpop.permute.xlu0 %2200
        %v2205 = vsel %vm918, %v2188, 0
        %v2208 = vsel %vm918, %v2190, 0
        %2210 = vmatprep.subr.mxu0 0.0
        %2211 = vmatpush1.msra.mxu0 0.0
        %2212 = vmatprep.subr.mxu0 0.0
        %2213 = vmatpush1.msra.mxu0 0.0
        %2214 = vmatprep.subr.mxu0 0.0
        %2215 = vmatpush1.msra.mxu0 0.0
        %2216 = vmatprep.subr.mxu0 0.0
        %2217 = vmatpush1.msra.mxu0 0.0
        %2218 = vmatprep.subr.mxu0 0.0
        %2219 = vmatpush1.msra.mxu0 0.0
        %2220 = vmatprep.subr.mxu0 0.0
        %2221 = vmatpush1.msra.mxu0 0.0
        %2222 = vmatprep.subr.mxu0 0.0
        %2223 = vmatpush1.msra.mxu0 0.0
        %2224 = vmatprep.subr.mxu0 0.0
        %2225 = vmatpush1.msra.mxu0 0.0
        %2226 = vmatprep.subr.mxu0 0.0
        %2227 = vmatpush1.msra.mxu0 0.0
        %2228 = vmatprep.subr.mxu0 0.0
        %2229 = vmatpush1.msra.mxu0 0.0
        %2230 = vmatprep.subr.mxu0 0.0
        %2231 = vmatpush1.msra.mxu0 0.0
        %2232 = vmatprep.subr.mxu0 0.0
        %2233 = vmatpush1.msra.mxu0 0.0
        %2234 = vmatprep.subr.mxu0 0.0
        %2235 = vmatpush1.msra.mxu0 0.0
        %2236 = vmatprep.subr.mxu0 0.0
        %2237 = vmatpush1.msra.mxu0 0.0
        %2238 = vmatprep.subr.mxu0 0.0
        %2239 = vmatpush1.msra.mxu0 %v2201
        %2240 = vmatprep.subr.mxu0 0.0
        %2241 = vmatpush1.msra.mxu0 %v2199
        %2242 = vmatprep.subr.mxu0 0.0
        %2243 = vmatpush2.msra.mxu0 0.0
        %2244 = vmatprep.subr.mxu0 0.0
        %2245 = vmatpush2.msra.mxu0 0.0
        %2246 = vmatprep.subr.mxu0 0.0
        %2247 = vmatpush2.msra.mxu0 0.0
        %2248 = vmatprep.subr.mxu0 0.0
        %2249 = vmatpush2.msra.mxu0 0.0
        %2250 = vmatprep.subr.mxu0 0.0
        %2251 = vmatpush2.msra.mxu0 0.0
        %2252 = vmatprep.subr.mxu0 0.0
        %2253 = vmatpush2.msra.mxu0 0.0
        %2254 = vmatprep.subr.mxu0 0.0
        %2255 = vmatpush2.msra.mxu0 0.0
        %2256 = vmatprep.subr.mxu0 0.0
        %2257 = vmatpush2.msra.mxu0 0.0
        %2258 = vmatprep.subr.mxu0 0.0
        %2259 = vmatpush2.msra.mxu0 0.0
        %2260 = vmatprep.subr.mxu0 0.0
        %2261 = vmatpush2.msra.mxu0 0.0
        %2262 = vmatprep.subr.mxu0 0.0
        %2263 = vmatpush2.msra.mxu0 0.0
        %2264 = vmatprep.subr.mxu0 0.0
        %2265 = vmatpush2.msra.mxu0 0.0
        %2266 = vmatprep.subr.mxu0 0.0
        %2267 = vmatpush2.msra.mxu0 0.0
        %2268 = vmatprep.subr.mxu0 0.0
        %2269 = vmatpush2.msra.mxu0 0.0
        %2270 = vmatprep.subr.mxu0 0.0
        %2271 = vmatpush2.msra.mxu0 0.0
        %2272 = vmatprep.subr.mxu0 0.0
        %2273 = vmatpush2.msra.mxu0 0.0
        %2274 = vmatprep.mubr.f32.mxu0 0.0
        %2275 = vmatmul.mubr.f32.gmra.mxu0 %v2205
        %v2276 = vpop.f32.mrf.mxu0
        %v2277 = vadd.f32 0.0, %v2276
        %v2278 = vpop.f32.mrf.mxu0
        %2279 = vmatprep.mubr.f32.mxu0 0.0
        %2280 = vmatmul.mubr.f32.gmra.mxu0 %v2208
        %v2281 = vpop.f32.mrf.mxu0
        %v2282 = vadd.f32 0.0, %v2281
        %v2283 = vpop.f32.mrf.mxu0
        %2284 = vdwg.mxu0
        %v2285 = vadd.f32 %v2076, %v2277
        %v2286 = vadd.f32 %v2077, %v2282
        %s2287 = scalar_lea.vmem %s1, 7
        %v2288 = vld [vmem:[%s2287] sm:$0x1]
        %v2290 = vlaneseq
        %v2291 = vshrl.u32 %v2290, 7
        %v2292 = vsub.s32 0, %v2291
        %v2293 = vrot.slane %v2288, %v2292
        %v2295 = vmul.f32 %v814, %v2293
        %v2296 = vmul.f32 %v815, %v2293
        %v2298 = vsel %vm769, %v2295, 0
        %v2301 = vsel %vm769, %v2296, 0
        %2303 = vmatprep.subr.mxu0 0.0
        %2304 = vmatpush1.xpose.msra.mxu0 0.0
        %2305 = vmatprep.subr.mxu0 0.0
        %2306 = vmatpush1.xpose.msra.mxu0 0.0
        %2307 = vmatprep.subr.mxu0 0.0
        %2308 = vmatpush1.xpose.msra.mxu0 0.0
        %2309 = vmatprep.subr.mxu0 0.0
        %2310 = vmatpush1.xpose.msra.mxu0 0.0
        %2311 = vmatprep.subr.mxu0 0.0
        %2312 = vmatpush1.xpose.msra.mxu0 0.0
        %2313 = vmatprep.subr.mxu0 0.0
        %2314 = vmatpush1.xpose.msra.mxu0 0.0
        %2315 = vmatprep.subr.mxu0 0.0
        %2316 = vmatpush1.xpose.msra.mxu0 0.0
        %2317 = vmatprep.subr.mxu0 0.0
        %2318 = vmatpush1.xpose.msra.mxu0 0.0
        %2319 = vmatprep.subr.mxu0 0.0
        %2320 = vmatpush1.xpose.msra.mxu0 0.0
        %2321 = vmatprep.subr.mxu0 0.0
        %2322 = vmatpush1.xpose.msra.mxu0 0.0
        %2323 = vmatprep.subr.mxu0 0.0
        %2324 = vmatpush1.xpose.msra.mxu0 0.0
        %2325 = vmatprep.subr.mxu0 0.0
        %2326 = vmatpush1.xpose.msra.mxu0 0.0
        %2327 = vmatprep.subr.mxu0 0.0
        %2328 = vmatpush1.xpose.msra.mxu0 0.0
        %2329 = vmatprep.subr.mxu0 0.0
        %2330 = vmatpush1.xpose.msra.mxu0 0.0
        %2331 = vmatprep.subr.mxu0 0.0
        %2332 = vmatpush1.xpose.msra.mxu0 %v841
        %2333 = vmatprep.subr.mxu0 0.0
        %2334 = vmatpush1.xpose.msra.mxu0 %v839
        %2335 = vmatprep.subr.mxu0 0.0
        %2336 = vmatpush2.xpose.msra.mxu0 0.0
        %2337 = vmatprep.subr.mxu0 0.0
        %2338 = vmatpush2.xpose.msra.mxu0 0.0
        %2339 = vmatprep.subr.mxu0 0.0
        %2340 = vmatpush2.xpose.msra.mxu0 0.0
        %2341 = vmatprep.subr.mxu0 0.0
        %2342 = vmatpush2.xpose.msra.mxu0 0.0
        %2343 = vmatprep.subr.mxu0 0.0
        %2344 = vmatpush2.xpose.msra.mxu0 0.0
        %2345 = vmatprep.subr.mxu0 0.0
        %2346 = vmatpush2.xpose.msra.mxu0 0.0
        %2347 = vmatprep.subr.mxu0 0.0
        %2348 = vmatpush2.xpose.msra.mxu0 0.0
        %2349 = vmatprep.subr.mxu0 0.0
        %2350 = vmatpush2.xpose.msra.mxu0 0.0
        %2351 = vmatprep.subr.mxu0 0.0
        %2352 = vmatpush2.xpose.msra.mxu0 0.0
        %2353 = vmatprep.subr.mxu0 0.0
        %2354 = vmatpush2.xpose.msra.mxu0 0.0
        %2355 = vmatprep.subr.mxu0 0.0
        %2356 = vmatpush2.xpose.msra.mxu0 0.0
        %2357 = vmatprep.subr.mxu0 0.0
        %2358 = vmatpush2.xpose.msra.mxu0 0.0
        %2359 = vmatprep.subr.mxu0 0.0
        %2360 = vmatpush2.xpose.msra.mxu0 0.0
        %2361 = vmatprep.subr.mxu0 0.0
        %2362 = vmatpush2.xpose.msra.mxu0 0.0
        %2363 = vmatprep.subr.mxu0 0.0
        %2364 = vmatpush2.xpose.msra.mxu0 0.0
        %2365 = vmatprep.subr.mxu0 0.0
        %2366 = vmatpush2.xpose.msra.mxu0 0.0
        %2367 = vmatprep.mubr.f32.mxu0 0.0
        %2368 = vmatmul.mubr.f32.gmra.mxu0 %v2298
        %v2369 = vpop.f32.mrf.mxu0
        %v2370 = vadd.f32 %v816, %v2369
        %v2371 = vpop.f32.mrf.mxu0
        %2372 = vmatprep.mubr.f32.mxu0 0.0
        %2373 = vmatmul.mubr.f32.gmra.mxu0 %v2301
        %v2374 = vpop.f32.mrf.mxu0
        %v2375 = vadd.f32 %v817, %v2374
        %v2376 = vpop.f32.mrf.mxu0
        %2377 = vdwg.mxu0
        %v2378 = vsel %vm918, %v2370, -inf
        %2379 = vmax.xlane.f32.xlu0 %v2378
        %v2380 = vpop.xlane.xlu0 %2379
        %v2381 = vsel %vm918, %v2375, -inf
        %2382 = vmax.xlane.f32.xlu0 %v2381
        %v2383 = vpop.xlane.xlu0 %2382
        %v2384 = vsub.f32 %v2370, %v2380
        %v2385 = vsub.f32 %v2375, %v2383
        %v2386 = vmul.f32 %v2384, 1.442695
        %v2387 = vpow.pop %v2386
        %v2388 = vmul.f32 %v2385, 1.442695
        %v2389 = vpow.pop %v2388
        %v2390 = vsel %vm918, %v2387, 0.0
        %2391 = vadd.xlane.f32.xlu0 %v2390
        %v2392 = vpop.xlane.xlu0 %2391
        %v2393 = vsel %vm918, %v2389, 0.0
        %2394 = vadd.xlane.f32.xlu0 %v2393
        %v2395 = vpop.xlane.xlu0 %2394
        %v2396 = vrcp.pop %v2392
        %v2397 = vmul.f32 %v2387, %v2396
        %v2398 = vrcp.pop %v2395
        %v2399 = vmul.f32 %v2389, %v2398
        %2400 = vrot.lane.b32.xlu0 %v2293, 64
        %v2401 = vpop.permute.xlu0 %2400
        %v2403 = vmul.f32 %v808, %v2401
        %v2404 = vmul.f32 %v811, %v2401
        %2407 = vrot.lane.b32.xlu0 %v2403, 64
        %v2408 = vpop.permute.xlu0 %2407
        %2409 = vrot.lane.b32.xlu0 %v2404, 64
        %v2410 = vpop.permute.xlu0 %2409
        %v2414 = vsel %vm918, %v2397, 0
        %v2417 = vsel %vm918, %v2399, 0
        %2419 = vmatprep.subr.mxu0 0.0
        %2420 = vmatpush1.msra.mxu0 0.0
        %2421 = vmatprep.subr.mxu0 0.0
        %2422 = vmatpush1.msra.mxu0 0.0
        %2423 = vmatprep.subr.mxu0 0.0
        %2424 = vmatpush1.msra.mxu0 0.0
        %2425 = vmatprep.subr.mxu0 0.0
        %2426 = vmatpush1.msra.mxu0 0.0
        %2427 = vmatprep.subr.mxu0 0.0
        %2428 = vmatpush1.msra.mxu0 0.0
        %2429 = vmatprep.subr.mxu0 0.0
        %2430 = vmatpush1.msra.mxu0 0.0
        %2431 = vmatprep.subr.mxu0 0.0
        %2432 = vmatpush1.msra.mxu0 0.0
        %2433 = vmatprep.subr.mxu0 0.0
        %2434 = vmatpush1.msra.mxu0 0.0
        %2435 = vmatprep.subr.mxu0 0.0
        %2436 = vmatpush1.msra.mxu0 0.0
        %2437 = vmatprep.subr.mxu0 0.0
        %2438 = vmatpush1.msra.mxu0 0.0
        %2439 = vmatprep.subr.mxu0 0.0
        %2440 = vmatpush1.msra.mxu0 0.0
        %2441 = vmatprep.subr.mxu0 0.0
        %2442 = vmatpush1.msra.mxu0 0.0
        %2443 = vmatprep.subr.mxu0 0.0
        %2444 = vmatpush1.msra.mxu0 0.0
        %2445 = vmatprep.subr.mxu0 0.0
        %2446 = vmatpush1.msra.mxu0 0.0
        %2447 = vmatprep.subr.mxu0 0.0
        %2448 = vmatpush1.msra.mxu0 %v2410
        %2449 = vmatprep.subr.mxu0 0.0
        %2450 = vmatpush1.msra.mxu0 %v2408
        %2451 = vmatprep.subr.mxu0 0.0
        %2452 = vmatpush2.msra.mxu0 0.0
        %2453 = vmatprep.subr.mxu0 0.0
        %2454 = vmatpush2.msra.mxu0 0.0
        %2455 = vmatprep.subr.mxu0 0.0
        %2456 = vmatpush2.msra.mxu0 0.0
        %2457 = vmatprep.subr.mxu0 0.0
        %2458 = vmatpush2.msra.mxu0 0.0
        %2459 = vmatprep.subr.mxu0 0.0
        %2460 = vmatpush2.msra.mxu0 0.0
        %2461 = vmatprep.subr.mxu0 0.0
        %2462 = vmatpush2.msra.mxu0 0.0
        %2463 = vmatprep.subr.mxu0 0.0
        %2464 = vmatpush2.msra.mxu0 0.0
        %2465 = vmatprep.subr.mxu0 0.0
        %2466 = vmatpush2.msra.mxu0 0.0
        %2467 = vmatprep.subr.mxu0 0.0
        %2468 = vmatpush2.msra.mxu0 0.0
        %2469 = vmatprep.subr.mxu0 0.0
        %2470 = vmatpush2.msra.mxu0 0.0
        %2471 = vmatprep.subr.mxu0 0.0
        %2472 = vmatpush2.msra.mxu0 0.0
        %2473 = vmatprep.subr.mxu0 0.0
        %2474 = vmatpush2.msra.mxu0 0.0
        %2475 = vmatprep.subr.mxu0 0.0
        %2476 = vmatpush2.msra.mxu0 0.0
        %2477 = vmatprep.subr.mxu0 0.0
        %2478 = vmatpush2.msra.mxu0 0.0
        %2479 = vmatprep.subr.mxu0 0.0
        %2480 = vmatpush2.msra.mxu0 0.0
        %2481 = vmatprep.subr.mxu0 0.0
        %2482 = vmatpush2.msra.mxu0 0.0
        %2483 = vmatprep.mubr.f32.mxu0 0.0
        %2484 = vmatmul.mubr.f32.gmra.mxu0 %v2414
        %v2485 = vpop.f32.mrf.mxu0
        %v2486 = vadd.f32 0.0, %v2485
        %v2487 = vpop.f32.mrf.mxu0
        %2488 = vmatprep.mubr.f32.mxu0 0.0
        %2489 = vmatmul.mubr.f32.gmra.mxu0 %v2417
        %v2490 = vpop.f32.mrf.mxu0
        %v2491 = vadd.f32 0.0, %v2490
        %v2492 = vpop.f32.mrf.mxu0
        %2493 = vdwg.mxu0
        %v2494 = vadd.f32 %v2285, %v2486
        %v2495 = vadd.f32 %v2286, %v2491
        %v2496 = vpack.c.bf16 %v2495, %v2494
        %v2497 = vld [vmem:[%s597] sm:$0xf]
        %v2498 = vld [vmem:[%s597 + $0x4] sm:$0xf]
        %v2499 = vld [vmem:[%s597 + $0x8] sm:$0xf]
        %v2500 = vld [vmem:[%s597 + $0xc] sm:$0xf]
        %v2501 = vld [vmem:[%s717] sm:$0x1]
        %v2503 = vlaneseq
        %v2504 = vshrl.u32 %v2503, 7
        %v2505 = vsub.s32 0, %v2504
        %v2506 = vrot.slane %v2501, %v2505
        %v2512 = vunpack.c.l.b16 %v2497
        %v2513 = vunpack.c.l.b16 %v2498
        %v2514 = vunpack.c.l.b16 %v2499
        %v2515 = vunpack.c.l.b16 %v2500
        %v2516 = vpack.c.b16 %v2513, %v2512
        %v2517 = vpack.c.b16 %v2515, %v2514
        %v2521 = vsel %vm769, %v2496, 0
        %2523 = vmatprep.subr.bf16.mxu0 0
        %2524 = vmatpush1.bf16.msra.mxu0 0
        %2525 = vmatprep.subr.bf16.mxu0 0
        %2526 = vmatpush1.bf16.msra.mxu0 0
        %2527 = vmatprep.subr.bf16.mxu0 0
        %2528 = vmatpush1.bf16.msra.mxu0 0
        %2529 = vmatprep.subr.bf16.mxu0 0
        %2530 = vmatpush1.bf16.msra.mxu0 0
        %2531 = vmatprep.subr.bf16.mxu0 0
        %2532 = vmatpush1.bf16.msra.mxu0 0
        %2533 = vmatprep.subr.bf16.mxu0 0
        %2534 = vmatpush1.bf16.msra.mxu0 0
        %2535 = vmatprep.subr.bf16.mxu0 0
        %2536 = vmatpush1.bf16.msra.mxu0 %v2517
        %2537 = vmatprep.subr.bf16.mxu0 0
        %2538 = vmatpush1.bf16.msra.mxu0 %v2516
        %2539 = vmatprep.subr.bf16.mxu0 0
        %2540 = vmatpush2.bf16.msra.mxu0 0
        %2541 = vmatprep.subr.bf16.mxu0 0
        %2542 = vmatpush2.bf16.msra.mxu0 0
        %2543 = vmatprep.subr.bf16.mxu0 0
        %2544 = vmatpush2.bf16.msra.mxu0 0
        %2545 = vmatprep.subr.bf16.mxu0 0
        %2546 = vmatpush2.bf16.msra.mxu0 0
        %2547 = vmatprep.subr.bf16.mxu0 0
        %2548 = vmatpush2.bf16.msra.mxu0 0
        %2549 = vmatprep.subr.bf16.mxu0 0
        %2550 = vmatpush2.bf16.msra.mxu0 0
        %2551 = vmatprep.subr.bf16.mxu0 0
        %2552 = vmatpush2.bf16.msra.mxu0 0
        %2553 = vmatprep.subr.bf16.mxu0 0
        %2554 = vmatpush2.bf16.msra.mxu0 0
        %2555 = vmatprep.mubr.bf16.mxu0 0
        %2556 = vmatmul.mubr.bf16.gmra.mxu0 %v2521
        %v2557 = vpop.f32.mrf.mxu0
        %v2558 = vadd.f32 %v2506, %v2557
        %v2559 = vpop.f32.mrf.mxu0
        %v2560 = vpop.f32.mrf.mxu0
        %v2561 = vadd.f32 %v2506, %v2560
        %v2562 = vpop.f32.mrf.mxu0
        %2563 = vdwg.mxu0
        %v2564 = vadd.f32 %v743, %v2558
        %v2565 = vadd.f32 %v744, %v2561
        %v2566 = vsel %vm769, %v2564, 0.0
        %2567 = vadd.xlane.f32.xlu0 %v2566
        %v2568 = vpop.xlane.xlu0 %2567
        %v2569 = vsel %vm769, %v2565, 0.0
        %2570 = vadd.xlane.f32.xlu0 %v2569
        %v2571 = vpop.xlane.xlu0 %2570
        %v2572 = vrcp.pop 32.0
        %v2573 = vmul.f32 %v2568, %v2572
        %v2574 = vmul.f32 %v2571, %v2572
        %v2575 = vsub.f32 %v2564, %v2573
        %v2576 = vsub.f32 %v2565, %v2574
        %v2577 = vmul.f32 %v2575, %v2575
        %v2578 = vmul.f32 %v2576, %v2576
        %v2579 = vsel %vm769, %v2577, 0.0
        %2580 = vadd.xlane.f32.xlu0 %v2579
        %v2581 = vpop.xlane.xlu0 %2580
        %v2582 = vsel %vm769, %v2578, 0.0
        %2583 = vadd.xlane.f32.xlu0 %v2582
        %v2584 = vpop.xlane.xlu0 %2583
        %v2585 = vmul.f32 %v2581, %v2572
        %v2586 = vmul.f32 %v2584, %v2572
        %v2587 = vadd.f32 %v2585, 1e-05
        %v2588 = vadd.f32 %v2586, 1e-05
        %v2589 = vrsqrt.pop %v2587
        %v2590 = vrsqrt.pop %v2588
        %v2591 = vmul.f32 %v2575, %v2589
        %v2592 = vmul.f32 %v2576, %v2590
        %v2593 = vld [vmem:[%s720] sm:$0x1]
        %v2595 = vlaneseq
        %v2596 = vshrl.u32 %v2595, 7
        %v2597 = vsub.s32 0, %v2596
        %v2598 = vrot.slane %v2593, %v2597
        %v2600 = vmul.f32 %v2591, %v2598
        %v2601 = vmul.f32 %v2592, %v2598
        %v2602 = vld [vmem:[%s723] sm:$0x1]
        %v2604 = vlaneseq
        %v2605 = vshrl.u32 %v2604, 7
        %v2606 = vsub.s32 0, %v2605
        %v2607 = vrot.slane %v2602, %v2606
        %v2609 = vadd.f32 %v2600, %v2607
        %v2610 = vadd.f32 %v2601, %v2607
        %v2611 = vpack.c.bf16 %v2610, %v2609
        %v2612 = vld [vmem:[%s606] sm:$0xff]
        %v2613 = vld [vmem:[%s606 + $0x8] sm:$0xff]
        %v2614 = vld [vmem:[%s606 + $0x10] sm:$0xff]
        %v2615 = vld [vmem:[%s606 + $0x18] sm:$0xff]
        %v2616 = vld [vmem:[%s606 + $0x20] sm:$0xff]
        %v2617 = vld [vmem:[%s606 + $0x28] sm:$0xff]
        %v2618 = vld [vmem:[%s606 + $0x30] sm:$0xff]
        %v2619 = vld [vmem:[%s606 + $0x38] sm:$0xff]
        %v2620 = vld [vmem:[%s606 + $0x40] sm:$0xff]
        %v2621 = vld [vmem:[%s606 + $0x48] sm:$0xff]
        %v2622 = vld [vmem:[%s606 + $0x50] sm:$0xff]
        %v2623 = vld [vmem:[%s606 + $0x58] sm:$0xff]
        %v2624 = vld [vmem:[%s606 + $0x60] sm:$0xff]
        %v2625 = vld [vmem:[%s606 + $0x68] sm:$0xff]
        %v2626 = vld [vmem:[%s606 + $0x70] sm:$0xff]
        %v2627 = vld [vmem:[%s606 + $0x78] sm:$0xff]
        %v2628 = vld [vmem:[%s606 + $0x80] sm:$0xff]
        %v2629 = vld [vmem:[%s606 + $0x88] sm:$0xff]
        %v2630 = vld [vmem:[%s606 + $0x90] sm:$0xff]
        %v2631 = vld [vmem:[%s606 + $0x98] sm:$0xff]
        %v2632 = vld [vmem:[%s606 + $0xa0] sm:$0xff]
        %v2633 = vld [vmem:[%s606 + $0xa8] sm:$0xff]
        %v2634 = vld [vmem:[%s606 + $0xb0] sm:$0xff]
        %v2635 = vld [vmem:[%s606 + $0xb8] sm:$0xff]
        %v2636 = vld [vmem:[%s606 + $0xc0] sm:$0xff]
        %v2637 = vld [vmem:[%s606 + $0xc8] sm:$0xff]
        %v2638 = vld [vmem:[%s606 + $0xd0] sm:$0xff]
        %v2639 = vld [vmem:[%s606 + $0xd8] sm:$0xff]
        %v2640 = vld [vmem:[%s606 + $0xe0] sm:$0xff]
        %v2641 = vld [vmem:[%s606 + $0xe8] sm:$0xff]
        %v2642 = vld [vmem:[%s606 + $0xf0] sm:$0xff]
        %v2643 = vld [vmem:[%s606 + $0xf8] sm:$0xff]
        %v2644 = vld [vmem:[%s615] sm:$0xff]
        %v2645 = vld [vmem:[%s615 + $0x8] sm:$0xff]
        %v2648 = vlaneseq
        %v2649 = vshrl.u32 %v2648, 7
        %v2650 = vsub.s32 0, %v2649
        %v2651 = vrot.slane %v2644, %v2650
        %v2652 = vlaneseq
        %v2653 = vshrl.u32 %v2652, 7
        %v2654 = vsub.s32 1, %v2653
        %v2655 = vrot.slane %v2644, %v2654
        %v2656 = vlaneseq
        %v2657 = vshrl.u32 %v2656, 7
        %v2658 = vsub.s32 2, %v2657
        %v2659 = vrot.slane %v2644, %v2658
        %v2660 = vlaneseq
        %v2661 = vshrl.u32 %v2660, 7
        %v2662 = vsub.s32 3, %v2661
        %v2663 = vrot.slane %v2644, %v2662
        %v2664 = vlaneseq
        %v2665 = vshrl.u32 %v2664, 7
        %v2666 = vsub.s32 4, %v2665
        %v2667 = vrot.slane %v2644, %v2666
        %v2668 = vlaneseq
        %v2669 = vshrl.u32 %v2668, 7
        %v2670 = vsub.s32 5, %v2669
        %v2671 = vrot.slane %v2644, %v2670
        %v2672 = vlaneseq
        %v2673 = vshrl.u32 %v2672, 7
        %v2674 = vsub.s32 6, %v2673
        %v2675 = vrot.slane %v2644, %v2674
        %v2676 = vlaneseq
        %v2677 = vshrl.u32 %v2676, 7
        %v2678 = vsub.s32 7, %v2677
        %v2679 = vrot.slane %v2644, %v2678
        %v2680 = vlaneseq
        %v2681 = vshrl.u32 %v2680, 7
        %v2682 = vsub.s32 0, %v2681
        %v2683 = vrot.slane %v2645, %v2682
        %v2684 = vlaneseq
        %v2685 = vshrl.u32 %v2684, 7
        %v2686 = vsub.s32 1, %v2685
        %v2687 = vrot.slane %v2645, %v2686
        %v2688 = vlaneseq
        %v2689 = vshrl.u32 %v2688, 7
        %v2690 = vsub.s32 2, %v2689
        %v2691 = vrot.slane %v2645, %v2690
        %v2692 = vlaneseq
        %v2693 = vshrl.u32 %v2692, 7
        %v2694 = vsub.s32 3, %v2693
        %v2695 = vrot.slane %v2645, %v2694
        %v2696 = vlaneseq
        %v2697 = vshrl.u32 %v2696, 7
        %v2698 = vsub.s32 4, %v2697
        %v2699 = vrot.slane %v2645, %v2698
        %v2700 = vlaneseq
        %v2701 = vshrl.u32 %v2700, 7
        %v2702 = vsub.s32 5, %v2701
        %v2703 = vrot.slane %v2645, %v2702
        %v2704 = vlaneseq
        %v2705 = vshrl.u32 %v2704, 7
        %v2706 = vsub.s32 6, %v2705
        %v2707 = vrot.slane %v2645, %v2706
        %v2708 = vlaneseq
        %v2709 = vshrl.u32 %v2708, 7
        %v2710 = vsub.s32 7, %v2709
        %v2711 = vrot.slane %v2645, %v2710
        %v2760 = vunpack.c.l.b16 %v2612
        %v2761 = vunpack.c.h.b16 %v2612
        %v2762 = vunpack.c.l.b16 %v2613
        %v2763 = vunpack.c.h.b16 %v2613
        %v2764 = vunpack.c.l.b16 %v2614
        %v2765 = vunpack.c.h.b16 %v2614
        %v2766 = vunpack.c.l.b16 %v2615
        %v2767 = vunpack.c.h.b16 %v2615
        %v2768 = vunpack.c.l.b16 %v2616
        %v2769 = vunpack.c.h.b16 %v2616
        %v2770 = vunpack.c.l.b16 %v2617
        %v2771 = vunpack.c.h.b16 %v2617
        %v2772 = vunpack.c.l.b16 %v2618
        %v2773 = vunpack.c.h.b16 %v2618
        %v2774 = vunpack.c.l.b16 %v2619
        %v2775 = vunpack.c.h.b16 %v2619
        %v2776 = vunpack.c.l.b16 %v2620
        %v2777 = vunpack.c.h.b16 %v2620
        %v2778 = vunpack.c.l.b16 %v2621
        %v2779 = vunpack.c.h.b16 %v2621
        %v2780 = vunpack.c.l.b16 %v2622
        %v2781 = vunpack.c.h.b16 %v2622
        %v2782 = vunpack.c.l.b16 %v2623
        %v2783 = vunpack.c.h.b16 %v2623
        %v2784 = vunpack.c.l.b16 %v2624
        %v2785 = vunpack.c.h.b16 %v2624
        %v2786 = vunpack.c.l.b16 %v2625
        %v2787 = vunpack.c.h.b16 %v2625
        %v2788 = vunpack.c.l.b16 %v2626
        %v2789 = vunpack.c.h.b16 %v2626
        %v2790 = vunpack.c.l.b16 %v2627
        %v2791 = vunpack.c.h.b16 %v2627
        %v2792 = vunpack.c.l.b16 %v2628
        %v2793 = vunpack.c.h.b16 %v2628
        %v2794 = vunpack.c.l.b16 %v2629
        %v2795 = vunpack.c.h.b16 %v2629
        %v2796 = vunpack.c.l.b16 %v2630
        %v2797 = vunpack.c.h.b16 %v2630
        %v2798 = vunpack.c.l.b16 %v2631
        %v2799 = vunpack.c.h.b16 %v2631
        %v2800 = vunpack.c.l.b16 %v2632
        %v2801 = vunpack.c.h.b16 %v2632
        %v2802 = vunpack.c.l.b16 %v2633
        %v2803 = vunpack.c.h.b16 %v2633
        %v2804 = vunpack.c.l.b16 %v2634
        %v2805 = vunpack.c.h.b16 %v2634
        %v2806 = vunpack.c.l.b16 %v2635
        %v2807 = vunpack.c.h.b16 %v2635
        %v2808 = vunpack.c.l.b16 %v2636
        %v2809 = vunpack.c.h.b16 %v2636
        %v2810 = vunpack.c.l.b16 %v2637
        %v2811 = vunpack.c.h.b16 %v2637
        %v2812 = vunpack.c.l.b16 %v2638
        %v2813 = vunpack.c.h.b16 %v2638
        %v2814 = vunpack.c.l.b16 %v2639
        %v2815 = vunpack.c.h.b16 %v2639
        %v2816 = vunpack.c.l.b16 %v2640
        %v2817 = vunpack.c.h.b16 %v2640
        %v2818 = vunpack.c.l.b16 %v2641
        %v2819 = vunpack.c.h.b16 %v2641
        %v2820 = vunpack.c.l.b16 %v2642
        %v2821 = vunpack.c.h.b16 %v2642
        %v2822 = vunpack.c.l.b16 %v2643
        %v2823 = vunpack.c.h.b16 %v2643
        %v2824 = vpack.c.b16 %v2776, %v2760
        %v2825 = vpack.c.b16 %v2777, %v2761
        %v2826 = vpack.c.b16 %v2778, %v2762
        %v2827 = vpack.c.b16 %v2779, %v2763
        %v2828 = vpack.c.b16 %v2780, %v2764
        %v2829 = vpack.c.b16 %v2781, %v2765
        %v2830 = vpack.c.b16 %v2782, %v2766
        %v2831 = vpack.c.b16 %v2783, %v2767
        %v2832 = vpack.c.b16 %v2784, %v2768
        %v2833 = vpack.c.b16 %v2785, %v2769
        %v2834 = vpack.c.b16 %v2786, %v2770
        %v2835 = vpack.c.b16 %v2787, %v2771
        %v2836 = vpack.c.b16 %v2788, %v2772
        %v2837 = vpack.c.b16 %v2789, %v2773
        %v2838 = vpack.c.b16 %v2790, %v2774
        %v2839 = vpack.c.b16 %v2791, %v2775
        %v2840 = vpack.c.b16 %v2808, %v2792
        %v2841 = vpack.c.b16 %v2809, %v2793
        %v2842 = vpack.c.b16 %v2810, %v2794
        %v2843 = vpack.c.b16 %v2811, %v2795
        %v2844 = vpack.c.b16 %v2812, %v2796
        %v2845 = vpack.c.b16 %v2813, %v2797
        %v2846 = vpack.c.b16 %v2814, %v2798
        %v2847 = vpack.c.b16 %v2815, %v2799
        %v2848 = vpack.c.b16 %v2816, %v2800
        %v2849 = vpack.c.b16 %v2817, %v2801
        %v2850 = vpack.c.b16 %v2818, %v2802
        %v2851 = vpack.c.b16 %v2819, %v2803
        %v2852 = vpack.c.b16 %v2820, %v2804
        %v2853 = vpack.c.b16 %v2821, %v2805
        %v2854 = vpack.c.b16 %v2822, %v2806
        %v2855 = vpack.c.b16 %v2823, %v2807
        %v2889 = vsel %vm769, %v2611, 0
        %2891 = vmatprep.subr.bf16.mxu0 0
        %2892 = vmatpush1.bf16.msra.mxu0 0
        %2893 = vmatprep.subr.bf16.mxu0 0
        %2894 = vmatpush1.bf16.msra.mxu0 0
        %2895 = vmatprep.subr.bf16.mxu0 0
        %2896 = vmatpush1.bf16.msra.mxu0 0
        %2897 = vmatprep.subr.bf16.mxu0 0
        %2898 = vmatpush1.bf16.msra.mxu0 0
        %2899 = vmatprep.subr.bf16.mxu0 0
        %2900 = vmatpush1.bf16.msra.mxu0 0
        %2901 = vmatprep.subr.bf16.mxu0 0
        %2902 = vmatpush1.bf16.msra.mxu0 0
        %2903 = vmatprep.subr.bf16.mxu0 %v2841
        %2904 = vmatpush1.bf16.msra.mxu0 %v2840
        %2905 = vmatprep.subr.bf16.mxu0 %v2825
        %2906 = vmatpush1.bf16.msra.mxu0 %v2824
        %2907 = vmatprep.subr.bf16.mxu0 0
        %2908 = vmatpush2.bf16.msra.mxu0 0
        %2909 = vmatprep.subr.bf16.mxu0 0
        %2910 = vmatpush2.bf16.msra.mxu0 0
        %2911 = vmatprep.subr.bf16.mxu0 0
        %2912 = vmatpush2.bf16.msra.mxu0 0
        %2913 = vmatprep.subr.bf16.mxu0 0
        %2914 = vmatpush2.bf16.msra.mxu0 0
        %2915 = vmatprep.subr.bf16.mxu0 0
        %2916 = vmatpush2.bf16.msra.mxu0 0
        %2917 = vmatprep.subr.bf16.mxu0 0
        %2918 = vmatpush2.bf16.msra.mxu0 0
        %2919 = vmatprep.subr.bf16.mxu0 0
        %2920 = vmatpush2.bf16.msra.mxu0 0
        %2921 = vmatprep.subr.bf16.mxu0 0
        %2922 = vmatpush2.bf16.msra.mxu0 0
        %2923 = vmatprep.mubr.bf16.mxu0 0
        %2924 = vmatmul.mubr.bf16.gmra.mxu0 %v2889
        %v2925 = vpop.f32.mrf.mxu0
        %v2926 = vadd.f32 %v2651, %v2925
        %v2927 = vpop.f32.mrf.mxu0
        %v2928 = vadd.f32 %v2655, %v2927
        %v2929 = vpop.f32.mrf.mxu0
        %v2930 = vadd.f32 %v2651, %v2929
        %v2931 = vpop.f32.mrf.mxu0
        %v2932 = vadd.f32 %v2655, %v2931
        %2933 = vdwg.mxu0
        %2934 = vmatprep.subr.bf16.mxu0 0
        %2935 = vmatpush1.bf16.msra.mxu0 0
        %2936 = vmatprep.subr.bf16.mxu0 0
        %2937 = vmatpush1.bf16.msra.mxu0 0
        %2938 = vmatprep.subr.bf16.mxu0 0
        %2939 = vmatpush1.bf16.msra.mxu0 0
        %2940 = vmatprep.subr.bf16.mxu0 0
        %2941 = vmatpush1.bf16.msra.mxu0 0
        %2942 = vmatprep.subr.bf16.mxu0 0
        %2943 = vmatpush1.bf16.msra.mxu0 0
        %2944 = vmatprep.subr.bf16.mxu0 0
        %2945 = vmatpush1.bf16.msra.mxu0 0
        %2946 = vmatprep.subr.bf16.mxu0 %v2843
        %2947 = vmatpush1.bf16.msra.mxu0 %v2842
        %2948 = vmatprep.subr.bf16.mxu0 %v2827
        %2949 = vmatpush1.bf16.msra.mxu0 %v2826
        %2950 = vmatprep.subr.bf16.mxu0 0
        %2951 = vmatpush2.bf16.msra.mxu0 0
        %2952 = vmatprep.subr.bf16.mxu0 0
        %2953 = vmatpush2.bf16.msra.mxu0 0
        %2954 = vmatprep.subr.bf16.mxu0 0
        %2955 = vmatpush2.bf16.msra.mxu0 0
        %2956 = vmatprep.subr.bf16.mxu0 0
        %2957 = vmatpush2.bf16.msra.mxu0 0
        %2958 = vmatprep.subr.bf16.mxu0 0
        %2959 = vmatpush2.bf16.msra.mxu0 0
        %2960 = vmatprep.subr.bf16.mxu0 0
        %2961 = vmatpush2.bf16.msra.mxu0 0
        %2962 = vmatprep.subr.bf16.mxu0 0
        %2963 = vmatpush2.bf16.msra.mxu0 0
        %2964 = vmatprep.subr.bf16.mxu0 0
        %2965 = vmatpush2.bf16.msra.mxu0 0
        %2966 = vmatprep.mubr.bf16.mxu0 0
        %2967 = vmatmul.mubr.bf16.gmra.mxu0 %v2889
        %v2968 = vpop.f32.mrf.mxu0
        %v2969 = vadd.f32 %v2659, %v2968
        %v2970 = vpop.f32.mrf.mxu0
        %v2971 = vadd.f32 %v2663, %v2970
        %v2972 = vpop.f32.mrf.mxu0
        %v2973 = vadd.f32 %v2659, %v2972
        %v2974 = vpop.f32.mrf.mxu0
        %v2975 = vadd.f32 %v2663, %v2974
        %2976 = vdwg.mxu0
        %2977 = vmatprep.subr.bf16.mxu0 0
        %2978 = vmatpush1.bf16.msra.mxu0 0
        %2979 = vmatprep.subr.bf16.mxu0 0
        %2980 = vmatpush1.bf16.msra.mxu0 0
        %2981 = vmatprep.subr.bf16.mxu0 0
        %2982 = vmatpush1.bf16.msra.mxu0 0
        %2983 = vmatprep.subr.bf16.mxu0 0
        %2984 = vmatpush1.bf16.msra.mxu0 0
        %2985 = vmatprep.subr.bf16.mxu0 0
        %2986 = vmatpush1.bf16.msra.mxu0 0
        %2987 = vmatprep.subr.bf16.mxu0 0
        %2988 = vmatpush1.bf16.msra.mxu0 0
        %2989 = vmatprep.subr.bf16.mxu0 %v2845
        %2990 = vmatpush1.bf16.msra.mxu0 %v2844
        %2991 = vmatprep.subr.bf16.mxu0 %v2829
        %2992 = vmatpush1.bf16.msra.mxu0 %v2828
        %2993 = vmatprep.subr.bf16.mxu0 0
        %2994 = vmatpush2.bf16.msra.mxu0 0
        %2995 = vmatprep.subr.bf16.mxu0 0
        %2996 = vmatpush2.bf16.msra.mxu0 0
        %2997 = vmatprep.subr.bf16.mxu0 0
        %2998 = vmatpush2.bf16.msra.mxu0 0
        %2999 = vmatprep.subr.bf16.mxu0 0
        %3000 = vmatpush2.bf16.msra.mxu0 0
        %3001 = vmatprep.subr.bf16.mxu0 0
        %3002 = vmatpush2.bf16.msra.mxu0 0
        %3003 = vmatprep.subr.bf16.mxu0 0
        %3004 = vmatpush2.bf16.msra.mxu0 0
        %3005 = vmatprep.subr.bf16.mxu0 0
        %3006 = vmatpush2.bf16.msra.mxu0 0
        %3007 = vmatprep.subr.bf16.mxu0 0
        %3008 = vmatpush2.bf16.msra.mxu0 0
        %3009 = vmatprep.mubr.bf16.mxu0 0
        %3010 = vmatmul.mubr.bf16.gmra.mxu0 %v2889
        %v3011 = vpop.f32.mrf.mxu0
        %v3012 = vadd.f32 %v2667, %v3011
        %v3013 = vpop.f32.mrf.mxu0
        %v3014 = vadd.f32 %v2671, %v3013
        %v3015 = vpop.f32.mrf.mxu0
        %v3016 = vadd.f32 %v2667, %v3015
        %v3017 = vpop.f32.mrf.mxu0
        %v3018 = vadd.f32 %v2671, %v3017
        %3019 = vdwg.mxu0
        %3020 = vmatprep.subr.bf16.mxu0 0
        %3021 = vmatpush1.bf16.msra.mxu0 0
        %3022 = vmatprep.subr.bf16.mxu0 0
        %3023 = vmatpush1.bf16.msra.mxu0 0
        %3024 = vmatprep.subr.bf16.mxu0 0
        %3025 = vmatpush1.bf16.msra.mxu0 0
        %3026 = vmatprep.subr.bf16.mxu0 0
        %3027 = vmatpush1.bf16.msra.mxu0 0
        %3028 = vmatprep.subr.bf16.mxu0 0
        %3029 = vmatpush1.bf16.msra.mxu0 0
        %3030 = vmatprep.subr.bf16.mxu0 0
        %3031 = vmatpush1.bf16.msra.mxu0 0
        %3032 = vmatprep.subr.bf16.mxu0 %v2847
        %3033 = vmatpush1.bf16.msra.mxu0 %v2846
        %3034 = vmatprep.subr.bf16.mxu0 %v2831
        %3035 = vmatpush1.bf16.msra.mxu0 %v2830
        %3036 = vmatprep.subr.bf16.mxu0 0
        %3037 = vmatpush2.bf16.msra.mxu0 0
        %3038 = vmatprep.subr.bf16.mxu0 0
        %3039 = vmatpush2.bf16.msra.mxu0 0
        %3040 = vmatprep.subr.bf16.mxu0 0
        %3041 = vmatpush2.bf16.msra.mxu0 0
        %3042 = vmatprep.subr.bf16.mxu0 0
        %3043 = vmatpush2.bf16.msra.mxu0 0
        %3044 = vmatprep.subr.bf16.mxu0 0
        %3045 = vmatpush2.bf16.msra.mxu0 0
        %3046 = vmatprep.subr.bf16.mxu0 0
        %3047 = vmatpush2.bf16.msra.mxu0 0
        %3048 = vmatprep.subr.bf16.mxu0 0
        %3049 = vmatpush2.bf16.msra.mxu0 0
        %3050 = vmatprep.subr.bf16.mxu0 0
        %3051 = vmatpush2.bf16.msra.mxu0 0
        %3052 = vmatprep.mubr.bf16.mxu0 0
        %3053 = vmatmul.mubr.bf16.gmra.mxu0 %v2889
        %v3054 = vpop.f32.mrf.mxu0
        %v3055 = vadd.f32 %v2675, %v3054
        %v3056 = vpop.f32.mrf.mxu0
        %v3057 = vadd.f32 %v2679, %v3056
        %v3058 = vpop.f32.mrf.mxu0
        %v3059 = vadd.f32 %v2675, %v3058
        %v3060 = vpop.f32.mrf.mxu0
        %v3061 = vadd.f32 %v2679, %v3060
        %3062 = vdwg.mxu0
        %3063 = vmatprep.subr.bf16.mxu0 0
        %3064 = vmatpush1.bf16.msra.mxu0 0
        %3065 = vmatprep.subr.bf16.mxu0 0
        %3066 = vmatpush1.bf16.msra.mxu0 0
        %3067 = vmatprep.subr.bf16.mxu0 0
        %3068 = vmatpush1.bf16.msra.mxu0 0
        %3069 = vmatprep.subr.bf16.mxu0 0
        %3070 = vmatpush1.bf16.msra.mxu0 0
        %3071 = vmatprep.subr.bf16.mxu0 0
        %3072 = vmatpush1.bf16.msra.mxu0 0
        %3073 = vmatprep.subr.bf16.mxu0 0
        %3074 = vmatpush1.bf16.msra.mxu0 0
        %3075 = vmatprep.subr.bf16.mxu0 %v2849
        %3076 = vmatpush1.bf16.msra.mxu0 %v2848
        %3077 = vmatprep.subr.bf16.mxu0 %v2833
        %3078 = vmatpush1.bf16.msra.mxu0 %v2832
        %3079 = vmatprep.subr.bf16.mxu0 0
        %3080 = vmatpush2.bf16.msra.mxu0 0
        %3081 = vmatprep.subr.bf16.mxu0 0
        %3082 = vmatpush2.bf16.msra.mxu0 0
        %3083 = vmatprep.subr.bf16.mxu0 0
        %3084 = vmatpush2.bf16.msra.mxu0 0
        %3085 = vmatprep.subr.bf16.mxu0 0
        %3086 = vmatpush2.bf16.msra.mxu0 0
        %3087 = vmatprep.subr.bf16.mxu0 0
        %3088 = vmatpush2.bf16.msra.mxu0 0
        %3089 = vmatprep.subr.bf16.mxu0 0
        %3090 = vmatpush2.bf16.msra.mxu0 0
        %3091 = vmatprep.subr.bf16.mxu0 0
        %3092 = vmatpush2.bf16.msra.mxu0 0
        %3093 = vmatprep.subr.bf16.mxu0 0
        %3094 = vmatpush2.bf16.msra.mxu0 0
        %3095 = vmatprep.mubr.bf16.mxu0 0
        %3096 = vmatmul.mubr.bf16.gmra.mxu0 %v2889
        %v3097 = vpop.f32.mrf.mxu0
        %v3098 = vadd.f32 %v2683, %v3097
        %v3099 = vpop.f32.mrf.mxu0
        %v3100 = vadd.f32 %v2687, %v3099
        %v3101 = vpop.f32.mrf.mxu0
        %v3102 = vadd.f32 %v2683, %v3101
        %v3103 = vpop.f32.mrf.mxu0
        %v3104 = vadd.f32 %v2687, %v3103
        %3105 = vdwg.mxu0
        %3106 = vmatprep.subr.bf16.mxu0 0
        %3107 = vmatpush1.bf16.msra.mxu0 0
        %3108 = vmatprep.subr.bf16.mxu0 0
        %3109 = vmatpush1.bf16.msra.mxu0 0
        %3110 = vmatprep.subr.bf16.mxu0 0
        %3111 = vmatpush1.bf16.msra.mxu0 0
        %3112 = vmatprep.subr.bf16.mxu0 0
        %3113 = vmatpush1.bf16.msra.mxu0 0
        %3114 = vmatprep.subr.bf16.mxu0 0
        %3115 = vmatpush1.bf16.msra.mxu0 0
        %3116 = vmatprep.subr.bf16.mxu0 0
        %3117 = vmatpush1.bf16.msra.mxu0 0
        %3118 = vmatprep.subr.bf16.mxu0 %v2851
        %3119 = vmatpush1.bf16.msra.mxu0 %v2850
        %3120 = vmatprep.subr.bf16.mxu0 %v2835
        %3121 = vmatpush1.bf16.msra.mxu0 %v2834
        %3122 = vmatprep.subr.bf16.mxu0 0
        %3123 = vmatpush2.bf16.msra.mxu0 0
        %3124 = vmatprep.subr.bf16.mxu0 0
        %3125 = vmatpush2.bf16.msra.mxu0 0
        %3126 = vmatprep.subr.bf16.mxu0 0
        %3127 = vmatpush2.bf16.msra.mxu0 0
        %3128 = vmatprep.subr.bf16.mxu0 0
        %3129 = vmatpush2.bf16.msra.mxu0 0
        %3130 = vmatprep.subr.bf16.mxu0 0
        %3131 = vmatpush2.bf16.msra.mxu0 0
        %3132 = vmatprep.subr.bf16.mxu0 0
        %3133 = vmatpush2.bf16.msra.mxu0 0
        %3134 = vmatprep.subr.bf16.mxu0 0
        %3135 = vmatpush2.bf16.msra.mxu0 0
        %3136 = vmatprep.subr.bf16.mxu0 0
        %3137 = vmatpush2.bf16.msra.mxu0 0
        %3138 = vmatprep.mubr.bf16.mxu0 0
        %3139 = vmatmul.mubr.bf16.gmra.mxu0 %v2889
        %v3140 = vpop.f32.mrf.mxu0
        %v3141 = vadd.f32 %v2691, %v3140
        %v3142 = vpop.f32.mrf.mxu0
        %v3143 = vadd.f32 %v2695, %v3142
        %v3144 = vpop.f32.mrf.mxu0
        %v3145 = vadd.f32 %v2691, %v3144
        %v3146 = vpop.f32.mrf.mxu0
        %v3147 = vadd.f32 %v2695, %v3146
        %3148 = vdwg.mxu0
        %3149 = vmatprep.subr.bf16.mxu0 0
        %3150 = vmatpush1.bf16.msra.mxu0 0
        %3151 = vmatprep.subr.bf16.mxu0 0
        %3152 = vmatpush1.bf16.msra.mxu0 0
        %3153 = vmatprep.subr.bf16.mxu0 0
        %3154 = vmatpush1.bf16.msra.mxu0 0
        %3155 = vmatprep.subr.bf16.mxu0 0
        %3156 = vmatpush1.bf16.msra.mxu0 0
        %3157 = vmatprep.subr.bf16.mxu0 0
        %3158 = vmatpush1.bf16.msra.mxu0 0
        %3159 = vmatprep.subr.bf16.mxu0 0
        %3160 = vmatpush1.bf16.msra.mxu0 0
        %3161 = vmatprep.subr.bf16.mxu0 %v2853
        %3162 = vmatpush1.bf16.msra.mxu0 %v2852
        %3163 = vmatprep.subr.bf16.mxu0 %v2837
        %3164 = vmatpush1.bf16.msra.mxu0 %v2836
        %3165 = vmatprep.subr.bf16.mxu0 0
        %3166 = vmatpush2.bf16.msra.mxu0 0
        %3167 = vmatprep.subr.bf16.mxu0 0
        %3168 = vmatpush2.bf16.msra.mxu0 0
        %3169 = vmatprep.subr.bf16.mxu0 0
        %3170 = vmatpush2.bf16.msra.mxu0 0
        %3171 = vmatprep.subr.bf16.mxu0 0
        %3172 = vmatpush2.bf16.msra.mxu0 0
        %3173 = vmatprep.subr.bf16.mxu0 0
        %3174 = vmatpush2.bf16.msra.mxu0 0
        %3175 = vmatprep.subr.bf16.mxu0 0
        %3176 = vmatpush2.bf16.msra.mxu0 0
        %3177 = vmatprep.subr.bf16.mxu0 0
        %3178 = vmatpush2.bf16.msra.mxu0 0
        %3179 = vmatprep.subr.bf16.mxu0 0
        %3180 = vmatpush2.bf16.msra.mxu0 0
        %3181 = vmatprep.mubr.bf16.mxu0 0
        %3182 = vmatmul.mubr.bf16.gmra.mxu0 %v2889
        %v3183 = vpop.f32.mrf.mxu0
        %v3184 = vadd.f32 %v2699, %v3183
        %v3185 = vpop.f32.mrf.mxu0
        %v3186 = vadd.f32 %v2703, %v3185
        %v3187 = vpop.f32.mrf.mxu0
        %v3188 = vadd.f32 %v2699, %v3187
        %v3189 = vpop.f32.mrf.mxu0
        %v3190 = vadd.f32 %v2703, %v3189
        %3191 = vdwg.mxu0
        %3192 = vmatprep.subr.bf16.mxu0 0
        %3193 = vmatpush1.bf16.msra.mxu0 0
        %3194 = vmatprep.subr.bf16.mxu0 0
        %3195 = vmatpush1.bf16.msra.mxu0 0
        %3196 = vmatprep.subr.bf16.mxu0 0
        %3197 = vmatpush1.bf16.msra.mxu0 0
        %3198 = vmatprep.subr.bf16.mxu0 0
        %3199 = vmatpush1.bf16.msra.mxu0 0
        %3200 = vmatprep.subr.bf16.mxu0 0
        %3201 = vmatpush1.bf16.msra.mxu0 0
        %3202 = vmatprep.subr.bf16.mxu0 0
        %3203 = vmatpush1.bf16.msra.mxu0 0
        %3204 = vmatprep.subr.bf16.mxu0 %v2855
        %3205 = vmatpush1.bf16.msra.mxu0 %v2854
        %3206 = vmatprep.subr.bf16.mxu0 %v2839
        %3207 = vmatpush1.bf16.msra.mxu0 %v2838
        %3208 = vmatprep.subr.bf16.mxu0 0
        %3209 = vmatpush2.bf16.msra.mxu0 0
        %3210 = vmatprep.subr.bf16.mxu0 0
        %3211 = vmatpush2.bf16.msra.mxu0 0
        %3212 = vmatprep.subr.bf16.mxu0 0
        %3213 = vmatpush2.bf16.msra.mxu0 0
        %3214 = vmatprep.subr.bf16.mxu0 0
        %3215 = vmatpush2.bf16.msra.mxu0 0
        %3216 = vmatprep.subr.bf16.mxu0 0
        %3217 = vmatpush2.bf16.msra.mxu0 0
        %3218 = vmatprep.subr.bf16.mxu0 0
        %3219 = vmatpush2.bf16.msra.mxu0 0
        %3220 = vmatprep.subr.bf16.mxu0 0
        %3221 = vmatpush2.bf16.msra.mxu0 0
        %3222 = vmatprep.subr.bf16.mxu0 0
        %3223 = vmatpush2.bf16.msra.mxu0 0
        %3224 = vmatprep.mubr.bf16.mxu0 0
        %3225 = vmatmul.mubr.bf16.gmra.mxu0 %v2889
        %v3226 = vpop.f32.mrf.mxu0
        %v3227 = vadd.f32 %v2707, %v3226
        %v3228 = vpop.f32.mrf.mxu0
        %v3229 = vadd.f32 %v2711, %v3228
        %v3230 = vpop.f32.mrf.mxu0
        %v3231 = vadd.f32 %v2707, %v3230
        %v3232 = vpop.f32.mrf.mxu0
        %v3233 = vadd.f32 %v2711, %v3232
        %3234 = vdwg.mxu0
        %v3235 = vmul.f32 %v2926, 0.5
        %v3236 = vmul.f32 %v2928, 0.5
        %v3237 = vmul.f32 %v2969, 0.5
        %v3238 = vmul.f32 %v2971, 0.5
        %v3239 = vmul.f32 %v3012, 0.5
        %v3240 = vmul.f32 %v3014, 0.5
        %v3241 = vmul.f32 %v3055, 0.5
        %v3242 = vmul.f32 %v3057, 0.5
        %v3243 = vmul.f32 %v3098, 0.5
        %v3244 = vmul.f32 %v3100, 0.5
        %v3245 = vmul.f32 %v3141, 0.5
        %v3246 = vmul.f32 %v3143, 0.5
        %v3247 = vmul.f32 %v3184, 0.5
        %v3248 = vmul.f32 %v3186, 0.5
        %v3249 = vmul.f32 %v3227, 0.5
        %v3250 = vmul.f32 %v3229, 0.5
        %v3251 = vmul.f32 %v2930, 0.5
        %v3252 = vmul.f32 %v2932, 0.5
        %v3253 = vmul.f32 %v2973, 0.5
        %v3254 = vmul.f32 %v2975, 0.5
        %v3255 = vmul.f32 %v3016, 0.5
        %v3256 = vmul.f32 %v3018, 0.5
        %v3257 = vmul.f32 %v3059, 0.5
        %v3258 = vmul.f32 %v3061, 0.5
        %v3259 = vmul.f32 %v3102, 0.5
        %v3260 = vmul.f32 %v3104, 0.5
        %v3261 = vmul.f32 %v3145, 0.5
        %v3262 = vmul.f32 %v3147, 0.5
        %v3263 = vmul.f32 %v3188, 0.5
        %v3264 = vmul.f32 %v3190, 0.5
        %v3265 = vmul.f32 %v3231, 0.5
        %v3266 = vmul.f32 %v3233, 0.5
        %v3267 = vmul.f32 %v2926, 0.70710677
        %v3268 = vmul.f32 %v2928, 0.70710677
        %v3269 = vmul.f32 %v2969, 0.70710677
        %v3270 = vmul.f32 %v2971, 0.70710677
        %v3271 = vmul.f32 %v3012, 0.70710677
        %v3272 = vmul.f32 %v3014, 0.70710677
        %v3273 = vmul.f32 %v3055, 0.70710677
        %v3274 = vmul.f32 %v3057, 0.70710677
        %v3275 = vmul.f32 %v3098, 0.70710677
        %v3276 = vmul.f32 %v3100, 0.70710677
        %v3277 = vmul.f32 %v3141, 0.70710677
        %v3278 = vmul.f32 %v3143, 0.70710677
        %v3279 = vmul.f32 %v3184, 0.70710677
        %v3280 = vmul.f32 %v3186, 0.70710677
        %v3281 = vmul.f32 %v3227, 0.70710677
        %v3282 = vmul.f32 %v3229, 0.70710677
        %v3283 = vmul.f32 %v2930, 0.70710677
        %v3284 = vmul.f32 %v2932, 0.70710677
        %v3285 = vmul.f32 %v2973, 0.70710677
        %v3286 = vmul.f32 %v2975, 0.70710677
        %v3287 = vmul.f32 %v3016, 0.70710677
        %v3288 = vmul.f32 %v3018, 0.70710677
        %v3289 = vmul.f32 %v3059, 0.70710677
        %v3290 = vmul.f32 %v3061, 0.70710677
        %v3291 = vmul.f32 %v3102, 0.70710677
        %v3292 = vmul.f32 %v3104, 0.70710677
        %v3293 = vmul.f32 %v3145, 0.70710677
        %v3294 = vmul.f32 %v3147, 0.70710677
        %v3295 = vmul.f32 %v3188, 0.70710677
        %v3296 = vmul.f32 %v3190, 0.70710677
        %v3297 = vmul.f32 %v3231, 0.70710677
        %v3298 = vmul.f32 %v3233, 0.70710677
        %v3299 = verf.f32.pop %v3267
        %v3300 = verf.f32.pop %v3268
        %v3301 = verf.f32.pop %v3269
        %v3302 = verf.f32.pop %v3270
        %v3303 = verf.f32.pop %v3271
        %v3304 = verf.f32.pop %v3272
        %v3305 = verf.f32.pop %v3273
        %v3306 = verf.f32.pop %v3274
        %v3307 = verf.f32.pop %v3275
        %v3308 = verf.f32.pop %v3276
        %v3309 = verf.f32.pop %v3277
        %v3310 = verf.f32.pop %v3278
        %v3311 = verf.f32.pop %v3279
        %v3312 = verf.f32.pop %v3280
        %v3313 = verf.f32.pop %v3281
        %v3314 = verf.f32.pop %v3282
        %v3315 = verf.f32.pop %v3283
        %v3316 = verf.f32.pop %v3284
        %v3317 = verf.f32.pop %v3285
        %v3318 = verf.f32.pop %v3286
        %v3319 = verf.f32.pop %v3287
        %v3320 = verf.f32.pop %v3288
        %v3321 = verf.f32.pop %v3289
        %v3322 = verf.f32.pop %v3290
        %v3323 = verf.f32.pop %v3291
        %v3324 = verf.f32.pop %v3292
        %v3325 = verf.f32.pop %v3293
        %v3326 = verf.f32.pop %v3294
        %v3327 = verf.f32.pop %v3295
        %v3328 = verf.f32.pop %v3296
        %v3329 = verf.f32.pop %v3297
        %v3330 = verf.f32.pop %v3298
        %v3331 = vadd.f32 %v3299, 1.0
        %v3332 = vadd.f32 %v3300, 1.0
        %v3333 = vadd.f32 %v3301, 1.0
        %v3334 = vadd.f32 %v3302, 1.0
        %v3335 = vadd.f32 %v3303, 1.0
        %v3336 = vadd.f32 %v3304, 1.0
        %v3337 = vadd.f32 %v3305, 1.0
        %v3338 = vadd.f32 %v3306, 1.0
        %v3339 = vadd.f32 %v3307, 1.0
        %v3340 = vadd.f32 %v3308, 1.0
        %v3341 = vadd.f32 %v3309, 1.0
        %v3342 = vadd.f32 %v3310, 1.0
        %v3343 = vadd.f32 %v3311, 1.0
        %v3344 = vadd.f32 %v3312, 1.0
        %v3345 = vadd.f32 %v3313, 1.0
        %v3346 = vadd.f32 %v3314, 1.0
        %v3347 = vadd.f32 %v3315, 1.0
        %v3348 = vadd.f32 %v3316, 1.0
        %v3349 = vadd.f32 %v3317, 1.0
        %v3350 = vadd.f32 %v3318, 1.0
        %v3351 = vadd.f32 %v3319, 1.0
        %v3352 = vadd.f32 %v3320, 1.0
        %v3353 = vadd.f32 %v3321, 1.0
        %v3354 = vadd.f32 %v3322, 1.0
        %v3355 = vadd.f32 %v3323, 1.0
        %v3356 = vadd.f32 %v3324, 1.0
        %v3357 = vadd.f32 %v3325, 1.0
        %v3358 = vadd.f32 %v3326, 1.0
        %v3359 = vadd.f32 %v3327, 1.0
        %v3360 = vadd.f32 %v3328, 1.0
        %v3361 = vadd.f32 %v3329, 1.0
        %v3362 = vadd.f32 %v3330, 1.0
        %v3363 = vmul.f32 %v3235, %v3331
        %v3364 = vmul.f32 %v3236, %v3332
        %v3365 = vmul.f32 %v3237, %v3333
        %v3366 = vmul.f32 %v3238, %v3334
        %v3367 = vmul.f32 %v3239, %v3335
        %v3368 = vmul.f32 %v3240, %v3336
        %v3369 = vmul.f32 %v3241, %v3337
        %v3370 = vmul.f32 %v3242, %v3338
        %v3371 = vmul.f32 %v3243, %v3339
        %v3372 = vmul.f32 %v3244, %v3340
        %v3373 = vmul.f32 %v3245, %v3341
        %v3374 = vmul.f32 %v3246, %v3342
        %v3375 = vmul.f32 %v3247, %v3343
        %v3376 = vmul.f32 %v3248, %v3344
        %v3377 = vmul.f32 %v3249, %v3345
        %v3378 = vmul.f32 %v3250, %v3346
        %v3379 = vmul.f32 %v3251, %v3347
        %v3380 = vmul.f32 %v3252, %v3348
        %v3381 = vmul.f32 %v3253, %v3349
        %v3382 = vmul.f32 %v3254, %v3350
        %v3383 = vmul.f32 %v3255, %v3351
        %v3384 = vmul.f32 %v3256, %v3352
        %v3385 = vmul.f32 %v3257, %v3353
        %v3386 = vmul.f32 %v3258, %v3354
        %v3387 = vmul.f32 %v3259, %v3355
        %v3388 = vmul.f32 %v3260, %v3356
        %v3389 = vmul.f32 %v3261, %v3357
        %v3390 = vmul.f32 %v3262, %v3358
        %v3391 = vmul.f32 %v3263, %v3359
        %v3392 = vmul.f32 %v3264, %v3360
        %v3393 = vmul.f32 %v3265, %v3361
        %v3394 = vmul.f32 %v3266, %v3362
        %v3395 = vpack.c.bf16 %v3379, %v3363
        %v3396 = vpack.c.bf16 %v3380, %v3364
        %v3397 = vpack.c.bf16 %v3381, %v3365
        %v3398 = vpack.c.bf16 %v3382, %v3366
        %v3399 = vpack.c.bf16 %v3383, %v3367
        %v3400 = vpack.c.bf16 %v3384, %v3368
        %v3401 = vpack.c.bf16 %v3385, %v3369
        %v3402 = vpack.c.bf16 %v3386, %v3370
        %v3403 = vpack.c.bf16 %v3387, %v3371
        %v3404 = vpack.c.bf16 %v3388, %v3372
        %v3405 = vpack.c.bf16 %v3389, %v3373
        %v3406 = vpack.c.bf16 %v3390, %v3374
        %v3407 = vpack.c.bf16 %v3391, %v3375
        %v3408 = vpack.c.bf16 %v3392, %v3376
        %v3409 = vpack.c.bf16 %v3393, %v3377
        %v3410 = vpack.c.bf16 %v3394, %v3378
        %v3411 = vld [vmem:[%s624] sm:$0xff]
        %v3412 = vld [vmem:[%s624 + $0x8] sm:$0xff]
        %v3413 = vld [vmem:[%s624 + $0x10] sm:$0xff]
        %v3414 = vld [vmem:[%s624 + $0x18] sm:$0xff]
        %v3415 = vld [vmem:[%s624 + $0x20] sm:$0xff]
        %v3416 = vld [vmem:[%s624 + $0x28] sm:$0xff]
        %v3417 = vld [vmem:[%s624 + $0x30] sm:$0xff]
        %v3418 = vld [vmem:[%s624 + $0x38] sm:$0xff]
        %v3419 = vld [vmem:[%s624 + $0x40] sm:$0xff]
        %v3420 = vld [vmem:[%s624 + $0x48] sm:$0xff]
        %v3421 = vld [vmem:[%s624 + $0x50] sm:$0xff]
        %v3422 = vld [vmem:[%s624 + $0x58] sm:$0xff]
        %v3423 = vld [vmem:[%s624 + $0x60] sm:$0xff]
        %v3424 = vld [vmem:[%s624 + $0x68] sm:$0xff]
        %v3425 = vld [vmem:[%s624 + $0x70] sm:$0xff]
        %v3426 = vld [vmem:[%s624 + $0x78] sm:$0xff]
        %v3427 = vld [vmem:[%s624 + $0x80] sm:$0xff]
        %v3428 = vld [vmem:[%s624 + $0x88] sm:$0xff]
        %v3429 = vld [vmem:[%s624 + $0x90] sm:$0xff]
        %v3430 = vld [vmem:[%s624 + $0x98] sm:$0xff]
        %v3431 = vld [vmem:[%s624 + $0xa0] sm:$0xff]
        %v3432 = vld [vmem:[%s624 + $0xa8] sm:$0xff]
        %v3433 = vld [vmem:[%s624 + $0xb0] sm:$0xff]
        %v3434 = vld [vmem:[%s624 + $0xb8] sm:$0xff]
        %v3435 = vld [vmem:[%s624 + $0xc0] sm:$0xff]
        %v3436 = vld [vmem:[%s624 + $0xc8] sm:$0xff]
        %v3437 = vld [vmem:[%s624 + $0xd0] sm:$0xff]
        %v3438 = vld [vmem:[%s624 + $0xd8] sm:$0xff]
        %v3439 = vld [vmem:[%s624 + $0xe0] sm:$0xff]
        %v3440 = vld [vmem:[%s624 + $0xe8] sm:$0xff]
        %v3441 = vld [vmem:[%s624 + $0xf0] sm:$0xff]
        %v3442 = vld [vmem:[%s624 + $0xf8] sm:$0xff]
        %v3443 = vld [vmem:[%s726] sm:$0x1]
        %v3445 = vlaneseq
        %v3446 = vshrl.u32 %v3445, 7
        %v3447 = vsub.s32 0, %v3446
        %v3448 = vrot.slane %v3443, %v3447
        %v3482 = vunpack.c.l.b16 %v3411
        %v3483 = vunpack.c.h.b16 %v3411
        %v3484 = vunpack.c.l.b16 %v3412
        %v3485 = vunpack.c.h.b16 %v3412
        %v3486 = vunpack.c.l.b16 %v3413
        %v3487 = vunpack.c.h.b16 %v3413
        %v3488 = vunpack.c.l.b16 %v3414
        %v3489 = vunpack.c.h.b16 %v3414
        %v3490 = vunpack.c.l.b16 %v3415
        %v3491 = vunpack.c.h.b16 %v3415
        %v3492 = vunpack.c.l.b16 %v3416
        %v3493 = vunpack.c.h.b16 %v3416
        %v3494 = vunpack.c.l.b16 %v3417
        %v3495 = vunpack.c.h.b16 %v3417
        %v3496 = vunpack.c.l.b16 %v3418
        %v3497 = vunpack.c.h.b16 %v3418
        %v3498 = vunpack.c.l.b16 %v3419
        %v3499 = vunpack.c.h.b16 %v3419
        %v3500 = vunpack.c.l.b16 %v3420
        %v3501 = vunpack.c.h.b16 %v3420
        %v3502 = vunpack.c.l.b16 %v3421
        %v3503 = vunpack.c.h.b16 %v3421
        %v3504 = vunpack.c.l.b16 %v3422
        %v3505 = vunpack.c.h.b16 %v3422
        %v3506 = vunpack.c.l.b16 %v3423
        %v3507 = vunpack.c.h.b16 %v3423
        %v3508 = vunpack.c.l.b16 %v3424
        %v3509 = vunpack.c.h.b16 %v3424
        %v3510 = vunpack.c.l.b16 %v3425
        %v3511 = vunpack.c.h.b16 %v3425
        %v3512 = vunpack.c.l.b16 %v3426
        %v3513 = vunpack.c.h.b16 %v3426
        %v3514 = vunpack.c.l.b16 %v3427
        %v3515 = vunpack.c.h.b16 %v3427
        %v3516 = vunpack.c.l.b16 %v3428
        %v3517 = vunpack.c.h.b16 %v3428
        %v3518 = vunpack.c.l.b16 %v3429
        %v3519 = vunpack.c.h.b16 %v3429
        %v3520 = vunpack.c.l.b16 %v3430
        %v3521 = vunpack.c.h.b16 %v3430
        %v3522 = vunpack.c.l.b16 %v3431
        %v3523 = vunpack.c.h.b16 %v3431
        %v3524 = vunpack.c.l.b16 %v3432
        %v3525 = vunpack.c.h.b16 %v3432
        %v3526 = vunpack.c.l.b16 %v3433
        %v3527 = vunpack.c.h.b16 %v3433
        %v3528 = vunpack.c.l.b16 %v3434
        %v3529 = vunpack.c.h.b16 %v3434
        %v3530 = vunpack.c.l.b16 %v3435
        %v3531 = vunpack.c.h.b16 %v3435
        %v3532 = vunpack.c.l.b16 %v3436
        %v3533 = vunpack.c.h.b16 %v3436
        %v3534 = vunpack.c.l.b16 %v3437
        %v3535 = vunpack.c.h.b16 %v3437
        %v3536 = vunpack.c.l.b16 %v3438
        %v3537 = vunpack.c.h.b16 %v3438
        %v3538 = vunpack.c.l.b16 %v3439
        %v3539 = vunpack.c.h.b16 %v3439
        %v3540 = vunpack.c.l.b16 %v3440
        %v3541 = vunpack.c.h.b16 %v3440
        %v3542 = vunpack.c.l.b16 %v3441
        %v3543 = vunpack.c.h.b16 %v3441
        %v3544 = vunpack.c.l.b16 %v3442
        %v3545 = vunpack.c.h.b16 %v3442
        %v3546 = vpack.c.b16 %v3498, %v3482
        %v3547 = vpack.c.b16 %v3499, %v3483
        %v3548 = vpack.c.b16 %v3500, %v3484
        %v3549 = vpack.c.b16 %v3501, %v3485
        %v3550 = vpack.c.b16 %v3502, %v3486
        %v3551 = vpack.c.b16 %v3503, %v3487
        %v3552 = vpack.c.b16 %v3504, %v3488
        %v3553 = vpack.c.b16 %v3505, %v3489
        %v3554 = vpack.c.b16 %v3506, %v3490
        %v3555 = vpack.c.b16 %v3507, %v3491
        %v3556 = vpack.c.b16 %v3508, %v3492
        %v3557 = vpack.c.b16 %v3509, %v3493
        %v3558 = vpack.c.b16 %v3510, %v3494
        %v3559 = vpack.c.b16 %v3511, %v3495
        %v3560 = vpack.c.b16 %v3512, %v3496
        %v3561 = vpack.c.b16 %v3513, %v3497
        %v3562 = vpack.c.b16 %v3530, %v3514
        %v3563 = vpack.c.b16 %v3531, %v3515
        %v3564 = vpack.c.b16 %v3532, %v3516
        %v3565 = vpack.c.b16 %v3533, %v3517
        %v3566 = vpack.c.b16 %v3534, %v3518
        %v3567 = vpack.c.b16 %v3535, %v3519
        %v3568 = vpack.c.b16 %v3536, %v3520
        %v3569 = vpack.c.b16 %v3537, %v3521
        %v3570 = vpack.c.b16 %v3538, %v3522
        %v3571 = vpack.c.b16 %v3539, %v3523
        %v3572 = vpack.c.b16 %v3540, %v3524
        %v3573 = vpack.c.b16 %v3541, %v3525
        %v3574 = vpack.c.b16 %v3542, %v3526
        %v3575 = vpack.c.b16 %v3543, %v3527
        %v3576 = vpack.c.b16 %v3544, %v3528
        %v3577 = vpack.c.b16 %v3545, %v3529
        %3610 = vmatprep.subr.bf16.mxu0 0
        %3611 = vmatpush1.bf16.xpose.msra.mxu0 0
        %3612 = vmatprep.subr.bf16.mxu0 0
        %3613 = vmatpush1.bf16.xpose.msra.mxu0 0
        %3614 = vmatprep.subr.bf16.mxu0 0
        %3615 = vmatpush1.bf16.xpose.msra.mxu0 0
        %3616 = vmatprep.subr.bf16.mxu0 0
        %3617 = vmatpush1.bf16.xpose.msra.mxu0 0
        %3618 = vmatprep.subr.bf16.mxu0 0
        %3619 = vmatpush1.bf16.xpose.msra.mxu0 0
        %3620 = vmatprep.subr.bf16.mxu0 0
        %3621 = vmatpush1.bf16.xpose.msra.mxu0 0
        %3622 = vmatprep.subr.bf16.mxu0 %v3563
        %3623 = vmatpush1.bf16.xpose.msra.mxu0 %v3562
        %3624 = vmatprep.subr.bf16.mxu0 %v3547
        %3625 = vmatpush1.bf16.xpose.msra.mxu0 %v3546
        %3626 = vmatprep.subr.bf16.mxu0 0
        %3627 = vmatpush2.bf16.xpose.msra.mxu0 0
        %3628 = vmatprep.subr.bf16.mxu0 0
        %3629 = vmatpush2.bf16.xpose.msra.mxu0 0
        %3630 = vmatprep.subr.bf16.mxu0 0
        %3631 = vmatpush2.bf16.xpose.msra.mxu0 0
        %3632 = vmatprep.subr.bf16.mxu0 0
        %3633 = vmatpush2.bf16.xpose.msra.mxu0 0
        %3634 = vmatprep.subr.bf16.mxu0 0
        %3635 = vmatpush2.bf16.xpose.msra.mxu0 0
        %3636 = vmatprep.subr.bf16.mxu0 0
        %3637 = vmatpush2.bf16.xpose.msra.mxu0 0
        %3638 = vmatprep.subr.bf16.mxu0 0
        %3639 = vmatpush2.bf16.xpose.msra.mxu0 0
        %3640 = vmatprep.subr.bf16.mxu0 0
        %3641 = vmatpush2.bf16.xpose.msra.mxu0 0
        %3642 = vmatprep.mubr.bf16.mxu0 %v3396
        %3643 = vmatmul.mubr.bf16.gmra.mxu0 %v3395
        %v3644 = vpop.f32.mrf.mxu0
        %v3645 = vadd.f32 %v3448, %v3644
        %v3646 = vpop.f32.mrf.mxu0
        %v3647 = vpop.f32.mrf.mxu0
        %v3648 = vadd.f32 %v3448, %v3647
        %v3649 = vpop.f32.mrf.mxu0
        %3650 = vdwg.mxu0
        %3651 = vmatprep.subr.bf16.mxu0 0
        %3652 = vmatpush1.bf16.xpose.msra.mxu0 0
        %3653 = vmatprep.subr.bf16.mxu0 0
        %3654 = vmatpush1.bf16.xpose.msra.mxu0 0
        %3655 = vmatprep.subr.bf16.mxu0 0
        %3656 = vmatpush1.bf16.xpose.msra.mxu0 0
        %3657 = vmatprep.subr.bf16.mxu0 0
        %3658 = vmatpush1.bf16.xpose.msra.mxu0 0
        %3659 = vmatprep.subr.bf16.mxu0 0
        %3660 = vmatpush1.bf16.xpose.msra.mxu0 0
        %3661 = vmatprep.subr.bf16.mxu0 0
        %3662 = vmatpush1.bf16.xpose.msra.mxu0 0
        %3663 = vmatprep.subr.bf16.mxu0 %v3565
        %3664 = vmatpush1.bf16.xpose.msra.mxu0 %v3564
        %3665 = vmatprep.subr.bf16.mxu0 %v3549
        %3666 = vmatpush1.bf16.xpose.msra.mxu0 %v3548
        %3667 = vmatprep.subr.bf16.mxu0 0
        %3668 = vmatpush2.bf16.xpose.msra.mxu0 0
        %3669 = vmatprep.subr.bf16.mxu0 0
        %3670 = vmatpush2.bf16.xpose.msra.mxu0 0
        %3671 = vmatprep.subr.bf16.mxu0 0
        %3672 = vmatpush2.bf16.xpose.msra.mxu0 0
        %3673 = vmatprep.subr.bf16.mxu0 0
        %3674 = vmatpush2.bf16.xpose.msra.mxu0 0
        %3675 = vmatprep.subr.bf16.mxu0 0
        %3676 = vmatpush2.bf16.xpose.msra.mxu0 0
        %3677 = vmatprep.subr.bf16.mxu0 0
        %3678 = vmatpush2.bf16.xpose.msra.mxu0 0
        %3679 = vmatprep.subr.bf16.mxu0 0
        %3680 = vmatpush2.bf16.xpose.msra.mxu0 0
        %3681 = vmatprep.subr.bf16.mxu0 0
        %3682 = vmatpush2.bf16.xpose.msra.mxu0 0
        %3683 = vmatprep.mubr.bf16.mxu0 %v3398
        %3684 = vmatmul.mubr.bf16.gmra.mxu0 %v3397
        %v3685 = vpop.f32.mrf.mxu0
        %v3686 = vadd.f32 %v3645, %v3685
        %v3687 = vpop.f32.mrf.mxu0
        %v3688 = vpop.f32.mrf.mxu0
        %v3689 = vadd.f32 %v3648, %v3688
        %v3690 = vpop.f32.mrf.mxu0
        %3691 = vdwg.mxu0
        %3692 = vmatprep.subr.bf16.mxu0 0
        %3693 = vmatpush1.bf16.xpose.msra.mxu0 0
        %3694 = vmatprep.subr.bf16.mxu0 0
        %3695 = vmatpush1.bf16.xpose.msra.mxu0 0
        %3696 = vmatprep.subr.bf16.mxu0 0
        %3697 = vmatpush1.bf16.xpose.msra.mxu0 0
        %3698 = vmatprep.subr.bf16.mxu0 0
        %3699 = vmatpush1.bf16.xpose.msra.mxu0 0
        %3700 = vmatprep.subr.bf16.mxu0 0
        %3701 = vmatpush1.bf16.xpose.msra.mxu0 0
        %3702 = vmatprep.subr.bf16.mxu0 0
        %3703 = vmatpush1.bf16.xpose.msra.mxu0 0
        %3704 = vmatprep.subr.bf16.mxu0 %v3567
        %3705 = vmatpush1.bf16.xpose.msra.mxu0 %v3566
        %3706 = vmatprep.subr.bf16.mxu0 %v3551
        %3707 = vmatpush1.bf16.xpose.msra.mxu0 %v3550
        %3708 = vmatprep.subr.bf16.mxu0 0
        %3709 = vmatpush2.bf16.xpose.msra.mxu0 0
        %3710 = vmatprep.subr.bf16.mxu0 0
        %3711 = vmatpush2.bf16.xpose.msra.mxu0 0
        %3712 = vmatprep.subr.bf16.mxu0 0
        %3713 = vmatpush2.bf16.xpose.msra.mxu0 0
        %3714 = vmatprep.subr.bf16.mxu0 0
        %3715 = vmatpush2.bf16.xpose.msra.mxu0 0
        %3716 = vmatprep.subr.bf16.mxu0 0
        %3717 = vmatpush2.bf16.xpose.msra.mxu0 0
        %3718 = vmatprep.subr.bf16.mxu0 0
        %3719 = vmatpush2.bf16.xpose.msra.mxu0 0
        %3720 = vmatprep.subr.bf16.mxu0 0
        %3721 = vmatpush2.bf16.xpose.msra.mxu0 0
        %3722 = vmatprep.subr.bf16.mxu0 0
        %3723 = vmatpush2.bf16.xpose.msra.mxu0 0
        %3724 = vmatprep.mubr.bf16.mxu0 %v3400
        %3725 = vmatmul.mubr.bf16.gmra.mxu0 %v3399
        %v3726 = vpop.f32.mrf.mxu0
        %v3727 = vadd.f32 %v3686, %v3726
        %v3728 = vpop.f32.mrf.mxu0
        %v3729 = vpop.f32.mrf.mxu0
        %v3730 = vadd.f32 %v3689, %v3729
        %v3731 = vpop.f32.mrf.mxu0
        %3732 = vdwg.mxu0
        %3733 = vmatprep.subr.bf16.mxu0 0
        %3734 = vmatpush1.bf16.xpose.msra.mxu0 0
        %3735 = vmatprep.subr.bf16.mxu0 0
        %3736 = vmatpush1.bf16.xpose.msra.mxu0 0
        %3737 = vmatprep.subr.bf16.mxu0 0
        %3738 = vmatpush1.bf16.xpose.msra.mxu0 0
        %3739 = vmatprep.subr.bf16.mxu0 0
        %3740 = vmatpush1.bf16.xpose.msra.mxu0 0
        %3741 = vmatprep.subr.bf16.mxu0 0
        %3742 = vmatpush1.bf16.xpose.msra.mxu0 0
        %3743 = vmatprep.subr.bf16.mxu0 0
        %3744 = vmatpush1.bf16.xpose.msra.mxu0 0
        %3745 = vmatprep.subr.bf16.mxu0 %v3569
        %3746 = vmatpush1.bf16.xpose.msra.mxu0 %v3568
        %3747 = vmatprep.subr.bf16.mxu0 %v3553
        %3748 = vmatpush1.bf16.xpose.msra.mxu0 %v3552
        %3749 = vmatprep.subr.bf16.mxu0 0
        %3750 = vmatpush2.bf16.xpose.msra.mxu0 0
        %3751 = vmatprep.subr.bf16.mxu0 0
        %3752 = vmatpush2.bf16.xpose.msra.mxu0 0
        %3753 = vmatprep.subr.bf16.mxu0 0
        %3754 = vmatpush2.bf16.xpose.msra.mxu0 0
        %3755 = vmatprep.subr.bf16.mxu0 0
        %3756 = vmatpush2.bf16.xpose.msra.mxu0 0
        %3757 = vmatprep.subr.bf16.mxu0 0
        %3758 = vmatpush2.bf16.xpose.msra.mxu0 0
        %3759 = vmatprep.subr.bf16.mxu0 0
        %3760 = vmatpush2.bf16.xpose.msra.mxu0 0
        %3761 = vmatprep.subr.bf16.mxu0 0
        %3762 = vmatpush2.bf16.xpose.msra.mxu0 0
        %3763 = vmatprep.subr.bf16.mxu0 0
        %3764 = vmatpush2.bf16.xpose.msra.mxu0 0
        %3765 = vmatprep.mubr.bf16.mxu0 %v3402
        %3766 = vmatmul.mubr.bf16.gmra.mxu0 %v3401
        %v3767 = vpop.f32.mrf.mxu0
        %v3768 = vadd.f32 %v3727, %v3767
        %v3769 = vpop.f32.mrf.mxu0
        %v3770 = vpop.f32.mrf.mxu0
        %v3771 = vadd.f32 %v3730, %v3770
        %v3772 = vpop.f32.mrf.mxu0
        %3773 = vdwg.mxu0
        %3774 = vmatprep.subr.bf16.mxu0 0
        %3775 = vmatpush1.bf16.xpose.msra.mxu0 0
        %3776 = vmatprep.subr.bf16.mxu0 0
        %3777 = vmatpush1.bf16.xpose.msra.mxu0 0
        %3778 = vmatprep.subr.bf16.mxu0 0
        %3779 = vmatpush1.bf16.xpose.msra.mxu0 0
        %3780 = vmatprep.subr.bf16.mxu0 0
        %3781 = vmatpush1.bf16.xpose.msra.mxu0 0
        %3782 = vmatprep.subr.bf16.mxu0 0
        %3783 = vmatpush1.bf16.xpose.msra.mxu0 0
        %3784 = vmatprep.subr.bf16.mxu0 0
        %3785 = vmatpush1.bf16.xpose.msra.mxu0 0
        %3786 = vmatprep.subr.bf16.mxu0 %v3571
        %3787 = vmatpush1.bf16.xpose.msra.mxu0 %v3570
        %3788 = vmatprep.subr.bf16.mxu0 %v3555
        %3789 = vmatpush1.bf16.xpose.msra.mxu0 %v3554
        %3790 = vmatprep.subr.bf16.mxu0 0
        %3791 = vmatpush2.bf16.xpose.msra.mxu0 0
        %3792 = vmatprep.subr.bf16.mxu0 0
        %3793 = vmatpush2.bf16.xpose.msra.mxu0 0
        %3794 = vmatprep.subr.bf16.mxu0 0
        %3795 = vmatpush2.bf16.xpose.msra.mxu0 0
        %3796 = vmatprep.subr.bf16.mxu0 0
        %3797 = vmatpush2.bf16.xpose.msra.mxu0 0
        %3798 = vmatprep.subr.bf16.mxu0 0
        %3799 = vmatpush2.bf16.xpose.msra.mxu0 0
        %3800 = vmatprep.subr.bf16.mxu0 0
        %3801 = vmatpush2.bf16.xpose.msra.mxu0 0
        %3802 = vmatprep.subr.bf16.mxu0 0
        %3803 = vmatpush2.bf16.xpose.msra.mxu0 0
        %3804 = vmatprep.subr.bf16.mxu0 0
        %3805 = vmatpush2.bf16.xpose.msra.mxu0 0
        %3806 = vmatprep.mubr.bf16.mxu0 %v3404
        %3807 = vmatmul.mubr.bf16.gmra.mxu0 %v3403
        %v3808 = vpop.f32.mrf.mxu0
        %v3809 = vadd.f32 %v3768, %v3808
        %v3810 = vpop.f32.mrf.mxu0
        %v3811 = vpop.f32.mrf.mxu0
        %v3812 = vadd.f32 %v3771, %v3811
        %v3813 = vpop.f32.mrf.mxu0
        %3814 = vdwg.mxu0
        %3815 = vmatprep.subr.bf16.mxu0 0
        %3816 = vmatpush1.bf16.xpose.msra.mxu0 0
        %3817 = vmatprep.subr.bf16.mxu0 0
        %3818 = vmatpush1.bf16.xpose.msra.mxu0 0
        %3819 = vmatprep.subr.bf16.mxu0 0
        %3820 = vmatpush1.bf16.xpose.msra.mxu0 0
        %3821 = vmatprep.subr.bf16.mxu0 0
        %3822 = vmatpush1.bf16.xpose.msra.mxu0 0
        %3823 = vmatprep.subr.bf16.mxu0 0
        %3824 = vmatpush1.bf16.xpose.msra.mxu0 0
        %3825 = vmatprep.subr.bf16.mxu0 0
        %3826 = vmatpush1.bf16.xpose.msra.mxu0 0
        %3827 = vmatprep.subr.bf16.mxu0 %v3573
        %3828 = vmatpush1.bf16.xpose.msra.mxu0 %v3572
        %3829 = vmatprep.subr.bf16.mxu0 %v3557
        %3830 = vmatpush1.bf16.xpose.msra.mxu0 %v3556
        %3831 = vmatprep.subr.bf16.mxu0 0
        %3832 = vmatpush2.bf16.xpose.msra.mxu0 0
        %3833 = vmatprep.subr.bf16.mxu0 0
        %3834 = vmatpush2.bf16.xpose.msra.mxu0 0
        %3835 = vmatprep.subr.bf16.mxu0 0
        %3836 = vmatpush2.bf16.xpose.msra.mxu0 0
        %3837 = vmatprep.subr.bf16.mxu0 0
        %3838 = vmatpush2.bf16.xpose.msra.mxu0 0
        %3839 = vmatprep.subr.bf16.mxu0 0
        %3840 = vmatpush2.bf16.xpose.msra.mxu0 0
        %3841 = vmatprep.subr.bf16.mxu0 0
        %3842 = vmatpush2.bf16.xpose.msra.mxu0 0
        %3843 = vmatprep.subr.bf16.mxu0 0
        %3844 = vmatpush2.bf16.xpose.msra.mxu0 0
        %3845 = vmatprep.subr.bf16.mxu0 0
        %3846 = vmatpush2.bf16.xpose.msra.mxu0 0
        %3847 = vmatprep.mubr.bf16.mxu0 %v3406
        %3848 = vmatmul.mubr.bf16.gmra.mxu0 %v3405
        %v3849 = vpop.f32.mrf.mxu0
        %v3850 = vadd.f32 %v3809, %v3849
        %v3851 = vpop.f32.mrf.mxu0
        %v3852 = vpop.f32.mrf.mxu0
        %v3853 = vadd.f32 %v3812, %v3852
        %v3854 = vpop.f32.mrf.mxu0
        %3855 = vdwg.mxu0
        %3856 = vmatprep.subr.bf16.mxu0 0
        %3857 = vmatpush1.bf16.xpose.msra.mxu0 0
        %3858 = vmatprep.subr.bf16.mxu0 0
        %3859 = vmatpush1.bf16.xpose.msra.mxu0 0
        %3860 = vmatprep.subr.bf16.mxu0 0
        %3861 = vmatpush1.bf16.xpose.msra.mxu0 0
        %3862 = vmatprep.subr.bf16.mxu0 0
        %3863 = vmatpush1.bf16.xpose.msra.mxu0 0
        %3864 = vmatprep.subr.bf16.mxu0 0
        %3865 = vmatpush1.bf16.xpose.msra.mxu0 0
        %3866 = vmatprep.subr.bf16.mxu0 0
        %3867 = vmatpush1.bf16.xpose.msra.mxu0 0
        %3868 = vmatprep.subr.bf16.mxu0 %v3575
        %3869 = vmatpush1.bf16.xpose.msra.mxu0 %v3574
        %3870 = vmatprep.subr.bf16.mxu0 %v3559
        %3871 = vmatpush1.bf16.xpose.msra.mxu0 %v3558
        %3872 = vmatprep.subr.bf16.mxu0 0
        %3873 = vmatpush2.bf16.xpose.msra.mxu0 0
        %3874 = vmatprep.subr.bf16.mxu0 0
        %3875 = vmatpush2.bf16.xpose.msra.mxu0 0
        %3876 = vmatprep.subr.bf16.mxu0 0
        %3877 = vmatpush2.bf16.xpose.msra.mxu0 0
        %3878 = vmatprep.subr.bf16.mxu0 0
        %3879 = vmatpush2.bf16.xpose.msra.mxu0 0
        %3880 = vmatprep.subr.bf16.mxu0 0
        %3881 = vmatpush2.bf16.xpose.msra.mxu0 0
        %3882 = vmatprep.subr.bf16.mxu0 0
        %3883 = vmatpush2.bf16.xpose.msra.mxu0 0
        %3884 = vmatprep.subr.bf16.mxu0 0
        %3885 = vmatpush2.bf16.xpose.msra.mxu0 0
        %3886 = vmatprep.subr.bf16.mxu0 0
        %3887 = vmatpush2.bf16.xpose.msra.mxu0 0
        %3888 = vmatprep.mubr.bf16.mxu0 %v3408
        %3889 = vmatmul.mubr.bf16.gmra.mxu0 %v3407
        %v3890 = vpop.f32.mrf.mxu0
        %v3891 = vadd.f32 %v3850, %v3890
        %v3892 = vpop.f32.mrf.mxu0
        %v3893 = vpop.f32.mrf.mxu0
        %v3894 = vadd.f32 %v3853, %v3893
        %v3895 = vpop.f32.mrf.mxu0
        %3896 = vdwg.mxu0
        %3897 = vmatprep.subr.bf16.mxu0 0
        %3898 = vmatpush1.bf16.xpose.msra.mxu0 0
        %3899 = vmatprep.subr.bf16.mxu0 0
        %3900 = vmatpush1.bf16.xpose.msra.mxu0 0
        %3901 = vmatprep.subr.bf16.mxu0 0
        %3902 = vmatpush1.bf16.xpose.msra.mxu0 0
        %3903 = vmatprep.subr.bf16.mxu0 0
        %3904 = vmatpush1.bf16.xpose.msra.mxu0 0
        %3905 = vmatprep.subr.bf16.mxu0 0
        %3906 = vmatpush1.bf16.xpose.msra.mxu0 0
        %3907 = vmatprep.subr.bf16.mxu0 0
        %3908 = vmatpush1.bf16.xpose.msra.mxu0 0
        %3909 = vmatprep.subr.bf16.mxu0 %v3577
        %3910 = vmatpush1.bf16.xpose.msra.mxu0 %v3576
        %3911 = vmatprep.subr.bf16.mxu0 %v3561
        %3912 = vmatpush1.bf16.xpose.msra.mxu0 %v3560
        %3913 = vmatprep.subr.bf16.mxu0 0
        %3914 = vmatpush2.bf16.xpose.msra.mxu0 0
        %3915 = vmatprep.subr.bf16.mxu0 0
        %3916 = vmatpush2.bf16.xpose.msra.mxu0 0
        %3917 = vmatprep.subr.bf16.mxu0 0
        %3918 = vmatpush2.bf16.xpose.msra.mxu0 0
        %3919 = vmatprep.subr.bf16.mxu0 0
        %3920 = vmatpush2.bf16.xpose.msra.mxu0 0
        %3921 = vmatprep.subr.bf16.mxu0 0
        %3922 = vmatpush2.bf16.xpose.msra.mxu0 0
        %3923 = vmatprep.subr.bf16.mxu0 0
        %3924 = vmatpush2.bf16.xpose.msra.mxu0 0
        %3925 = vmatprep.subr.bf16.mxu0 0
        %3926 = vmatpush2.bf16.xpose.msra.mxu0 0
        %3927 = vmatprep.subr.bf16.mxu0 0
        %3928 = vmatpush2.bf16.xpose.msra.mxu0 0
        %3929 = vmatprep.mubr.bf16.mxu0 %v3410
        %3930 = vmatmul.mubr.bf16.gmra.mxu0 %v3409
        %v3931 = vpop.f32.mrf.mxu0
        %v3932 = vadd.f32 %v3891, %v3931
        %v3933 = vpop.f32.mrf.mxu0
        %v3934 = vpop.f32.mrf.mxu0
        %v3935 = vadd.f32 %v3894, %v3934
        %v3936 = vpop.f32.mrf.mxu0
        %3937 = vdwg.mxu0
        %v3938 = vadd.f32 %v2609, %v3932
        %v3939 = vadd.f32 %v2610, %v3935
        %v3940 = vsel %vm769, %v3938, 0.0
        %3941 = vadd.xlane.f32.xlu0 %v3940
        %v3942 = vpop.xlane.xlu0 %3941
        %v3943 = vsel %vm769, %v3939, 0.0
        %3944 = vadd.xlane.f32.xlu0 %v3943
        %v3945 = vpop.xlane.xlu0 %3944
        %v3946 = vmul.f32 %v3942, %v2572
        %v3947 = vmul.f32 %v3945, %v2572
        %v3948 = vsub.f32 %v3938, %v3946
        %v3949 = vsub.f32 %v3939, %v3947
        %v3950 = vmul.f32 %v3948, %v3948
        %v3951 = vmul.f32 %v3949, %v3949
        %v3952 = vsel %vm769, %v3950, 0.0
        %3953 = vadd.xlane.f32.xlu0 %v3952
        %v3954 = vpop.xlane.xlu0 %3953
        %v3955 = vsel %vm769, %v3951, 0.0
        %3956 = vadd.xlane.f32.xlu0 %v3955
        %v3957 = vpop.xlane.xlu0 %3956
        %v3958 = vmul.f32 %v3954, %v2572
        %v3959 = vmul.f32 %v3957, %v2572
        %v3960 = vadd.f32 %v3958, 1e-05
        %v3961 = vadd.f32 %v3959, 1e-05
        %v3962 = vrsqrt.pop %v3960
        %v3963 = vrsqrt.pop %v3961
        %v3964 = vmul.f32 %v3948, %v3962
        %v3965 = vmul.f32 %v3949, %v3963
        %v3966 = vld [vmem:[%s729] sm:$0x1]
        %v3968 = vlaneseq
        %v3969 = vshrl.u32 %v3968, 7
        %v3970 = vsub.s32 0, %v3969
        %v3971 = vrot.slane %v3966, %v3970
        %v3973 = vmul.f32 %v3964, %v3971
        %v3974 = vmul.f32 %v3965, %v3971
        %v3975 = vld [vmem:[%s732] sm:$0x1]
        %v3977 = vlaneseq
        %v3978 = vshrl.u32 %v3977, 7
        %v3979 = vsub.s32 0, %v3978
        %v3980 = vrot.slane %v3975, %v3979
        %v3982 = vadd.f32 %v3973, %v3980
        %v3983 = vadd.f32 %v3974, %v3980
        %3984 = vst.msk [vmem:[#allocation2] sm:$0xff] %vm769, %v3982
        %3985 = vst.msk [vmem:[#allocation2 + $0x8] sm:$0xff] %vm769, %v3983
        %p3986 = scmp.eq.s32.totalorder %s35, 3
        // Predicated region
        $region101: #{memo_transformer_forward.1} parent=79 // pred_check
          %p3987 = pneg %p3986
        $region102: #{memo_transformer_forward.1} parent=79 // pred_check_branch
          %3989 = sbr.rel (%p3987) target = $region104
        $region103: #{memo_transformer_forward.1} parent=79 // pred_region
          %3990 = vst.msk [vmem:[%s15] sm:$0xff] %vm769, %v3982
          %3991 = vst.msk [vmem:[%s15 + $0x8] sm:$0xff] %vm769, %v3983
        $region104: #{memo_transformer_forward.1} parent=79 // pred_fallthru
          _
        // Predicated region
        $region105: #{memo_transformer_forward.1} parent=79 // pred_check
          %p3992 = pneg %p423
        $region106: #{memo_transformer_forward.1} parent=79 // pred_check_branch
          %3994 = sbr.rel (%p3992) target = $region108
        $region107: #{memo_transformer_forward.1} parent=79 // pred_region
          _
        $region108: #{memo_transformer_forward.1} parent=79 // pred_fallthru
          _
        // Predicated region
        $region109: #{memo_transformer_forward.1} parent=79 // pred_check
          %p3995 = pneg %p423
        $region110: #{memo_transformer_forward.1} parent=79 // pred_check_branch
          %3997 = sbr.rel (%p3995) target = $region112
        $region111: #{memo_transformer_forward.1} parent=79 // pred_region
          _
        $region112: #{memo_transformer_forward.1} parent=79 // pred_fallthru
          _
      $region80: #{memo_transformer_forward.1} parent=5 // pred_fallthru
        _
      %p3998 = scmp.le.s32.totalorder 2, %s30
      // Predicated region
      $region113: #{memo_transformer_forward.1} parent=5 // pred_check
        %p3999 = pneg %p3998
      $region114: #{memo_transformer_forward.1} parent=5 // pred_check_branch
        %4001 = sbr.rel (%p3999) target = $region116
      $region115: #{memo_transformer_forward.1} parent=5 // pred_region
        %s4002 = ssub.s32 %s30, 2
      $region116: #{memo_transformer_forward.1} parent=5 // pred_fallthru
        _
    $region6: #{memo_transformer_forward.1} parent=1 // loop_footer
      %s34 = sadd.s32 1, %s30
    $region7: #{memo_transformer_forward.1} parent=1 // loop_footer_branch
      %29 = sbr.rel target = $region3
    $region8: #{memo_transformer_forward.1} parent=1 // loop_exit
      _
    %4003 = vsyncpa [#allocation4], 1
    %s4004 = scalar_lea.sflag [#allocation4], 1
    %4005 = vsyncpa %s4004, 1
    %4006 = vsyncpa [#allocation6], 1
    %s4007 = scalar_lea.sflag [#allocation6], 1
    %4008 = vsyncpa %s4007, 1
    %4009 = vsyncpa [#allocation9], 1
    %s4010 = scalar_lea.sflag [#allocation9], 1
    %4011 = vsyncpa %s4010, 1

</llo_original>
